<compile_context>
chip_gen: v6e
topology: v6e:2x2x1
jax: 0.10.0
libtpu: 0.0.40
codegen_flags: <defaults>
</compile_context>

<pallas_src>
import jax
import jax.numpy as jnp
from jax.experimental import pallas as pl
from jax.experimental.pallas import tpu as pltpu


# Left padding columns in the conv2 scratch.  The image interior sits at column
# offset 16, which is sublane-aligned for bf16 packing; the zero halo columns
# needed by the 3x3 window live at offsets _PADL-1 and _PADL+W.
_PADL = 16


def _vmem_limit_bytes():
    """Generation-aware scoped-VMEM limit (v5e/v6e: ~96 MiB, v7x: ~48 MiB)."""
    cap = None
    try:
        cap = getattr(pltpu.get_tpu_info(), "vmem_capacity_bytes", None)
    except Exception:
        cap = None
    if cap is None:
        cap = 64 * 1024 * 1024          # conservative fallback
    return min(int(cap * 3 // 4), 100 * 1024 * 1024)


# ---------------------------------------------------------------------------
# Fused Bottleneck kernel
# ---------------------------------------------------------------------------

def bottleneck_fused_kernel(x_ref, w1_ref, s1_ref, b1_ref,
                            w2_ref, s2_ref, b2_ref,
                            w3_ref, s3_ref, b3_ref,
                            o_ref, xpad_ref, patch_ref):
    # x_ref   : (1, H, W, Cin)        input tile (also the residual)
    # w1_ref  : (Cin, C)       bf16   1x1 conv weights
    # w2_ref  : (9*C, C)       bf16   3x3 HWIO weights flattened over (kh,kw,ci)
    # w3_ref  : (C, Cout)      bf16   1x1 conv weights
    # s*/b*   : (1, C*)        f32    folded BatchNorm scale / bias
    # o_ref   : (1, H, W, Cout)
    # xpad_ref: (H+2, W+2*_PADL, C)   bf16 VMEM scratch (zero-padded h1)
    # patch_ref: (H*W, 9*C)           bf16 VMEM scratch (im2col patch matrix)
    H, W, Cin = x_ref.shape[1], x_ref.shape[2], x_ref.shape[3]
    C = w1_ref.shape[1]
    Cout = w3_ref.shape[1]

    x2d = x_ref[0].reshape(H * W, Cin)

    # --- conv1 (1x1) + bn1 + relu (h1 never leaves VMEM) --------------------
    h1 = jnp.dot(x2d.astype(jnp.bfloat16), w1_ref[...],
                 preferred_element_type=jnp.float32)
    h1 = jnp.maximum(h1 * s1_ref[...] + b1_ref[...], 0.0)

    # --- build zero-padded conv2 input in VMEM ------------------------------
    # Zero only the halo border (the interior is fully overwritten below);
    # this is safe regardless of megacore grid sharding and avoids a full
    # scratch memset every step.
    Wp = xpad_ref.shape[1]
    zrow = jnp.zeros((1, Wp, C), dtype=xpad_ref.dtype)
    xpad_ref[0:1, :, :] = zrow
    xpad_ref[H + 1:H + 2, :, :] = zrow
    zcol = jnp.zeros((H + 2, 1, C), dtype=xpad_ref.dtype)
    xpad_ref[:, _PADL - 1:_PADL, :] = zcol
    xpad_ref[:, _PADL + W:_PADL + W + 1, :] = zcol
    # Interior store: bf16, column offset _PADL = 16 keeps it sublane-aligned.
    xpad_ref[1:H + 1, _PADL:_PADL + W, :] = (
        h1.astype(jnp.bfloat16).reshape(H, W, C))

    # --- im2col patch matrix via direct slice stores (no lane-dim concat) ---
    for kh in range(3):
        for kw in range(3):
            kk = kh * 3 + kw
            c0 = _PADL - 1 + kw
            tap = xpad_ref[kh:kh + H, c0:c0 + W, :]          # (H, W, C) bf16
            patch_ref[:, kk * C:(kk + 1) * C] = tap.reshape(H * W, C)

    # --- conv2 (3x3) + bn2 + relu: one K = 9*C matmul ------------------------
    h2 = jnp.dot(patch_ref[...], w2_ref[...],
                 preferred_element_type=jnp.float32)
    h2 = jnp.maximum(h2 * s2_ref[...] + b2_ref[...], 0.0)

    # --- conv3 (1x1) + bn3 + residual add + relu -----------------------------
    y = jnp.dot(h2.astype(jnp.bfloat16), w3_ref[...],
                preferred_element_type=jnp.float32)
    y = y * s3_ref[...] + b3_ref[...] + x2d.astype(jnp.float32)
    o_ref[...] = jnp.maximum(y, 0.0).reshape(1, H, W, Cout).astype(o_ref.dtype)


# ---------------------------------------------------------------------------
# Wrappers
# ---------------------------------------------------------------------------

def bottleneck_forward_nhwc(x_nhwc, p):
    """Bottleneck.forward on NHWC input (stride=1, downsample=None, cbam=None).

    Output dtype follows the input dtype (pass bf16 activations for minimal
    HBM traffic; f32 accumulation / epilogue is used in-kernel either way).
    """
    n, h, w, cin = x_nhwc.shape
    width = p["w1"].shape[1]
    cout = p["w3"].shape[1]
    if cin != cout:
        raise ValueError("downsample=None requires inplanes == planes * 4")

    w2_flat = p["w2"].reshape(9 * width, width)   # (kh, kw, ci) -> rows

    return pl.pallas_call(
        bottleneck_fused_kernel,
        out_shape=jax.ShapeDtypeStruct((n, h, w, cout), x_nhwc.dtype),
        grid=(n,),
        in_specs=[
            pl.BlockSpec((1, h, w, cin), lambda i: (i, 0, 0, 0)),   # x tile
            pl.BlockSpec((cin, width), lambda i: (0, 0)),           # w1
            pl.BlockSpec((1, width), lambda i: (0, 0)),             # s1
            pl.BlockSpec((1, width), lambda i: (0, 0)),             # b1
            pl.BlockSpec((9 * width, width), lambda i: (0, 0)),     # w2 flat
            pl.BlockSpec((1, width), lambda i: (0, 0)),             # s2
            pl.BlockSpec((1, width), lambda i: (0, 0)),             # b2
            pl.BlockSpec((width, cout), lambda i: (0, 0)),          # w3
            pl.BlockSpec((1, cout), lambda i: (0, 0)),              # s3
            pl.BlockSpec((1, cout), lambda i: (0, 0)),              # b3
        ],
        out_specs=pl.BlockSpec((1, h, w, cout), lambda i: (i, 0, 0, 0)),
        scratch_shapes=[
            pltpu.VMEM((h + 2, w + 2 * _PADL, width), jnp.bfloat16),  # xpad
            pltpu.VMEM((h * w, 9 * width), jnp.bfloat16),             # patches
        ],
        compiler_params=pltpu.CompilerParams(
            dimension_semantics=("parallel",),
            vmem_limit_bytes=_vmem_limit_bytes(),
        ),
    )(x_nhwc, p["w1"], p["s1"], p["b1"], w2_flat, p["s2"], p["b2"],
      p["w3"], p["s3"], p["b3"])


def bottleneck_forward(x_nchw, p):
    """PyTorch-layout (NCHW) entry point."""
    x = jnp.transpose(x_nchw, (0, 2, 3, 1))          # NCHW -> NHWC
    out = bottleneck_forward_nhwc(x, p)
    return jnp.transpose(out, (0, 3, 1, 2))           # NHWC -> NCHW


# ---------------------------------------------------------------------------
# Parameter construction + pure-JAX reference
# ---------------------------------------------------------------------------

def make_params(key, inplanes, planes, base_width=64, groups=1):
    width = int(planes * (base_width / 64.0)) * groups
    outp = planes * 4
    eps = 1e-5
    ks = jax.random.split(key, 15)

    def bn_fold(kg, kb, km, kv, c):
        gamma = 1.0 + 0.1 * jax.random.normal(kg, (c,), jnp.float32)
        beta = 0.1 * jax.random.normal(kb, (c,), jnp.float32)
        mean = 0.1 * jax.random.normal(km, (c,), jnp.float32)
        var = 1.0 + 0.1 * jnp.abs(jax.random.normal(kv, (c,), jnp.float32))
        scale = gamma / jnp.sqrt(var + eps)
        bias = beta - mean * scale
        return scale.reshape(1, c), bias.reshape(1, c)

    p = {}
    # Weights stored in bf16 (MXU-native); BN scale/bias stay f32.
    p["w1"] = (0.1 * jax.random.normal(ks[0], (inplanes, width),
                                       jnp.float32)).astype(jnp.bfloat16)
    p["w2"] = (0.1 * jax.random.normal(ks[1], (3, 3, width, width),
                                       jnp.float32)).astype(jnp.bfloat16)   # HWIO
    p["w3"] = (0.1 * jax.random.normal(ks[2], (width, outp),
                                       jnp.float32)).astype(jnp.bfloat16)
    p["s1"], p["b1"] = bn_fold(ks[3], ks[4], ks[5], ks[6], width)
    p["s2"], p["b2"] = bn_fold(ks[7], ks[8], ks[9], ks[10], width)
    p["s3"], p["b3"] = bn_fold(ks[11], ks[12], ks[13], ks[14], outp)
    return p


def bottleneck_reference(x_nchw, p):
    x = jnp.transpose(x_nchw, (0, 2, 3, 1)).astype(jnp.float32)
    w1 = p["w1"].astype(jnp.float32)
    w2 = p["w2"].astype(jnp.float32)
    w3 = p["w3"].astype(jnp.float32)
    h = jnp.maximum(jnp.einsum("nhwc,cd->nhwd", x, w1) * p["s1"][0] + p["b1"][0], 0.0)
    h = jax.lax.conv_general_dilated(
        h, w2, window_strides=(1, 1), padding="SAME",
        dimension_numbers=("NHWC", "HWIO", "NHWC"))
    h = jnp.maximum(h * p["s2"][0] + p["b2"][0], 0.0)
    out = jnp.einsum("nhwc,cd->nhwd", h, w3) * p["s3"][0] + p["b3"][0] + x
    out = jnp.maximum(out, 0.0)
    return jnp.transpose(out, (0, 3, 1, 2))


# ---------------------------------------------------------------------------

if __name__ == "__main__":
    key = jax.random.PRNGKey(0)
    kx, kp = jax.random.split(key)

    # downsample=None requires inplanes == planes * expansion (= planes * 4).
    # Channel counts chosen so the conv3 output / residual are lane-dense (128)
    # while the problem stays small.
    N, inplanes, planes, H, W = 2, 128, 32, 16, 16
    x = jax.random.normal(kx, (N, inplanes, H, W), jnp.float32)   # NCHW input
    params = make_params(kp, inplanes, planes)

    fwd = jax.jit(bottleneck_forward)
    out = jax.block_until_ready(fwd(x, params))

    ref = bottleneck_reference(x, params)
    assert out.shape == (N, planes * 4, H, W)
    max_err = float(jnp.max(jnp.abs(out - ref)))
    # bf16 matmul inputs / bf16 intermediate storage -> loosened tolerance
    # (f32 accumulation keeps errors at the ~1% level).
    assert jnp.allclose(out, ref, rtol=5e-2, atol=5e-2), (
        f"mismatch vs reference (max abs err {max_err})")
    print("KERNEL_OK")
</pallas_src>

<mosaic_0001>
module attributes {stable_mosaic.version = 11 : i64} {
  func.func @bottleneck_fused_kernel(%arg0: i32, %arg1: memref<1x16x16x128xf32, #tpu.memory_space<vmem>>, %arg2: memref<128x32xbf16, #tpu.memory_space<vmem>>, %arg3: memref<1x32xf32, #tpu.memory_space<vmem>>, %arg4: memref<1x32xf32, #tpu.memory_space<vmem>>, %arg5: memref<288x32xbf16, #tpu.memory_space<vmem>>, %arg6: memref<1x32xf32, #tpu.memory_space<vmem>>, %arg7: memref<1x32xf32, #tpu.memory_space<vmem>>, %arg8: memref<32x128xbf16, #tpu.memory_space<vmem>>, %arg9: memref<1x128xf32, #tpu.memory_space<vmem>>, %arg10: memref<1x128xf32, #tpu.memory_space<vmem>>, %arg11: memref<1x16x16x128xf32, #tpu.memory_space<vmem>>, %arg12: memref<18x48x32xbf16, #tpu.memory_space<vmem>>, %arg13: memref<256x288xbf16, #tpu.memory_space<vmem>>) attributes {dimension_semantics = [#tpu.dimension_semantics<parallel>], iteration_bounds = array<i64: 2>, scalar_prefetch = 0 : i64, scratch_operands = 2 : i64, tpu.core_type = #tpu.core_type<tc>, window_params = [{transform_indices = @transform_0, window_bounds = array<i64: 1, 16, 16, 128>}, {pipeline_mode = #tpu.pipeline_mode<synchronous>, transform_indices = @transform_1, window_bounds = array<i64: 128, 32>}, {pipeline_mode = #tpu.pipeline_mode<synchronous>, transform_indices = @transform_2, window_bounds = array<i64: 1, 32>}, {pipeline_mode = #tpu.pipeline_mode<synchronous>, transform_indices = @transform_3, window_bounds = array<i64: 1, 32>}, {pipeline_mode = #tpu.pipeline_mode<synchronous>, transform_indices = @transform_4, window_bounds = array<i64: 288, 32>}, {pipeline_mode = #tpu.pipeline_mode<synchronous>, transform_indices = @transform_5, window_bounds = array<i64: 1, 32>}, {pipeline_mode = #tpu.pipeline_mode<synchronous>, transform_indices = @transform_6, window_bounds = array<i64: 1, 32>}, {pipeline_mode = #tpu.pipeline_mode<synchronous>, transform_indices = @transform_7, window_bounds = array<i64: 32, 128>}, {pipeline_mode = #tpu.pipeline_mode<synchronous>, transform_indices = @transform_8, window_bounds = array<i64: 1, 128>}, {pipeline_mode = #tpu.pipeline_mode<synchronous>, transform_indices = @transform_9, window_bounds = array<i64: 1, 128>}, {transform_indices = @transform_10, window_bounds = array<i64: 1, 16, 16, 128>}]} {
    %c0 = arith.constant 0 : index
    %c0_0 = arith.constant 0 : index
    %c0_1 = arith.constant 0 : index
    %c0_2 = arith.constant 0 : index
    %0 = vector.load %arg1[%c0, %c0_0, %c0_1, %c0_2] : memref<1x16x16x128xf32, #tpu.memory_space<vmem>>, vector<1x16x16x128xf32>
    %1 = vector.shape_cast %0 : vector<1x16x16x128xf32> to vector<16x16x128xf32>
    %2 = vector.shape_cast %1 : vector<16x16x128xf32> to vector<256x128xf32>
    %3 = arith.truncf %2 : vector<256x128xf32> to vector<256x128xbf16>
    %c0_3 = arith.constant 0 : index
    %c0_4 = arith.constant 0 : index
    %4 = vector.load %arg2[%c0_3, %c0_4] : memref<128x32xbf16, #tpu.memory_space<vmem>>, vector<128x32xbf16>
    %cst = arith.constant dense<0.000000e+00> : vector<256x32xf32>
    %5 = tpu.matmul %3, %4, %cst {dimension_numbers = #tpu.dot_dimension_numbers<[1], [0], [0], [1], [0, 0, 1, 1], [], []>} : vector<256x128xbf16>, vector<128x32xbf16>, vector<256x32xf32> -> vector<256x32xf32>
    %c0_5 = arith.constant 0 : index
    %c0_6 = arith.constant 0 : index
    %6 = vector.load %arg3[%c0_5, %c0_6] : memref<1x32xf32, #tpu.memory_space<vmem>>, vector<1x32xf32>
    %7 = vector.broadcast %6 : vector<1x32xf32> to vector<256x32xf32>
    %8 = arith.mulf %5, %7 : vector<256x32xf32>
    %c0_7 = arith.constant 0 : index
    %c0_8 = arith.constant 0 : index
    %9 = vector.load %arg4[%c0_7, %c0_8] : memref<1x32xf32, #tpu.memory_space<vmem>>, vector<1x32xf32>
    %10 = vector.broadcast %9 : vector<1x32xf32> to vector<256x32xf32>
    %11 = arith.addf %8, %10 : vector<256x32xf32>
    %cst_9 = arith.constant 0.000000e+00 : f32
    %12 = vector.broadcast %cst_9 : f32 to vector<256x32xf32>
    %13 = arith.maximumf %11, %12 : vector<256x32xf32>
    %cst_10 = arith.constant 0.000000e+00 : bf16
    %14 = vector.broadcast %cst_10 : bf16 to vector<1x48x32xbf16>
    %c0_11 = arith.constant 0 : index
    %c0_12 = arith.constant 0 : index
    %c0_13 = arith.constant 0 : index
    %15 = vector.load %arg12[%c0_11, %c0_12, %c0_13] : memref<18x48x32xbf16, #tpu.memory_space<vmem>>, vector<1x48x32xbf16>
    tpu.vector_store %arg12[%c0_11, %c0_12, %c0_13], %14 {strides = array<i32>} : memref<18x48x32xbf16, #tpu.memory_space<vmem>>, vector<1x48x32xbf16>,
    %c17 = arith.constant 17 : index
    %c0_14 = arith.constant 0 : index
    %c0_15 = arith.constant 0 : index
    %16 = vector.load %arg12[%c17, %c0_14, %c0_15] : memref<18x48x32xbf16, #tpu.memory_space<vmem>>, vector<1x48x32xbf16>
    tpu.vector_store %arg12[%c17, %c0_14, %c0_15], %14 {strides = array<i32>} : memref<18x48x32xbf16, #tpu.memory_space<vmem>>, vector<1x48x32xbf16>,
    %cst_16 = arith.constant 0.000000e+00 : bf16
    %17 = vector.broadcast %cst_16 : bf16 to vector<18x1x32xbf16>
    %c0_17 = arith.constant 0 : index
    %c15 = arith.constant 15 : index
    %c0_18 = arith.constant 0 : index
    %18 = vector.load %arg12[%c0_17, %c15, %c0_18] : memref<18x48x32xbf16, #tpu.memory_space<vmem>>, vector<18x1x32xbf16>
    tpu.vector_store %arg12[%c0_17, %c15, %c0_18], %17 {strides = array<i32>} : memref<18x48x32xbf16, #tpu.memory_space<vmem>>, vector<18x1x32xbf16>,
    %c0_19 = arith.constant 0 : index
    %c32 = arith.constant 32 : index
    %c0_20 = arith.constant 0 : index
    %19 = vector.load %arg12[%c0_19, %c32, %c0_20] : memref<18x48x32xbf16, #tpu.memory_space<vmem>>, vector<18x1x32xbf16>
    tpu.vector_store %arg12[%c0_19, %c32, %c0_20], %17 {strides = array<i32>} : memref<18x48x32xbf16, #tpu.memory_space<vmem>>, vector<18x1x32xbf16>,
    %20 = arith.truncf %13 : vector<256x32xf32> to vector<256x32xbf16>
    %21 = vector.shape_cast %20 : vector<256x32xbf16> to vector<16x16x32xbf16>
    %c1 = arith.constant 1 : index
    %c16 = arith.constant 16 : index
    %c0_21 = arith.constant 0 : index
    %22 = vector.load %arg12[%c1, %c16, %c0_21] : memref<18x48x32xbf16, #tpu.memory_space<vmem>>, vector<16x16x32xbf16>
    tpu.vector_store %arg12[%c1, %c16, %c0_21], %21 {strides = array<i32>} : memref<18x48x32xbf16, #tpu.memory_space<vmem>>, vector<16x16x32xbf16>,
    %c0_22 = arith.constant 0 : index
    %c15_23 = arith.constant 15 : index
    %c0_24 = arith.constant 0 : index
    %23 = vector.load %arg12[%c0_22, %c15_23, %c0_24] : memref<18x48x32xbf16, #tpu.memory_space<vmem>>, vector<16x16x32xbf16>
    %24 = vector.shape_cast %23 : vector<16x16x32xbf16> to vector<256x32xbf16>
    %c0_25 = arith.constant 0 : index
    %c0_26 = arith.constant 0 : index
    %25 = vector.load %arg13[%c0_25, %c0_26] : memref<256x288xbf16, #tpu.memory_space<vmem>>, vector<256x32xbf16>
    tpu.vector_store %arg13[%c0_25, %c0_26], %24 {strides = array<i32>} : memref<256x288xbf16, #tpu.memory_space<vmem>>, vector<256x32xbf16>,
    %c0_27 = arith.constant 0 : index
    %c16_28 = arith.constant 16 : index
    %c0_29 = arith.constant 0 : index
    %26 = vector.load %arg12[%c0_27, %c16_28, %c0_29] : memref<18x48x32xbf16, #tpu.memory_space<vmem>>, vector<16x16x32xbf16>
    %27 = vector.shape_cast %26 : vector<16x16x32xbf16> to vector<256x32xbf16>
    %c0_30 = arith.constant 0 : index
    %c32_31 = arith.constant 32 : index
    %28 = vector.load %arg13[%c0_30, %c32_31] : memref<256x288xbf16, #tpu.memory_space<vmem>>, vector<256x32xbf16>
    tpu.vector_store %arg13[%c0_30, %c32_31], %27 {strides = array<i32>} : memref<256x288xbf16, #tpu.memory_space<vmem>>, vector<256x32xbf16>,
    %c0_32 = arith.constant 0 : index
    %c17_33 = arith.constant 17 : index
    %c0_34 = arith.constant 0 : index
    %29 = vector.load %arg12[%c0_32, %c17_33, %c0_34] : memref<18x48x32xbf16, #tpu.memory_space<vmem>>, vector<16x16x32xbf16>
    %30 = vector.shape_cast %29 : vector<16x16x32xbf16> to vector<256x32xbf16>
    %c0_35 = arith.constant 0 : index
    %c64 = arith.constant 64 : index
    %31 = vector.load %arg13[%c0_35, %c64] : memref<256x288xbf16, #tpu.memory_space<vmem>>, vector<256x32xbf16>
    tpu.vector_store %arg13[%c0_35, %c64], %30 {strides = array<i32>} : memref<256x288xbf16, #tpu.memory_space<vmem>>, vector<256x32xbf16>,
    %c1_36 = arith.constant 1 : index
    %c15_37 = arith.constant 15 : index
    %c0_38 = arith.constant 0 : index
    %32 = vector.load %arg12[%c1_36, %c15_37, %c0_38] : memref<18x48x32xbf16, #tpu.memory_space<vmem>>, vector<16x16x32xbf16>
    %33 = vector.shape_cast %32 : vector<16x16x32xbf16> to vector<256x32xbf16>
    %c0_39 = arith.constant 0 : index
    %c96 = arith.constant 96 : index
    %34 = vector.load %arg13[%c0_39, %c96] : memref<256x288xbf16, #tpu.memory_space<vmem>>, vector<256x32xbf16>
    tpu.vector_store %arg13[%c0_39, %c96], %33 {strides = array<i32>} : memref<256x288xbf16, #tpu.memory_space<vmem>>, vector<256x32xbf16>,
    %c1_40 = arith.constant 1 : index
    %c16_41 = arith.constant 16 : index
    %c0_42 = arith.constant 0 : index
    %35 = vector.load %arg12[%c1_40, %c16_41, %c0_42] : memref<18x48x32xbf16, #tpu.memory_space<vmem>>, vector<16x16x32xbf16>
    %36 = vector.shape_cast %35 : vector<16x16x32xbf16> to vector<256x32xbf16>
    %c0_43 = arith.constant 0 : index
    %c128 = arith.constant 128 : index
    %37 = vector.load %arg13[%c0_43, %c128] : memref<256x288xbf16, #tpu.memory_space<vmem>>, vector<256x32xbf16>
    tpu.vector_store %arg13[%c0_43, %c128], %36 {strides = array<i32>} : memref<256x288xbf16, #tpu.memory_space<vmem>>, vector<256x32xbf16>,
    %c1_44 = arith.constant 1 : index
    %c17_45 = arith.constant 17 : index
    %c0_46 = arith.constant 0 : index
    %38 = vector.load %arg12[%c1_44, %c17_45, %c0_46] : memref<18x48x32xbf16, #tpu.memory_space<vmem>>, vector<16x16x32xbf16>
    %39 = vector.shape_cast %38 : vector<16x16x32xbf16> to vector<256x32xbf16>
    %c0_47 = arith.constant 0 : index
    %c160 = arith.constant 160 : index
    %40 = vector.load %arg13[%c0_47, %c160] : memref<256x288xbf16, #tpu.memory_space<vmem>>, vector<256x32xbf16>
    tpu.vector_store %arg13[%c0_47, %c160], %39 {strides = array<i32>} : memref<256x288xbf16, #tpu.memory_space<vmem>>, vector<256x32xbf16>,
    %c2 = arith.constant 2 : index
    %c15_48 = arith.constant 15 : index
    %c0_49 = arith.constant 0 : index
    %41 = vector.load %arg12[%c2, %c15_48, %c0_49] : memref<18x48x32xbf16, #tpu.memory_space<vmem>>, vector<16x16x32xbf16>
    %42 = vector.shape_cast %41 : vector<16x16x32xbf16> to vector<256x32xbf16>
    %c0_50 = arith.constant 0 : index
    %c192 = arith.constant 192 : index
    %43 = vector.load %arg13[%c0_50, %c192] : memref<256x288xbf16, #tpu.memory_space<vmem>>, vector<256x32xbf16>
    tpu.vector_store %arg13[%c0_50, %c192], %42 {strides = array<i32>} : memref<256x288xbf16, #tpu.memory_space<vmem>>, vector<256x32xbf16>,
    %c2_51 = arith.constant 2 : index
    %c16_52 = arith.constant 16 : index
    %c0_53 = arith.constant 0 : index
    %44 = vector.load %arg12[%c2_51, %c16_52, %c0_53] : memref<18x48x32xbf16, #tpu.memory_space<vmem>>, vector<16x16x32xbf16>
    %45 = vector.shape_cast %44 : vector<16x16x32xbf16> to vector<256x32xbf16>
    %c0_54 = arith.constant 0 : index
    %c224 = arith.constant 224 : index
    %46 = vector.load %arg13[%c0_54, %c224] : memref<256x288xbf16, #tpu.memory_space<vmem>>, vector<256x32xbf16>
    tpu.vector_store %arg13[%c0_54, %c224], %45 {strides = array<i32>} : memref<256x288xbf16, #tpu.memory_space<vmem>>, vector<256x32xbf16>,
    %c2_55 = arith.constant 2 : index
    %c17_56 = arith.constant 17 : index
    %c0_57 = arith.constant 0 : index
    %47 = vector.load %arg12[%c2_55, %c17_56, %c0_57] : memref<18x48x32xbf16, #tpu.memory_space<vmem>>, vector<16x16x32xbf16>
    %48 = vector.shape_cast %47 : vector<16x16x32xbf16> to vector<256x32xbf16>
    %c0_58 = arith.constant 0 : index
    %c256 = arith.constant 256 : index
    %49 = vector.load %arg13[%c0_58, %c256] : memref<256x288xbf16, #tpu.memory_space<vmem>>, vector<256x32xbf16>
    tpu.vector_store %arg13[%c0_58, %c256], %48 {strides = array<i32>} : memref<256x288xbf16, #tpu.memory_space<vmem>>, vector<256x32xbf16>,
    %c0_59 = arith.constant 0 : index
    %c0_60 = arith.constant 0 : index
    %50 = vector.load %arg13[%c0_59, %c0_60] : memref<256x288xbf16, #tpu.memory_space<vmem>>, vector<256x288xbf16>
    %c0_61 = arith.constant 0 : index
    %c0_62 = arith.constant 0 : index
    %51 = vector.load %arg5[%c0_61, %c0_62] : memref<288x32xbf16, #tpu.memory_space<vmem>>, vector<288x32xbf16>
    %cst_63 = arith.constant dense<0.000000e+00> : vector<256x32xf32>
    %52 = tpu.matmul %50, %51, %cst_63 {dimension_numbers = #tpu.dot_dimension_numbers<[1], [0], [0], [1], [0, 0, 1, 1], [], []>} : vector<256x288xbf16>, vector<288x32xbf16>, vector<256x32xf32> -> vector<256x32xf32>
    %c0_64 = arith.constant 0 : index
    %c0_65 = arith.constant 0 : index
    %53 = vector.load %arg6[%c0_64, %c0_65] : memref<1x32xf32, #tpu.memory_space<vmem>>, vector<1x32xf32>
    %54 = vector.broadcast %53 : vector<1x32xf32> to vector<256x32xf32>
    %55 = arith.mulf %52, %54 : vector<256x32xf32>
    %c0_66 = arith.constant 0 : index
    %c0_67 = arith.constant 0 : index
    %56 = vector.load %arg7[%c0_66, %c0_67] : memref<1x32xf32, #tpu.memory_space<vmem>>, vector<1x32xf32>
    %57 = vector.broadcast %56 : vector<1x32xf32> to vector<256x32xf32>
    %58 = arith.addf %55, %57 : vector<256x32xf32>
    %cst_68 = arith.constant 0.000000e+00 : f32
    %59 = vector.broadcast %cst_68 : f32 to vector<256x32xf32>
    %60 = arith.maximumf %58, %59 : vector<256x32xf32>
    %61 = arith.truncf %60 : vector<256x32xf32> to vector<256x32xbf16>
    %c0_69 = arith.constant 0 : index
    %c0_70 = arith.constant 0 : index
    %62 = vector.load %arg8[%c0_69, %c0_70] : memref<32x128xbf16, #tpu.memory_space<vmem>>, vector<32x128xbf16>
    %cst_71 = arith.constant dense<0.000000e+00> : vector<256x128xf32>
    %63 = tpu.matmul %61, %62, %cst_71 {dimension_numbers = #tpu.dot_dimension_numbers<[1], [0], [0], [1], [0, 0, 1, 1], [], []>} : vector<256x32xbf16>, vector<32x128xbf16>, vector<256x128xf32> -> vector<256x128xf32>
    %c0_72 = arith.constant 0 : index
    %c0_73 = arith.constant 0 : index
    %64 = vector.load %arg9[%c0_72, %c0_73] : memref<1x128xf32, #tpu.memory_space<vmem>>, vector<1x128xf32>
    %65 = vector.broadcast %64 : vector<1x128xf32> to vector<256x128xf32>
    %66 = arith.mulf %63, %65 : vector<256x128xf32>
    %c0_74 = arith.constant 0 : index
    %c0_75 = arith.constant 0 : index
    %67 = vector.load %arg10[%c0_74, %c0_75] : memref<1x128xf32, #tpu.memory_space<vmem>>, vector<1x128xf32>
    %68 = vector.broadcast %67 : vector<1x128xf32> to vector<256x128xf32>
    %69 = arith.addf %66, %68 : vector<256x128xf32>
    %70 = arith.addf %69, %2 : vector<256x128xf32>
    %cst_76 = arith.constant 0.000000e+00 : f32
    %71 = vector.broadcast %cst_76 : f32 to vector<256x128xf32>
    %72 = arith.maximumf %70, %71 : vector<256x128xf32>
    %73 = vector.shape_cast %72 : vector<256x128xf32> to vector<1x16x16x128xf32>
    %c0_77 = arith.constant 0 : index
    %c0_78 = arith.constant 0 : index
    %c0_79 = arith.constant 0 : index
    %c0_80 = arith.constant 0 : index
    %74 = vector.load %arg11[%c0_77, %c0_78, %c0_79, %c0_80] : memref<1x16x16x128xf32, #tpu.memory_space<vmem>>, vector<1x16x16x128xf32>
    tpu.vector_store %arg11[%c0_77, %c0_78, %c0_79, %c0_80], %73 {strides = array<i32>} : memref<1x16x16x128xf32, #tpu.memory_space<vmem>>, vector<1x16x16x128xf32>,
    return
  }
  func.func @transform_0(%arg0: i32) -> (i32, i32, i32, i32) {
    %c0_i32 = arith.constant 0 : i32
    %c0_i32_0 = arith.constant 0 : i32
    %c0_i32_1 = arith.constant 0 : i32
    %c0_i32_2 = arith.constant 0 : i32
    return %arg0, %c0_i32, %c0_i32_0, %c0_i32_1 : i32, i32, i32, i32
  }
  func.func @transform_1(%arg0: i32) -> (i32, i32) {
    %c0_i32 = arith.constant 0 : i32
    %c0_i32_0 = arith.constant 0 : i32
    %c0_i32_1 = arith.constant 0 : i32
    return %c0_i32, %c0_i32_0 : i32, i32
  }
  func.func @transform_2(%arg0: i32) -> (i32, i32) {
    %c0_i32 = arith.constant 0 : i32
    %c0_i32_0 = arith.constant 0 : i32
    %c0_i32_1 = arith.constant 0 : i32
    return %c0_i32, %c0_i32_0 : i32, i32
  }
  func.func @transform_3(%arg0: i32) -> (i32, i32) {
    %c0_i32 = arith.constant 0 : i32
    %c0_i32_0 = arith.constant 0 : i32
    %c0_i32_1 = arith.constant 0 : i32
    return %c0_i32, %c0_i32_0 : i32, i32
  }
  func.func @transform_4(%arg0: i32) -> (i32, i32) {
    %c0_i32 = arith.constant 0 : i32
    %c0_i32_0 = arith.constant 0 : i32
    %c0_i32_1 = arith.constant 0 : i32
    return %c0_i32, %c0_i32_0 : i32, i32
  }
  func.func @transform_5(%arg0: i32) -> (i32, i32) {
    %c0_i32 = arith.constant 0 : i32
    %c0_i32_0 = arith.constant 0 : i32
    %c0_i32_1 = arith.constant 0 : i32
    return %c0_i32, %c0_i32_0 : i32, i32
  }
  func.func @transform_6(%arg0: i32) -> (i32, i32) {
    %c0_i32 = arith.constant 0 : i32
    %c0_i32_0 = arith.constant 0 : i32
    %c0_i32_1 = arith.constant 0 : i32
    return %c0_i32, %c0_i32_0 : i32, i32
  }
  func.func @transform_7(%arg0: i32) -> (i32, i32) {
    %c0_i32 = arith.constant 0 : i32
    %c0_i32_0 = arith.constant 0 : i32
    %c0_i32_1 = arith.constant 0 : i32
    return %c0_i32, %c0_i32_0 : i32, i32
  }
  func.func @transform_8(%arg0: i32) -> (i32, i32) {
    %c0_i32 = arith.constant 0 : i32
    %c0_i32_0 = arith.constant 0 : i32
    %c0_i32_1 = arith.constant 0 : i32
    return %c0_i32, %c0_i32_0 : i32, i32
  }
  func.func @transform_9(%arg0: i32) -> (i32, i32) {
    %c0_i32 = arith.constant 0 : i32
    %c0_i32_0 = arith.constant 0 : i32
    %c0_i32_1 = arith.constant 0 : i32
    return %c0_i32, %c0_i32_0 : i32, i32
  }
  func.func @transform_10(%arg0: i32) -> (i32, i32, i32, i32) {
    %c0_i32 = arith.constant 0 : i32
    %c0_i32_0 = arith.constant 0 : i32
    %c0_i32_1 = arith.constant 0 : i32
    %c0_i32_2 = arith.constant 0 : i32
    return %arg0, %c0_i32, %c0_i32_0, %c0_i32_1 : i32, i32, i32, i32
  }
}

</mosaic_0001>

<llo_original>
// kernel: bottleneck_forward.1
$region0: #{bottleneck_forward.1}
  #allocation0 [shape = 'u32[]', space=smem, size = 0x4, offset = 0x4, fixed_abs, tag = 'smem constant byte address 0x4 - core index']
  #allocation1 [shape = 'u32[144,128]{1,0:T(1,128)}', space=vmem, size = 0x12000, scoped, tag = 'internal scratch']
  #allocation2 [shape = 'bf16[18,48,32]{2,1,0:T(8,128)(2,1)}', space=vmem, size = 0x36000, scoped, tag = 'scratch operand']
  #allocation3 [shape = 'bf16[256,288]{1,0:T(8,128)(2,1)}', space=vmem, size = 0x30000, scoped, tag = 'scratch operand']
  %s0 = inlined_call_operand.hbm [shape: f32[2,16,16,128], index: 0, kind: input, shape index: {}]
  %s1 = inlined_call_operand.vmem [shape: bf16[128,32], index: 1, kind: input, shape index: {}]
  %s2 = inlined_call_operand.vmem [shape: f32[1,32], index: 2, kind: input, shape index: {}]
  %s3 = inlined_call_operand.vmem [shape: f32[1,32], index: 3, kind: input, shape index: {}]
  %s4 = inlined_call_operand.hbm [shape: bf16[288,32], index: 4, kind: input, shape index: {}]
  %s5 = inlined_call_operand.vmem [shape: f32[1,32], index: 5, kind: input, shape index: {}]
  %s6 = inlined_call_operand.vmem [shape: f32[1,32], index: 6, kind: input, shape index: {}]
  %s7 = inlined_call_operand.vmem [shape: bf16[32,128], index: 7, kind: input, shape index: {}]
  %s8 = inlined_call_operand.vmem [shape: f32[1,128], index: 8, kind: input, shape index: {}]
  %s9 = inlined_call_operand.vmem [shape: f32[1,128], index: 9, kind: input, shape index: {}]
  %s10 = inlined_call_operand.hbm [shape: f32[2,16,16,128], index: 10, kind: output, shape index: {}]
  %s11 = sld [smem:[#allocation0]]
  $region81: #{bottleneck_forward.1} parent=0
    _
  %s13 = ssub.s32 1, %s11
  %s14 = scalar_select 0, %s13, %s11
  $region1: #{bottleneck_forward.1} parent=0
    #allocation4 [shape = 'u8[262144]{0}', space=vmem, size = 0x40000, scoped, tag = 'input window, operand 0']
    #allocation5 [shape = 's32[2]{0}', space=sflag, size = 0x8, scoped, tag = 'scoped memory for bottleneck_forward.1']
    #allocation6 [shape = 's32[2]{0}', space=sflag, size = 0x8, scoped, tag = 'scoped memory for bottleneck_forward.1']
    #allocation7 [shape = 'u8[73728]{0}', space=vmem, size = 0x12000, scoped, tag = 'input window, operand 4, single buffered']
    #allocation8 [shape = 's32[1]{0}', space=sflag, size = 0x4, scoped, tag = 'scoped memory for bottleneck_forward.1']
    #allocation9 [shape = 'u8[262144]{0}', space=vmem, size = 0x40000, scoped, tag = 'output window, operand 0']
    %15 = vsyncpa [#allocation5], 0
    %s16 = scalar_lea.sflag [#allocation5], 1
    %17 = vsyncpa %s16, 0
    %18 = vsyncpa [#allocation8], 0
    %19 = vsyncpa [#allocation6], 0
    %s20 = scalar_lea.sflag [#allocation6], 1
    %21 = vsyncpa %s20, 0
    loop: start=0, step=1, limit=4
    $region2: #{bottleneck_forward.1} parent=1 // loop_pre_header
      _
    $region3: #{bottleneck_forward.1} parent=1 // loop_header
      %s23 = sphi 0, %s27
      %p24 = scmp.ge.s32.totalorder %s23, 4
      %s33 = sphi 0, %s35
      %s36 = sphi 0, %s33
      %s37 = sphi 0, %s36
      %s53 = sphi 0, %s37
      %s57 = sphi 0, %s57
      %s59 = sphi 0, %s57
      %s60 = sphi 0, %s59
      %s74 = sphi 0, %s60
      %s78 = sphi 0, %s78
      %s80 = sphi 0, %s78
      %s81 = sphi 0, %s80
      %s95 = sphi 0, %s81
      %s99 = sphi 0, %s99
      %s101 = sphi 0, %s99
      %s102 = sphi 0, %s101
      %s116 = sphi 0, %s102
      %s120 = sphi 0, %s120
      %s122 = sphi 0, %s120
      %s123 = sphi 0, %s122
      %s137 = sphi 0, %s123
      %s141 = sphi 0, %s141
      %s143 = sphi 0, %s141
      %s144 = sphi 0, %s143
      %s158 = sphi 0, %s144
      %s162 = sphi 0, %s162
      %s164 = sphi 0, %s162
      %s165 = sphi 0, %s164
      %s179 = sphi 0, %s165
      %s183 = sphi 0, %s183
      %s185 = sphi 0, %s183
      %s186 = sphi 0, %s185
      %s200 = sphi 0, %s186
      %s204 = sphi 0, %s204
      %s206 = sphi 0, %s204
      %s207 = sphi 0, %s206
      %s221 = sphi 0, %s207
      %s225 = sphi 0, %s225
      %s227 = sphi 0, %s225
      %s228 = sphi 0, %s227
      %s242 = sphi 0, %s228
      %s248 = sphi 0, %s250
      %s251 = sphi 0, %s248
      %s252 = sphi 0, %s251
      %s268 = sphi 0, %s252
    $region4: #{bottleneck_forward.1} parent=1 // loop_header_branch
      %26 = sbr.rel (%p24) target = $region8
    $region5: #{bottleneck_forward.1} parent=1 // loop_body
      %s28 = ssub.s32 %s23, 1
      %s29 = ssub.s32 %s23, 2
      %s30 = sadd.s32 %s23, 1
      %s31 = ssub.s32 %s23, %s30
      %p32 = scmp.eq.s32.totalorder %s31, 0
      %s34 = sadd.s32 %s33, 1
      %s35 = scalar_select %p32, %s33, %s34
      %p38 = pneg %p32
      %p39 = scmp.eq.s32.totalorder %s23, 1
      %p40 = por %p38, %p39
      %p41 = scmp.ne.s32.totalorder %s33, %s36
      %p42 = scmp.eq.s32.totalorder %s23, 0
      %p43 = por %p41, %p42
      %p44 = scmp.ne.s32.totalorder %s33, %s36
      %p45 = scmp.eq.s32.totalorder %s28, 1
      %p46 = por %p44, %p45
      %p47 = scmp.ne.s32.totalorder %s36, %s37
      %p48 = scmp.eq.s32.totalorder %s28, 0
      %p49 = por %p47, %p48
      %p50 = scmp.ne.s32.totalorder %s36, %s37
      %p51 = scmp.eq.s32.totalorder %s29, 1
      %p52 = por %p50, %p51
      %p54 = scmp.ne.s32.totalorder %s37, %s53
      %p55 = scmp.eq.s32.totalorder %s29, 0
      %p56 = por %p54, %p55
      %s58 = sadd.s32 %s57, 1
      %p61 = scmp.eq.s32.totalorder %s23, 1
      %p62 = scmp.ne.s32.totalorder %s57, %s59
      %p63 = scmp.eq.s32.totalorder %s23, 0
      %p64 = por %p62, %p63
      %p65 = scmp.ne.s32.totalorder %s57, %s59
      %p66 = scmp.eq.s32.totalorder %s28, 1
      %p67 = por %p65, %p66
      %p68 = scmp.ne.s32.totalorder %s59, %s60
      %p69 = scmp.eq.s32.totalorder %s28, 0
      %p70 = por %p68, %p69
      %p71 = scmp.ne.s32.totalorder %s59, %s60
      %p72 = scmp.eq.s32.totalorder %s29, 1
      %p73 = por %p71, %p72
      %p75 = scmp.ne.s32.totalorder %s60, %s74
      %p76 = scmp.eq.s32.totalorder %s29, 0
      %p77 = por %p75, %p76
      %s79 = sadd.s32 %s78, 1
      %p82 = scmp.eq.s32.totalorder %s23, 1
      %p83 = scmp.ne.s32.totalorder %s78, %s80
      %p84 = scmp.eq.s32.totalorder %s23, 0
      %p85 = por %p83, %p84
      %p86 = scmp.ne.s32.totalorder %s78, %s80
      %p87 = scmp.eq.s32.totalorder %s28, 1
      %p88 = por %p86, %p87
      %p89 = scmp.ne.s32.totalorder %s80, %s81
      %p90 = scmp.eq.s32.totalorder %s28, 0
      %p91 = por %p89, %p90
      %p92 = scmp.ne.s32.totalorder %s80, %s81
      %p93 = scmp.eq.s32.totalorder %s29, 1
      %p94 = por %p92, %p93
      %p96 = scmp.ne.s32.totalorder %s81, %s95
      %p97 = scmp.eq.s32.totalorder %s29, 0
      %p98 = por %p96, %p97
      %s100 = sadd.s32 %s99, 1
      %p103 = scmp.eq.s32.totalorder %s23, 1
      %p104 = scmp.ne.s32.totalorder %s99, %s101
      %p105 = scmp.eq.s32.totalorder %s23, 0
      %p106 = por %p104, %p105
      %p107 = scmp.ne.s32.totalorder %s99, %s101
      %p108 = scmp.eq.s32.totalorder %s28, 1
      %p109 = por %p107, %p108
      %p110 = scmp.ne.s32.totalorder %s101, %s102
      %p111 = scmp.eq.s32.totalorder %s28, 0
      %p112 = por %p110, %p111
      %p113 = scmp.ne.s32.totalorder %s101, %s102
      %p114 = scmp.eq.s32.totalorder %s29, 1
      %p115 = por %p113, %p114
      %p117 = scmp.ne.s32.totalorder %s102, %s116
      %p118 = scmp.eq.s32.totalorder %s29, 0
      %p119 = por %p117, %p118
      %s121 = sadd.s32 %s120, 1
      %p124 = scmp.eq.s32.totalorder %s23, 1
      %p125 = scmp.ne.s32.totalorder %s120, %s122
      %p126 = scmp.eq.s32.totalorder %s23, 0
      %p127 = por %p125, %p126
      %p128 = scmp.ne.s32.totalorder %s120, %s122
      %p129 = scmp.eq.s32.totalorder %s28, 1
      %p130 = por %p128, %p129
      %p131 = scmp.ne.s32.totalorder %s122, %s123
      %p132 = scmp.eq.s32.totalorder %s28, 0
      %p133 = por %p131, %p132
      %p134 = scmp.ne.s32.totalorder %s122, %s123
      %p135 = scmp.eq.s32.totalorder %s29, 1
      %p136 = por %p134, %p135
      %p138 = scmp.ne.s32.totalorder %s123, %s137
      %p139 = scmp.eq.s32.totalorder %s29, 0
      %p140 = por %p138, %p139
      %s142 = sadd.s32 %s141, 1
      %p145 = scmp.eq.s32.totalorder %s23, 1
      %p146 = scmp.ne.s32.totalorder %s141, %s143
      %p147 = scmp.eq.s32.totalorder %s23, 0
      %p148 = por %p146, %p147
      %p149 = scmp.ne.s32.totalorder %s141, %s143
      %p150 = scmp.eq.s32.totalorder %s28, 1
      %p151 = por %p149, %p150
      %p152 = scmp.ne.s32.totalorder %s143, %s144
      %p153 = scmp.eq.s32.totalorder %s28, 0
      %p154 = por %p152, %p153
      %p155 = scmp.ne.s32.totalorder %s143, %s144
      %p156 = scmp.eq.s32.totalorder %s29, 1
      %p157 = por %p155, %p156
      %p159 = scmp.ne.s32.totalorder %s144, %s158
      %p160 = scmp.eq.s32.totalorder %s29, 0
      %p161 = por %p159, %p160
      %s163 = sadd.s32 %s162, 1
      %p166 = scmp.eq.s32.totalorder %s23, 1
      %p167 = scmp.ne.s32.totalorder %s162, %s164
      %p168 = scmp.eq.s32.totalorder %s23, 0
      %p169 = por %p167, %p168
      %p170 = scmp.ne.s32.totalorder %s162, %s164
      %p171 = scmp.eq.s32.totalorder %s28, 1
      %p172 = por %p170, %p171
      %p173 = scmp.ne.s32.totalorder %s164, %s165
      %p174 = scmp.eq.s32.totalorder %s28, 0
      %p175 = por %p173, %p174
      %p176 = scmp.ne.s32.totalorder %s164, %s165
      %p177 = scmp.eq.s32.totalorder %s29, 1
      %p178 = por %p176, %p177
      %p180 = scmp.ne.s32.totalorder %s165, %s179
      %p181 = scmp.eq.s32.totalorder %s29, 0
      %p182 = por %p180, %p181
      %s184 = sadd.s32 %s183, 1
      %p187 = scmp.eq.s32.totalorder %s23, 1
      %p188 = scmp.ne.s32.totalorder %s183, %s185
      %p189 = scmp.eq.s32.totalorder %s23, 0
      %p190 = por %p188, %p189
      %p191 = scmp.ne.s32.totalorder %s183, %s185
      %p192 = scmp.eq.s32.totalorder %s28, 1
      %p193 = por %p191, %p192
      %p194 = scmp.ne.s32.totalorder %s185, %s186
      %p195 = scmp.eq.s32.totalorder %s28, 0
      %p196 = por %p194, %p195
      %p197 = scmp.ne.s32.totalorder %s185, %s186
      %p198 = scmp.eq.s32.totalorder %s29, 1
      %p199 = por %p197, %p198
      %p201 = scmp.ne.s32.totalorder %s186, %s200
      %p202 = scmp.eq.s32.totalorder %s29, 0
      %p203 = por %p201, %p202
      %s205 = sadd.s32 %s204, 1
      %p208 = scmp.eq.s32.totalorder %s23, 1
      %p209 = scmp.ne.s32.totalorder %s204, %s206
      %p210 = scmp.eq.s32.totalorder %s23, 0
      %p211 = por %p209, %p210
      %p212 = scmp.ne.s32.totalorder %s204, %s206
      %p213 = scmp.eq.s32.totalorder %s28, 1
      %p214 = por %p212, %p213
      %p215 = scmp.ne.s32.totalorder %s206, %s207
      %p216 = scmp.eq.s32.totalorder %s28, 0
      %p217 = por %p215, %p216
      %p218 = scmp.ne.s32.totalorder %s206, %s207
      %p219 = scmp.eq.s32.totalorder %s29, 1
      %p220 = por %p218, %p219
      %p222 = scmp.ne.s32.totalorder %s207, %s221
      %p223 = scmp.eq.s32.totalorder %s29, 0
      %p224 = por %p222, %p223
      %s226 = sadd.s32 %s225, 1
      %p229 = scmp.eq.s32.totalorder %s23, 1
      %p230 = scmp.ne.s32.totalorder %s225, %s227
      %p231 = scmp.eq.s32.totalorder %s23, 0
      %p232 = por %p230, %p231
      %p233 = scmp.ne.s32.totalorder %s225, %s227
      %p234 = scmp.eq.s32.totalorder %s28, 1
      %p235 = por %p233, %p234
      %p236 = scmp.ne.s32.totalorder %s227, %s228
      %p237 = scmp.eq.s32.totalorder %s28, 0
      %p238 = por %p236, %p237
      %p239 = scmp.ne.s32.totalorder %s227, %s228
      %p240 = scmp.eq.s32.totalorder %s29, 1
      %p241 = por %p239, %p240
      %p243 = scmp.ne.s32.totalorder %s228, %s242
      %p244 = scmp.eq.s32.totalorder %s29, 0
      %p245 = por %p243, %p244
      %s246 = ssub.s32 %s23, %s30
      %p247 = scmp.eq.s32.totalorder %s246, 0
      %s249 = sadd.s32 %s248, 1
      %s250 = scalar_select %p247, %s248, %s249
      %p253 = pneg %p247
      %p254 = scmp.eq.s32.totalorder %s23, 1
      %p255 = por %p253, %p254
      %p256 = scmp.ne.s32.totalorder %s248, %s251
      %p257 = scmp.eq.s32.totalorder %s23, 0
      %p258 = por %p256, %p257
      %p259 = scmp.ne.s32.totalorder %s248, %s251
      %p260 = scmp.eq.s32.totalorder %s28, 1
      %p261 = por %p259, %p260
      %p262 = scmp.ne.s32.totalorder %s251, %s252
      %p263 = scmp.eq.s32.totalorder %s28, 0
      %p264 = por %p262, %p263
      %p265 = scmp.ne.s32.totalorder %s251, %s252
      %p266 = scmp.eq.s32.totalorder %s29, 1
      %p267 = por %p265, %p266
      %p269 = scmp.ne.s32.totalorder %s252, %s268
      %p270 = scmp.eq.s32.totalorder %s29, 0
      %p271 = por %p269, %p270
      %p272 = scmp.le.s32.totalorder 1, %s23
      %p273 = scmp.lt.s32.totalorder %s23, 3
      %p274 = pnand %p272, %p273
      %p275 = pneg %p274
      // Predicated region
      $region9: #{bottleneck_forward.1} parent=5 // pred_check
        _
      $region10: #{bottleneck_forward.1} parent=5 // pred_check_branch
        %277 = sbr.rel (%p274) target = $region12
      $region11: #{bottleneck_forward.1} parent=5 // pred_region
        %s278 = ssub.s32 %s23, 1
        // Predicated region
        $region13: #{bottleneck_forward.1} parent=11 // pred_check
          %p279 = pneg %p70
        $region14: #{bottleneck_forward.1} parent=11 // pred_check_branch
          %281 = sbr.rel (%p279) target = $region16
        $region15: #{bottleneck_forward.1} parent=11 // pred_region
          _
        $region16: #{bottleneck_forward.1} parent=11 // pred_fallthru
          _
        // Predicated region
        $region17: #{bottleneck_forward.1} parent=11 // pred_check
          %p282 = pneg %p91
        $region18: #{bottleneck_forward.1} parent=11 // pred_check_branch
          %284 = sbr.rel (%p282) target = $region20
        $region19: #{bottleneck_forward.1} parent=11 // pred_region
          _
        $region20: #{bottleneck_forward.1} parent=11 // pred_fallthru
          _
        // Predicated region
        $region21: #{bottleneck_forward.1} parent=11 // pred_check
          %p285 = pneg %p112
        $region22: #{bottleneck_forward.1} parent=11 // pred_check_branch
          %287 = sbr.rel (%p285) target = $region24
        $region23: #{bottleneck_forward.1} parent=11 // pred_region
          _
        $region24: #{bottleneck_forward.1} parent=11 // pred_fallthru
          _
        // Predicated region
        $region25: #{bottleneck_forward.1} parent=11 // pred_check
          %p288 = pneg %p133
        $region26: #{bottleneck_forward.1} parent=11 // pred_check_branch
          %290 = sbr.rel (%p288) target = $region28
        $region27: #{bottleneck_forward.1} parent=11 // pred_region
          %s292 = ssub.s32 2304, 2304
          %293 = vsyncadd [#allocation8], %s292
          %s294 = sshll.u32 [#allocation7], 4
          %s295 = int_to_ptr.vmem [resolvable:$true] %s294
          %300 = dma.hbm_to_vmem [thread:$0]  %s4, 2304, %s295, [#allocation8], 64, 64, 4
        $region28: #{bottleneck_forward.1} parent=11 // pred_fallthru
          _
        // Predicated region
        $region29: #{bottleneck_forward.1} parent=11 // pred_check
          %p301 = pneg %p154
        $region30: #{bottleneck_forward.1} parent=11 // pred_check_branch
          %303 = sbr.rel (%p301) target = $region32
        $region31: #{bottleneck_forward.1} parent=11 // pred_region
          _
        $region32: #{bottleneck_forward.1} parent=11 // pred_fallthru
          _
        // Predicated region
        $region33: #{bottleneck_forward.1} parent=11 // pred_check
          %p304 = pneg %p175
        $region34: #{bottleneck_forward.1} parent=11 // pred_check_branch
          %306 = sbr.rel (%p304) target = $region36
        $region35: #{bottleneck_forward.1} parent=11 // pred_region
          _
        $region36: #{bottleneck_forward.1} parent=11 // pred_fallthru
          _
        // Predicated region
        $region37: #{bottleneck_forward.1} parent=11 // pred_check
          %p307 = pneg %p196
        $region38: #{bottleneck_forward.1} parent=11 // pred_check_branch
          %309 = sbr.rel (%p307) target = $region40
        $region39: #{bottleneck_forward.1} parent=11 // pred_region
          _
        $region40: #{bottleneck_forward.1} parent=11 // pred_fallthru
          _
        // Predicated region
        $region41: #{bottleneck_forward.1} parent=11 // pred_check
          %p310 = pneg %p217
        $region42: #{bottleneck_forward.1} parent=11 // pred_check_branch
          %312 = sbr.rel (%p310) target = $region44
        $region43: #{bottleneck_forward.1} parent=11 // pred_region
          _
        $region44: #{bottleneck_forward.1} parent=11 // pred_fallthru
          _
        // Predicated region
        $region45: #{bottleneck_forward.1} parent=11 // pred_check
          %p313 = pneg %p238
        $region46: #{bottleneck_forward.1} parent=11 // pred_check_branch
          %315 = sbr.rel (%p313) target = $region48
        $region47: #{bottleneck_forward.1} parent=11 // pred_region
          _
        $region48: #{bottleneck_forward.1} parent=11 // pred_fallthru
          _
      $region12: #{bottleneck_forward.1} parent=5 // pred_fallthru
        _
      %p316 = scmp.lt.s32.totalorder %s23, 2
      // Predicated region
      $region49: #{bottleneck_forward.1} parent=5 // pred_check
        %p317 = pneg %p316
      $region50: #{bottleneck_forward.1} parent=5 // pred_check_branch
        %319 = sbr.rel (%p317) target = $region52
      $region51: #{bottleneck_forward.1} parent=5 // pred_region
        // Predicated region
        $region53: #{bottleneck_forward.1} parent=51 // pred_check
          %p320 = pneg %p43
        $region54: #{bottleneck_forward.1} parent=51 // pred_check_branch
          %322 = sbr.rel (%p320) target = $region56
        $region55: #{bottleneck_forward.1} parent=51 // pred_region
          %s323 = sand.u32 %s33, 1
          %s324 = scalar_lea.sflag [#allocation5], %s323
          %s325 = sand.u32 %s33, 1
          %s326 = smul.addr %s325, 256
          %s327 = scalar_lea.vmem [#allocation4], %s326
          %s329 = ssub.s32 4096, 4096
          %330 = vsyncadd %s324, %s329
          %s331 = smul.addr %s23, 32
          %s332 = smul.addr %s331, 128
          %s333 = scalar_lea.hbm %s0, %s332
          %s334 = sshll.u32 %s327, 4
          %s335 = int_to_ptr.vmem [resolvable:$true] %s334
          %340 = dma.hbm_to_vmem [thread:$0]  %s333, 4096, %s335, %s324, 128, 128, 8
        $region56: #{bottleneck_forward.1} parent=51 // pred_fallthru
          _
      $region52: #{bottleneck_forward.1} parent=5 // pred_fallthru
        _
      %p341 = scmp.le.s32.totalorder 1, %s23
      %p342 = scmp.lt.s32.totalorder %s23, 3
      %p343 = pnand %p341, %p342
      %p344 = pneg %p343
      // Predicated region
      $region57: #{bottleneck_forward.1} parent=5 // pred_check
        _
      $region58: #{bottleneck_forward.1} parent=5 // pred_check_branch
        %346 = sbr.rel (%p343) target = $region60
      $region59: #{bottleneck_forward.1} parent=5 // pred_region
        %s347 = ssub.s32 %s23, 1
        %s348 = sand.u32 %s36, 1
        %s349 = scalar_lea.sflag [#allocation5], %s348
        %s350 = sand.u32 %s36, 1
        %s351 = smul.addr %s350, 256
        %s352 = scalar_lea.vmem [#allocation4], %s351
        // Predicated region
        $region61: #{bottleneck_forward.1} parent=59 // pred_check
          %p353 = pneg %p49
        $region62: #{bottleneck_forward.1} parent=59 // pred_check_branch
          %355 = sbr.rel (%p353) target = $region64
        $region63: #{bottleneck_forward.1} parent=59 // pred_region
          %356 = dma.done %s349, 4096
        $region64: #{bottleneck_forward.1} parent=59 // pred_fallthru
          _
        // Predicated region
        $region65: #{bottleneck_forward.1} parent=59 // pred_check
          %p357 = pneg %p133
        $region66: #{bottleneck_forward.1} parent=59 // pred_check_branch
          %359 = sbr.rel (%p357) target = $region68
        $region67: #{bottleneck_forward.1} parent=59 // pred_region
          %360 = dma.done [#allocation8], 2304
        $region68: #{bottleneck_forward.1} parent=59 // pred_fallthru
          _
        %s361 = sand.u32 %s36, 1
        %s362 = scalar_lea.sflag [#allocation5], %s361
        %s363 = sand.u32 %s36, 1
        %s364 = smul.addr %s363, 256
        %s365 = scalar_lea.vmem [#allocation4], %s364
        %p366 = pneg %p49
        %p367 = pneg %p46
        %p368 = pneg %p70
        %p369 = pneg %p67
        %p370 = pneg %p91
        %p371 = pneg %p88
        %p372 = pneg %p112
        %p373 = pneg %p109
        %p374 = pneg %p133
        %p375 = pneg %p130
        %p376 = pneg %p154
        %p377 = pneg %p151
        %p378 = pneg %p175
        %p379 = pneg %p172
        %p380 = pneg %p196
        %p381 = pneg %p193
        %p382 = pneg %p217
        %p383 = pneg %p214
        %p384 = pneg %p238
        %p385 = pneg %p235
        %p386 = pneg %p264
        %p387 = pneg %p261
        %s388 = sand.u32 %s251, 1
        %s389 = scalar_lea.sflag [#allocation6], %s388
        %s390 = sand.u32 %s251, 1
        %s391 = smul.addr %s390, 256
        %s392 = scalar_lea.vmem [#allocation9], %s391
        %v394 = vld [vmem:[%s352] sm:$0xff]
        %v395 = vld [vmem:[%s352 + $0x8] sm:$0xff]
        %v396 = vld [vmem:[%s352 + $0x10] sm:$0xff]
        %v397 = vld [vmem:[%s352 + $0x18] sm:$0xff]
        %v398 = vld [vmem:[%s352 + $0x20] sm:$0xff]
        %v399 = vld [vmem:[%s352 + $0x28] sm:$0xff]
        %v400 = vld [vmem:[%s352 + $0x30] sm:$0xff]
        %v401 = vld [vmem:[%s352 + $0x38] sm:$0xff]
        %v402 = vld [vmem:[%s352 + $0x40] sm:$0xff]
        %v403 = vld [vmem:[%s352 + $0x48] sm:$0xff]
        %v404 = vld [vmem:[%s352 + $0x50] sm:$0xff]
        %v405 = vld [vmem:[%s352 + $0x58] sm:$0xff]
        %v406 = vld [vmem:[%s352 + $0x60] sm:$0xff]
        %v407 = vld [vmem:[%s352 + $0x68] sm:$0xff]
        %v408 = vld [vmem:[%s352 + $0x70] sm:$0xff]
        %v409 = vld [vmem:[%s352 + $0x78] sm:$0xff]
        %v410 = vld [vmem:[%s352 + $0x80] sm:$0xff]
        %v411 = vld [vmem:[%s352 + $0x88] sm:$0xff]
        %v412 = vld [vmem:[%s352 + $0x90] sm:$0xff]
        %v413 = vld [vmem:[%s352 + $0x98] sm:$0xff]
        %v414 = vld [vmem:[%s352 + $0xa0] sm:$0xff]
        %v415 = vld [vmem:[%s352 + $0xa8] sm:$0xff]
        %v416 = vld [vmem:[%s352 + $0xb0] sm:$0xff]
        %v417 = vld [vmem:[%s352 + $0xb8] sm:$0xff]
        %v418 = vld [vmem:[%s352 + $0xc0] sm:$0xff]
        %v419 = vld [vmem:[%s352 + $0xc8] sm:$0xff]
        %v420 = vld [vmem:[%s352 + $0xd0] sm:$0xff]
        %v421 = vld [vmem:[%s352 + $0xd8] sm:$0xff]
        %v422 = vld [vmem:[%s352 + $0xe0] sm:$0xff]
        %v423 = vld [vmem:[%s352 + $0xe8] sm:$0xff]
        %v424 = vld [vmem:[%s352 + $0xf0] sm:$0xff]
        %v425 = vld [vmem:[%s352 + $0xf8] sm:$0xff]
        %v426 = vpack.c.bf16 %v395, %v394
        %v427 = vpack.c.bf16 %v397, %v396
        %v428 = vpack.c.bf16 %v399, %v398
        %v429 = vpack.c.bf16 %v401, %v400
        %v430 = vpack.c.bf16 %v403, %v402
        %v431 = vpack.c.bf16 %v405, %v404
        %v432 = vpack.c.bf16 %v407, %v406
        %v433 = vpack.c.bf16 %v409, %v408
        %v434 = vpack.c.bf16 %v411, %v410
        %v435 = vpack.c.bf16 %v413, %v412
        %v436 = vpack.c.bf16 %v415, %v414
        %v437 = vpack.c.bf16 %v417, %v416
        %v438 = vpack.c.bf16 %v419, %v418
        %v439 = vpack.c.bf16 %v421, %v420
        %v440 = vpack.c.bf16 %v423, %v422
        %v441 = vpack.c.bf16 %v425, %v424
        %v442 = vld [vmem:[%s1] sm:$0xf]
        %v443 = vld [vmem:[%s1 + $0x4] sm:$0xf]
        %v444 = vld [vmem:[%s1 + $0x8] sm:$0xf]
        %v445 = vld [vmem:[%s1 + $0xc] sm:$0xf]
        %v446 = vld [vmem:[%s1 + $0x10] sm:$0xf]
        %v447 = vld [vmem:[%s1 + $0x14] sm:$0xf]
        %v448 = vld [vmem:[%s1 + $0x18] sm:$0xf]
        %v449 = vld [vmem:[%s1 + $0x1c] sm:$0xf]
        %v450 = vld [vmem:[%s1 + $0x20] sm:$0xf]
        %v451 = vld [vmem:[%s1 + $0x24] sm:$0xf]
        %v452 = vld [vmem:[%s1 + $0x28] sm:$0xf]
        %v453 = vld [vmem:[%s1 + $0x2c] sm:$0xf]
        %v454 = vld [vmem:[%s1 + $0x30] sm:$0xf]
        %v455 = vld [vmem:[%s1 + $0x34] sm:$0xf]
        %v456 = vld [vmem:[%s1 + $0x38] sm:$0xf]
        %v457 = vld [vmem:[%s1 + $0x3c] sm:$0xf]
        %v474 = vunpack.c.l.b16 %v442
        %v475 = vunpack.c.l.b16 %v443
        %v476 = vunpack.c.l.b16 %v444
        %v477 = vunpack.c.l.b16 %v445
        %v478 = vunpack.c.l.b16 %v446
        %v479 = vunpack.c.l.b16 %v447
        %v480 = vunpack.c.l.b16 %v448
        %v481 = vunpack.c.l.b16 %v449
        %v482 = vunpack.c.l.b16 %v450
        %v483 = vunpack.c.l.b16 %v451
        %v484 = vunpack.c.l.b16 %v452
        %v485 = vunpack.c.l.b16 %v453
        %v486 = vunpack.c.l.b16 %v454
        %v487 = vunpack.c.l.b16 %v455
        %v488 = vunpack.c.l.b16 %v456
        %v489 = vunpack.c.l.b16 %v457
        %v490 = vpack.c.b16 %v475, %v474
        %v491 = vpack.c.b16 %v477, %v476
        %v492 = vpack.c.b16 %v479, %v478
        %v493 = vpack.c.b16 %v481, %v480
        %v494 = vpack.c.b16 %v483, %v482
        %v495 = vpack.c.b16 %v485, %v484
        %v496 = vpack.c.b16 %v487, %v486
        %v497 = vpack.c.b16 %v489, %v488
        %506 = vmatprep.subr.bf16.mxu0 0
        %507 = vmatpush1.bf16.msra.mxu0 %v497
        %508 = vmatprep.subr.bf16.mxu0 0
        %509 = vmatpush1.bf16.msra.mxu0 %v496
        %510 = vmatprep.subr.bf16.mxu0 0
        %511 = vmatpush1.bf16.msra.mxu0 %v495
        %512 = vmatprep.subr.bf16.mxu0 0
        %513 = vmatpush1.bf16.msra.mxu0 %v494
        %514 = vmatprep.subr.bf16.mxu0 0
        %515 = vmatpush1.bf16.msra.mxu0 %v493
        %516 = vmatprep.subr.bf16.mxu0 0
        %517 = vmatpush1.bf16.msra.mxu0 %v492
        %518 = vmatprep.subr.bf16.mxu0 0
        %519 = vmatpush1.bf16.msra.mxu0 %v491
        %520 = vmatprep.subr.bf16.mxu0 0
        %521 = vmatpush1.bf16.msra.mxu0 %v490
        %522 = vmatprep.subr.bf16.mxu0 0
        %523 = vmatpush2.bf16.msra.mxu0 0
        %524 = vmatprep.subr.bf16.mxu0 0
        %525 = vmatpush2.bf16.msra.mxu0 0
        %526 = vmatprep.subr.bf16.mxu0 0
        %527 = vmatpush2.bf16.msra.mxu0 0
        %528 = vmatprep.subr.bf16.mxu0 0
        %529 = vmatpush2.bf16.msra.mxu0 0
        %530 = vmatprep.subr.bf16.mxu0 0
        %531 = vmatpush2.bf16.msra.mxu0 0
        %532 = vmatprep.subr.bf16.mxu0 0
        %533 = vmatpush2.bf16.msra.mxu0 0
        %534 = vmatprep.subr.bf16.mxu0 0
        %535 = vmatpush2.bf16.msra.mxu0 0
        %536 = vmatprep.subr.bf16.mxu0 0
        %537 = vmatpush2.bf16.msra.mxu0 0
        %538 = vmatprep.mubr.bf16.mxu0 0
        %539 = vmatmul.mubr.bf16.gmra.mxu0 %v426
        %v540 = vpop.f32.mrf.mxu0
        %v541 = vadd.f32 0.0, %v540
        %v542 = vpop.f32.mrf.mxu0
        %v543 = vpop.f32.mrf.mxu0
        %v544 = vadd.f32 0.0, %v543
        %v545 = vpop.f32.mrf.mxu0
        %546 = vmatprep.mubr.bf16.mxu0 0
        %547 = vmatmul.mubr.bf16.gmra.mxu0 %v427
        %v548 = vpop.f32.mrf.mxu0
        %v549 = vadd.f32 0.0, %v548
        %v550 = vpop.f32.mrf.mxu0
        %v551 = vpop.f32.mrf.mxu0
        %v552 = vadd.f32 0.0, %v551
        %v553 = vpop.f32.mrf.mxu0
        %554 = vmatprep.mubr.bf16.mxu0 0
        %555 = vmatmul.mubr.bf16.gmra.mxu0 %v428
        %v556 = vpop.f32.mrf.mxu0
        %v557 = vadd.f32 0.0, %v556
        %v558 = vpop.f32.mrf.mxu0
        %v559 = vpop.f32.mrf.mxu0
        %v560 = vadd.f32 0.0, %v559
        %v561 = vpop.f32.mrf.mxu0
        %562 = vmatprep.mubr.bf16.mxu0 0
        %563 = vmatmul.mubr.bf16.gmra.mxu0 %v429
        %v564 = vpop.f32.mrf.mxu0
        %v565 = vadd.f32 0.0, %v564
        %v566 = vpop.f32.mrf.mxu0
        %v567 = vpop.f32.mrf.mxu0
        %v568 = vadd.f32 0.0, %v567
        %v569 = vpop.f32.mrf.mxu0
        %570 = vmatprep.mubr.bf16.mxu0 0
        %571 = vmatmul.mubr.bf16.gmra.mxu0 %v430
        %v572 = vpop.f32.mrf.mxu0
        %v573 = vadd.f32 0.0, %v572
        %v574 = vpop.f32.mrf.mxu0
        %v575 = vpop.f32.mrf.mxu0
        %v576 = vadd.f32 0.0, %v575
        %v577 = vpop.f32.mrf.mxu0
        %578 = vmatprep.mubr.bf16.mxu0 0
        %579 = vmatmul.mubr.bf16.gmra.mxu0 %v431
        %v580 = vpop.f32.mrf.mxu0
        %v581 = vadd.f32 0.0, %v580
        %v582 = vpop.f32.mrf.mxu0
        %v583 = vpop.f32.mrf.mxu0
        %v584 = vadd.f32 0.0, %v583
        %v585 = vpop.f32.mrf.mxu0
        %586 = vmatprep.mubr.bf16.mxu0 0
        %587 = vmatmul.mubr.bf16.gmra.mxu0 %v432
        %v588 = vpop.f32.mrf.mxu0
        %v589 = vadd.f32 0.0, %v588
        %v590 = vpop.f32.mrf.mxu0
        %v591 = vpop.f32.mrf.mxu0
        %v592 = vadd.f32 0.0, %v591
        %v593 = vpop.f32.mrf.mxu0
        %594 = vmatprep.mubr.bf16.mxu0 0
        %595 = vmatmul.mubr.bf16.gmra.mxu0 %v433
        %v596 = vpop.f32.mrf.mxu0
        %v597 = vadd.f32 0.0, %v596
        %v598 = vpop.f32.mrf.mxu0
        %v599 = vpop.f32.mrf.mxu0
        %v600 = vadd.f32 0.0, %v599
        %v601 = vpop.f32.mrf.mxu0
        %602 = vmatprep.mubr.bf16.mxu0 0
        %603 = vmatmul.mubr.bf16.gmra.mxu0 %v434
        %v604 = vpop.f32.mrf.mxu0
        %v605 = vadd.f32 0.0, %v604
        %v606 = vpop.f32.mrf.mxu0
        %v607 = vpop.f32.mrf.mxu0
        %v608 = vadd.f32 0.0, %v607
        %v609 = vpop.f32.mrf.mxu0
        %610 = vmatprep.mubr.bf16.mxu0 0
        %611 = vmatmul.mubr.bf16.gmra.mxu0 %v435
        %v612 = vpop.f32.mrf.mxu0
        %v613 = vadd.f32 0.0, %v612
        %v614 = vpop.f32.mrf.mxu0
        %v615 = vpop.f32.mrf.mxu0
        %v616 = vadd.f32 0.0, %v615
        %v617 = vpop.f32.mrf.mxu0
        %618 = vmatprep.mubr.bf16.mxu0 0
        %619 = vmatmul.mubr.bf16.gmra.mxu0 %v436
        %v620 = vpop.f32.mrf.mxu0
        %v621 = vadd.f32 0.0, %v620
        %v622 = vpop.f32.mrf.mxu0
        %v623 = vpop.f32.mrf.mxu0
        %v624 = vadd.f32 0.0, %v623
        %v625 = vpop.f32.mrf.mxu0
        %626 = vmatprep.mubr.bf16.mxu0 0
        %627 = vmatmul.mubr.bf16.gmra.mxu0 %v437
        %v628 = vpop.f32.mrf.mxu0
        %v629 = vadd.f32 0.0, %v628
        %v630 = vpop.f32.mrf.mxu0
        %v631 = vpop.f32.mrf.mxu0
        %v632 = vadd.f32 0.0, %v631
        %v633 = vpop.f32.mrf.mxu0
        %634 = vmatprep.mubr.bf16.mxu0 0
        %635 = vmatmul.mubr.bf16.gmra.mxu0 %v438
        %v636 = vpop.f32.mrf.mxu0
        %v637 = vadd.f32 0.0, %v636
        %v638 = vpop.f32.mrf.mxu0
        %v639 = vpop.f32.mrf.mxu0
        %v640 = vadd.f32 0.0, %v639
        %v641 = vpop.f32.mrf.mxu0
        %642 = vmatprep.mubr.bf16.mxu0 0
        %643 = vmatmul.mubr.bf16.gmra.mxu0 %v439
        %v644 = vpop.f32.mrf.mxu0
        %v645 = vadd.f32 0.0, %v644
        %v646 = vpop.f32.mrf.mxu0
        %v647 = vpop.f32.mrf.mxu0
        %v648 = vadd.f32 0.0, %v647
        %v649 = vpop.f32.mrf.mxu0
        %650 = vmatprep.mubr.bf16.mxu0 0
        %651 = vmatmul.mubr.bf16.gmra.mxu0 %v440
        %v652 = vpop.f32.mrf.mxu0
        %v653 = vadd.f32 0.0, %v652
        %v654 = vpop.f32.mrf.mxu0
        %v655 = vpop.f32.mrf.mxu0
        %v656 = vadd.f32 0.0, %v655
        %v657 = vpop.f32.mrf.mxu0
        %658 = vmatprep.mubr.bf16.mxu0 0
        %659 = vmatmul.mubr.bf16.gmra.mxu0 %v441
        %v660 = vpop.f32.mrf.mxu0
        %v661 = vadd.f32 0.0, %v660
        %v662 = vpop.f32.mrf.mxu0
        %v663 = vpop.f32.mrf.mxu0
        %v664 = vadd.f32 0.0, %v663
        %v665 = vpop.f32.mrf.mxu0
        %666 = vdwg.mxu0
        %v667 = vld [vmem:[%s2] sm:$0x1]
        %v669 = vlaneseq
        %v670 = vshrl.u32 %v669, 7
        %v671 = vsub.s32 0, %v670
        %v672 = vrot.slane %v667, %v671
        %v674 = vmul.f32 %v541, %v672
        %v675 = vmul.f32 %v544, %v672
        %v676 = vmul.f32 %v549, %v672
        %v677 = vmul.f32 %v552, %v672
        %v678 = vmul.f32 %v557, %v672
        %v679 = vmul.f32 %v560, %v672
        %v680 = vmul.f32 %v565, %v672
        %v681 = vmul.f32 %v568, %v672
        %v682 = vmul.f32 %v573, %v672
        %v683 = vmul.f32 %v576, %v672
        %v684 = vmul.f32 %v581, %v672
        %v685 = vmul.f32 %v584, %v672
        %v686 = vmul.f32 %v589, %v672
        %v687 = vmul.f32 %v592, %v672
        %v688 = vmul.f32 %v597, %v672
        %v689 = vmul.f32 %v600, %v672
        %v690 = vmul.f32 %v605, %v672
        %v691 = vmul.f32 %v608, %v672
        %v692 = vmul.f32 %v613, %v672
        %v693 = vmul.f32 %v616, %v672
        %v694 = vmul.f32 %v621, %v672
        %v695 = vmul.f32 %v624, %v672
        %v696 = vmul.f32 %v629, %v672
        %v697 = vmul.f32 %v632, %v672
        %v698 = vmul.f32 %v637, %v672
        %v699 = vmul.f32 %v640, %v672
        %v700 = vmul.f32 %v645, %v672
        %v701 = vmul.f32 %v648, %v672
        %v702 = vmul.f32 %v653, %v672
        %v703 = vmul.f32 %v656, %v672
        %v704 = vmul.f32 %v661, %v672
        %v705 = vmul.f32 %v664, %v672
        %v706 = vld [vmem:[%s3] sm:$0x1]
        %v708 = vlaneseq
        %v709 = vshrl.u32 %v708, 7
        %v710 = vsub.s32 0, %v709
        %v711 = vrot.slane %v706, %v710
        %v713 = vadd.f32 %v674, %v711
        %v714 = vadd.f32 %v675, %v711
        %v715 = vadd.f32 %v676, %v711
        %v716 = vadd.f32 %v677, %v711
        %v717 = vadd.f32 %v678, %v711
        %v718 = vadd.f32 %v679, %v711
        %v719 = vadd.f32 %v680, %v711
        %v720 = vadd.f32 %v681, %v711
        %v721 = vadd.f32 %v682, %v711
        %v722 = vadd.f32 %v683, %v711
        %v723 = vadd.f32 %v684, %v711
        %v724 = vadd.f32 %v685, %v711
        %v725 = vadd.f32 %v686, %v711
        %v726 = vadd.f32 %v687, %v711
        %v727 = vadd.f32 %v688, %v711
        %v728 = vadd.f32 %v689, %v711
        %v729 = vadd.f32 %v690, %v711
        %v730 = vadd.f32 %v691, %v711
        %v731 = vadd.f32 %v692, %v711
        %v732 = vadd.f32 %v693, %v711
        %v733 = vadd.f32 %v694, %v711
        %v734 = vadd.f32 %v695, %v711
        %v735 = vadd.f32 %v696, %v711
        %v736 = vadd.f32 %v697, %v711
        %v737 = vadd.f32 %v698, %v711
        %v738 = vadd.f32 %v699, %v711
        %v739 = vadd.f32 %v700, %v711
        %v740 = vadd.f32 %v701, %v711
        %v741 = vadd.f32 %v702, %v711
        %v742 = vadd.f32 %v703, %v711
        %v743 = vadd.f32 %v704, %v711
        %v744 = vadd.f32 %v705, %v711
        %v745 = vmax.f32 %v713, 0.0
        %v746 = vmax.f32 %v714, 0.0
        %v747 = vmax.f32 %v715, 0.0
        %v748 = vmax.f32 %v716, 0.0
        %v749 = vmax.f32 %v717, 0.0
        %v750 = vmax.f32 %v718, 0.0
        %v751 = vmax.f32 %v719, 0.0
        %v752 = vmax.f32 %v720, 0.0
        %v753 = vmax.f32 %v721, 0.0
        %v754 = vmax.f32 %v722, 0.0
        %v755 = vmax.f32 %v723, 0.0
        %v756 = vmax.f32 %v724, 0.0
        %v757 = vmax.f32 %v725, 0.0
        %v758 = vmax.f32 %v726, 0.0
        %v759 = vmax.f32 %v727, 0.0
        %v760 = vmax.f32 %v728, 0.0
        %v761 = vmax.f32 %v729, 0.0
        %v762 = vmax.f32 %v730, 0.0
        %v763 = vmax.f32 %v731, 0.0
        %v764 = vmax.f32 %v732, 0.0
        %v765 = vmax.f32 %v733, 0.0
        %v766 = vmax.f32 %v734, 0.0
        %v767 = vmax.f32 %v735, 0.0
        %v768 = vmax.f32 %v736, 0.0
        %v769 = vmax.f32 %v737, 0.0
        %v770 = vmax.f32 %v738, 0.0
        %v771 = vmax.f32 %v739, 0.0
        %v772 = vmax.f32 %v740, 0.0
        %v773 = vmax.f32 %v741, 0.0
        %v774 = vmax.f32 %v742, 0.0
        %v775 = vmax.f32 %v743, 0.0
        %v776 = vmax.f32 %v744, 0.0
        %vm777 = vcmask 257024
        %778 = vst.msk [vmem:[#allocation2] sm:$0xf] %vm777, 0
        %779 = vst.msk [vmem:[#allocation2 + $0x4] sm:$0xf] %vm777, 0
        %780 = vst.msk [vmem:[#allocation2 + $0x8] sm:$0xf] %vm777, 0
        %781 = vst.msk [vmem:[#allocation2 + $0xc] sm:$0xf] %vm777, 0
        %782 = vst.msk [vmem:[#allocation2 + $0x10] sm:$0xf] %vm777, 0
        %783 = vst.msk [vmem:[#allocation2 + $0x14] sm:$0xf] %vm777, 0
        %s784 = scalar_lea.vmem [#allocation2], 408
        %785 = vst.msk [vmem:[%s784] sm:$0xf] %vm777, 0
        %786 = vst.msk [vmem:[%s784 + $0x4] sm:$0xf] %vm777, 0
        %787 = vst.msk [vmem:[%s784 + $0x8] sm:$0xf] %vm777, 0
        %788 = vst.msk [vmem:[%s784 + $0xc] sm:$0xf] %vm777, 0
        %789 = vst.msk [vmem:[%s784 + $0x10] sm:$0xf] %vm777, 0
        %790 = vst.msk [vmem:[%s784 + $0x14] sm:$0xf] %vm777, 0
        %vm791 = vcmask 257027
        %vm792 = vsmask.f32 7950
        %vm793 = vmand %vm791, %vm792
        %v794 = vld [vmem:[#allocation2 + $0x4] sm:$0x8]
        %v795 = vsel %vm793, 0, %v794
        %796 = vst [vmem:[#allocation2 + $0x4] sm:$0x8] %v795
        %v797 = vld [vmem:[#allocation2 + $0x1c] sm:$0x8]
        %v798 = vsel %vm793, 0, %v797
        %799 = vst [vmem:[#allocation2 + $0x1c] sm:$0x8] %v798
        %v800 = vld [vmem:[#allocation2 + $0x34] sm:$0x8]
        %v801 = vsel %vm793, 0, %v800
        %802 = vst [vmem:[#allocation2 + $0x34] sm:$0x8] %v801
        %v803 = vld [vmem:[#allocation2 + $0x4c] sm:$0x8]
        %v804 = vsel %vm793, 0, %v803
        %805 = vst [vmem:[#allocation2 + $0x4c] sm:$0x8] %v804
        %v806 = vld [vmem:[#allocation2 + $0x64] sm:$0x8]
        %v807 = vsel %vm793, 0, %v806
        %808 = vst [vmem:[#allocation2 + $0x64] sm:$0x8] %v807
        %v809 = vld [vmem:[#allocation2 + $0x7c] sm:$0x8]
        %v810 = vsel %vm793, 0, %v809
        %811 = vst [vmem:[#allocation2 + $0x7c] sm:$0x8] %v810
        %v812 = vld [vmem:[#allocation2 + $0x94] sm:$0x8]
        %v813 = vsel %vm793, 0, %v812
        %814 = vst [vmem:[#allocation2 + $0x94] sm:$0x8] %v813
        %v815 = vld [vmem:[#allocation2 + $0xac] sm:$0x8]
        %v816 = vsel %vm793, 0, %v815
        %817 = vst [vmem:[#allocation2 + $0xac] sm:$0x8] %v816
        %v818 = vld [vmem:[#allocation2 + $0xc4] sm:$0x8]
        %v819 = vsel %vm793, 0, %v818
        %820 = vst [vmem:[#allocation2 + $0xc4] sm:$0x8] %v819
        %v821 = vld [vmem:[#allocation2 + $0xdc] sm:$0x8]
        %v822 = vsel %vm793, 0, %v821
        %823 = vst [vmem:[#allocation2 + $0xdc] sm:$0x8] %v822
        %v824 = vld [vmem:[#allocation2 + $0xf4] sm:$0x8]
        %v825 = vsel %vm793, 0, %v824
        %826 = vst [vmem:[#allocation2 + $0xf4] sm:$0x8] %v825
        %v827 = vld [vmem:[#allocation2 + $0x10c] sm:$0x8]
        %v828 = vsel %vm793, 0, %v827
        %829 = vst [vmem:[#allocation2 + $0x10c] sm:$0x8] %v828
        %v830 = vld [vmem:[#allocation2 + $0x124] sm:$0x8]
        %v831 = vsel %vm793, 0, %v830
        %832 = vst [vmem:[#allocation2 + $0x124] sm:$0x8] %v831
        %v833 = vld [vmem:[#allocation2 + $0x13c] sm:$0x8]
        %v834 = vsel %vm793, 0, %v833
        %835 = vst [vmem:[#allocation2 + $0x13c] sm:$0x8] %v834
        %v836 = vld [vmem:[#allocation2 + $0x154] sm:$0x8]
        %v837 = vsel %vm793, 0, %v836
        %838 = vst [vmem:[#allocation2 + $0x154] sm:$0x8] %v837
        %v839 = vld [vmem:[#allocation2 + $0x16c] sm:$0x8]
        %v840 = vsel %vm793, 0, %v839
        %841 = vst [vmem:[#allocation2 + $0x16c] sm:$0x8] %v840
        %v842 = vld [vmem:[#allocation2 + $0x184] sm:$0x8]
        %v843 = vsel %vm793, 0, %v842
        %844 = vst [vmem:[#allocation2 + $0x184] sm:$0x8] %v843
        %v845 = vld [vmem:[#allocation2 + $0x19c] sm:$0x8]
        %v846 = vsel %vm793, 0, %v845
        %847 = vst [vmem:[#allocation2 + $0x19c] sm:$0x8] %v846
        %vm848 = vcmask 253952
        %vm849 = vsmask.f32 256
        %vm850 = vmand %vm848, %vm849
        %v851 = vld [vmem:[#allocation2 + $0x10] sm:$0x1]
        %v852 = vsel %vm850, 0, %v851
        %853 = vst [vmem:[#allocation2 + $0x10] sm:$0x1] %v852
        %v854 = vld [vmem:[#allocation2 + $0x28] sm:$0x1]
        %v855 = vsel %vm850, 0, %v854
        %856 = vst [vmem:[#allocation2 + $0x28] sm:$0x1] %v855
        %v857 = vld [vmem:[#allocation2 + $0x40] sm:$0x1]
        %v858 = vsel %vm850, 0, %v857
        %859 = vst [vmem:[#allocation2 + $0x40] sm:$0x1] %v858
        %v860 = vld [vmem:[#allocation2 + $0x58] sm:$0x1]
        %v861 = vsel %vm850, 0, %v860
        %862 = vst [vmem:[#allocation2 + $0x58] sm:$0x1] %v861
        %v863 = vld [vmem:[#allocation2 + $0x70] sm:$0x1]
        %v864 = vsel %vm850, 0, %v863
        %865 = vst [vmem:[#allocation2 + $0x70] sm:$0x1] %v864
        %v866 = vld [vmem:[#allocation2 + $0x88] sm:$0x1]
        %v867 = vsel %vm850, 0, %v866
        %868 = vst [vmem:[#allocation2 + $0x88] sm:$0x1] %v867
        %v869 = vld [vmem:[#allocation2 + $0xa0] sm:$0x1]
        %v870 = vsel %vm850, 0, %v869
        %871 = vst [vmem:[#allocation2 + $0xa0] sm:$0x1] %v870
        %v872 = vld [vmem:[#allocation2 + $0xb8] sm:$0x1]
        %v873 = vsel %vm850, 0, %v872
        %874 = vst [vmem:[#allocation2 + $0xb8] sm:$0x1] %v873
        %v875 = vld [vmem:[#allocation2 + $0xd0] sm:$0x1]
        %v876 = vsel %vm850, 0, %v875
        %877 = vst [vmem:[#allocation2 + $0xd0] sm:$0x1] %v876
        %v878 = vld [vmem:[#allocation2 + $0xe8] sm:$0x1]
        %v879 = vsel %vm850, 0, %v878
        %880 = vst [vmem:[#allocation2 + $0xe8] sm:$0x1] %v879
        %v881 = vld [vmem:[#allocation2 + $0x100] sm:$0x1]
        %v882 = vsel %vm850, 0, %v881
        %883 = vst [vmem:[#allocation2 + $0x100] sm:$0x1] %v882
        %v884 = vld [vmem:[#allocation2 + $0x118] sm:$0x1]
        %v885 = vsel %vm850, 0, %v884
        %886 = vst [vmem:[#allocation2 + $0x118] sm:$0x1] %v885
        %v887 = vld [vmem:[#allocation2 + $0x130] sm:$0x1]
        %v888 = vsel %vm850, 0, %v887
        %889 = vst [vmem:[#allocation2 + $0x130] sm:$0x1] %v888
        %v890 = vld [vmem:[#allocation2 + $0x148] sm:$0x1]
        %v891 = vsel %vm850, 0, %v890
        %892 = vst [vmem:[#allocation2 + $0x148] sm:$0x1] %v891
        %v893 = vld [vmem:[#allocation2 + $0x160] sm:$0x1]
        %v894 = vsel %vm850, 0, %v893
        %895 = vst [vmem:[#allocation2 + $0x160] sm:$0x1] %v894
        %v896 = vld [vmem:[#allocation2 + $0x178] sm:$0x1]
        %v897 = vsel %vm850, 0, %v896
        %898 = vst [vmem:[#allocation2 + $0x178] sm:$0x1] %v897
        %v899 = vld [vmem:[#allocation2 + $0x190] sm:$0x1]
        %v900 = vsel %vm850, 0, %v899
        %901 = vst [vmem:[#allocation2 + $0x190] sm:$0x1] %v900
        %v902 = vld [vmem:[#allocation2 + $0x1a8] sm:$0x1]
        %v903 = vsel %vm850, 0, %v902
        %904 = vst [vmem:[#allocation2 + $0x1a8] sm:$0x1] %v903
        %v905 = vpack.c.bf16 %v746, %v745
        %v906 = vpack.c.bf16 %v748, %v747
        %v907 = vpack.c.bf16 %v750, %v749
        %v908 = vpack.c.bf16 %v752, %v751
        %v909 = vpack.c.bf16 %v754, %v753
        %v910 = vpack.c.bf16 %v756, %v755
        %v911 = vpack.c.bf16 %v758, %v757
        %v912 = vpack.c.bf16 %v760, %v759
        %v913 = vpack.c.bf16 %v762, %v761
        %v914 = vpack.c.bf16 %v764, %v763
        %v915 = vpack.c.bf16 %v766, %v765
        %v916 = vpack.c.bf16 %v768, %v767
        %v917 = vpack.c.bf16 %v770, %v769
        %v918 = vpack.c.bf16 %v772, %v771
        %v919 = vpack.c.bf16 %v774, %v773
        %v920 = vpack.c.bf16 %v776, %v775
        %v937 = vunpack.c.l.b16 %v905
        %v938 = vunpack.c.h.b16 %v905
        %v939 = vunpack.c.l.b16 %v906
        %v940 = vunpack.c.h.b16 %v906
        %v941 = vunpack.c.l.b16 %v907
        %v942 = vunpack.c.h.b16 %v907
        %v943 = vunpack.c.l.b16 %v908
        %v944 = vunpack.c.h.b16 %v908
        %v945 = vunpack.c.l.b16 %v909
        %v946 = vunpack.c.h.b16 %v909
        %v947 = vunpack.c.l.b16 %v910
        %v948 = vunpack.c.h.b16 %v910
        %v949 = vunpack.c.l.b16 %v911
        %v950 = vunpack.c.h.b16 %v911
        %v951 = vunpack.c.l.b16 %v912
        %v952 = vunpack.c.h.b16 %v912
        %v953 = vunpack.c.l.b16 %v913
        %v954 = vunpack.c.h.b16 %v913
        %v955 = vunpack.c.l.b16 %v914
        %v956 = vunpack.c.h.b16 %v914
        %v957 = vunpack.c.l.b16 %v915
        %v958 = vunpack.c.h.b16 %v915
        %v959 = vunpack.c.l.b16 %v916
        %v960 = vunpack.c.h.b16 %v916
        %v961 = vunpack.c.l.b16 %v917
        %v962 = vunpack.c.h.b16 %v917
        %v963 = vunpack.c.l.b16 %v918
        %v964 = vunpack.c.h.b16 %v918
        %v965 = vunpack.c.l.b16 %v919
        %v966 = vunpack.c.h.b16 %v919
        %v967 = vunpack.c.l.b16 %v920
        %v968 = vunpack.c.h.b16 %v920
        %v969 = vpack.c.b16 %v937, %v937
        %v970 = vpack.c.b16 %v938, %v938
        %v971 = vpack.c.b16 %v939, %v939
        %v972 = vpack.c.b16 %v940, %v940
        %v973 = vpack.c.b16 %v941, %v941
        %v974 = vpack.c.b16 %v942, %v942
        %v975 = vpack.c.b16 %v943, %v943
        %v976 = vpack.c.b16 %v944, %v944
        %v977 = vpack.c.b16 %v945, %v945
        %v978 = vpack.c.b16 %v946, %v946
        %v979 = vpack.c.b16 %v947, %v947
        %v980 = vpack.c.b16 %v948, %v948
        %v981 = vpack.c.b16 %v949, %v949
        %v982 = vpack.c.b16 %v950, %v950
        %v983 = vpack.c.b16 %v951, %v951
        %v984 = vpack.c.b16 %v952, %v952
        %v985 = vpack.c.b16 %v953, %v953
        %v986 = vpack.c.b16 %v954, %v954
        %v987 = vpack.c.b16 %v955, %v955
        %v988 = vpack.c.b16 %v956, %v956
        %v989 = vpack.c.b16 %v957, %v957
        %v990 = vpack.c.b16 %v958, %v958
        %v991 = vpack.c.b16 %v959, %v959
        %v992 = vpack.c.b16 %v960, %v960
        %v993 = vpack.c.b16 %v961, %v961
        %v994 = vpack.c.b16 %v962, %v962
        %v995 = vpack.c.b16 %v963, %v963
        %v996 = vpack.c.b16 %v964, %v964
        %v997 = vpack.c.b16 %v965, %v965
        %v998 = vpack.c.b16 %v966, %v966
        %v999 = vpack.c.b16 %v967, %v967
        %v1000 = vpack.c.b16 %v968, %v968
        %s1033 = scalar_lea.vmem [#allocation2], 24
        %1034 = vst.msk [vmem:[%s1033 + $0x8] sm:$0xf] %vm777, %v969
        %1035 = vst.msk [vmem:[%s1033 + $0xc] sm:$0xf] %vm777, %v970
        %1036 = vst.msk [vmem:[%s1033 + $0x20] sm:$0xf] %vm777, %v971
        %1037 = vst.msk [vmem:[%s1033 + $0x24] sm:$0xf] %vm777, %v972
        %1038 = vst.msk [vmem:[%s1033 + $0x38] sm:$0xf] %vm777, %v973
        %1039 = vst.msk [vmem:[%s1033 + $0x3c] sm:$0xf] %vm777, %v974
        %1040 = vst.msk [vmem:[%s1033 + $0x50] sm:$0xf] %vm777, %v975
        %1041 = vst.msk [vmem:[%s1033 + $0x54] sm:$0xf] %vm777, %v976
        %1042 = vst.msk [vmem:[%s1033 + $0x68] sm:$0xf] %vm777, %v977
        %1043 = vst.msk [vmem:[%s1033 + $0x6c] sm:$0xf] %vm777, %v978
        %1044 = vst.msk [vmem:[%s1033 + $0x80] sm:$0xf] %vm777, %v979
        %1045 = vst.msk [vmem:[%s1033 + $0x84] sm:$0xf] %vm777, %v980
        %1046 = vst.msk [vmem:[%s1033 + $0x98] sm:$0xf] %vm777, %v981
        %1047 = vst.msk [vmem:[%s1033 + $0x9c] sm:$0xf] %vm777, %v982
        %1048 = vst.msk [vmem:[%s1033 + $0xb0] sm:$0xf] %vm777, %v983
        %1049 = vst.msk [vmem:[%s1033 + $0xb4] sm:$0xf] %vm777, %v984
        %1050 = vst.msk [vmem:[%s1033 + $0xc8] sm:$0xf] %vm777, %v985
        %1051 = vst.msk [vmem:[%s1033 + $0xcc] sm:$0xf] %vm777, %v986
        %1052 = vst.msk [vmem:[%s1033 + $0xe0] sm:$0xf] %vm777, %v987
        %1053 = vst.msk [vmem:[%s1033 + $0xe4] sm:$0xf] %vm777, %v988
        %1054 = vst.msk [vmem:[%s1033 + $0xf8] sm:$0xf] %vm777, %v989
        %1055 = vst.msk [vmem:[%s1033 + $0xfc] sm:$0xf] %vm777, %v990
        %1056 = vst.msk [vmem:[%s1033 + $0x110] sm:$0xf] %vm777, %v991
        %1057 = vst.msk [vmem:[%s1033 + $0x114] sm:$0xf] %vm777, %v992
        %1058 = vst.msk [vmem:[%s1033 + $0x128] sm:$0xf] %vm777, %v993
        %1059 = vst.msk [vmem:[%s1033 + $0x12c] sm:$0xf] %vm777, %v994
        %1060 = vst.msk [vmem:[%s1033 + $0x140] sm:$0xf] %vm777, %v995
        %1061 = vst.msk [vmem:[%s1033 + $0x144] sm:$0xf] %vm777, %v996
        %1062 = vst.msk [vmem:[%s1033 + $0x158] sm:$0xf] %vm777, %v997
        %1063 = vst.msk [vmem:[%s1033 + $0x15c] sm:$0xf] %vm777, %v998
        %1064 = vst.msk [vmem:[%s1033 + $0x170] sm:$0xf] %vm777, %v999
        %1065 = vst.msk [vmem:[%s1033 + $0x174] sm:$0xf] %vm777, %v1000
        %v1066 = vld [vmem:[#allocation2 + $0x4] sm:$0x8]
        %v1067 = vld [vmem:[#allocation2 + $0x8] sm:$0xf]
        %v1068 = vld [vmem:[#allocation2 + $0xc] sm:$0xf]
        %v1069 = vld [vmem:[#allocation2 + $0x1c] sm:$0x8]
        %v1070 = vld [vmem:[#allocation2 + $0x20] sm:$0xf]
        %v1071 = vld [vmem:[#allocation2 + $0x24] sm:$0xf]
        %v1072 = vld [vmem:[#allocation2 + $0x34] sm:$0x8]
        %v1073 = vld [vmem:[#allocation2 + $0x38] sm:$0xf]
        %v1074 = vld [vmem:[#allocation2 + $0x3c] sm:$0xf]
        %v1075 = vld [vmem:[#allocation2 + $0x4c] sm:$0x8]
        %v1076 = vld [vmem:[#allocation2 + $0x50] sm:$0xf]
        %v1077 = vld [vmem:[#allocation2 + $0x54] sm:$0xf]
        %v1078 = vld [vmem:[#allocation2 + $0x64] sm:$0x8]
        %v1079 = vld [vmem:[#allocation2 + $0x68] sm:$0xf]
        %v1080 = vld [vmem:[#allocation2 + $0x6c] sm:$0xf]
        %v1081 = vld [vmem:[#allocation2 + $0x7c] sm:$0x8]
        %v1082 = vld [vmem:[#allocation2 + $0x80] sm:$0xf]
        %v1083 = vld [vmem:[#allocation2 + $0x84] sm:$0xf]
        %v1084 = vld [vmem:[#allocation2 + $0x94] sm:$0x8]
        %v1085 = vld [vmem:[#allocation2 + $0x98] sm:$0xf]
        %v1086 = vld [vmem:[#allocation2 + $0x9c] sm:$0xf]
        %v1087 = vld [vmem:[#allocation2 + $0xac] sm:$0x8]
        %v1088 = vld [vmem:[#allocation2 + $0xb0] sm:$0xf]
        %v1089 = vld [vmem:[#allocation2 + $0xb4] sm:$0xf]
        %v1090 = vld [vmem:[#allocation2 + $0xc4] sm:$0x8]
        %v1091 = vld [vmem:[#allocation2 + $0xc8] sm:$0xf]
        %v1092 = vld [vmem:[#allocation2 + $0xcc] sm:$0xf]
        %v1093 = vld [vmem:[#allocation2 + $0xdc] sm:$0x8]
        %v1094 = vld [vmem:[#allocation2 + $0xe0] sm:$0xf]
        %v1095 = vld [vmem:[#allocation2 + $0xe4] sm:$0xf]
        %v1096 = vld [vmem:[#allocation2 + $0xf4] sm:$0x8]
        %v1097 = vld [vmem:[#allocation2 + $0xf8] sm:$0xf]
        %v1098 = vld [vmem:[#allocation2 + $0xfc] sm:$0xf]
        %v1099 = vld [vmem:[#allocation2 + $0x10c] sm:$0x8]
        %v1100 = vld [vmem:[#allocation2 + $0x110] sm:$0xf]
        %v1101 = vld [vmem:[#allocation2 + $0x114] sm:$0xf]
        %v1102 = vld [vmem:[#allocation2 + $0x124] sm:$0x8]
        %v1103 = vld [vmem:[#allocation2 + $0x128] sm:$0xf]
        %v1104 = vld [vmem:[#allocation2 + $0x12c] sm:$0xf]
        %v1105 = vld [vmem:[#allocation2 + $0x13c] sm:$0x8]
        %v1106 = vld [vmem:[#allocation2 + $0x140] sm:$0xf]
        %v1107 = vld [vmem:[#allocation2 + $0x144] sm:$0xf]
        %v1108 = vld [vmem:[#allocation2 + $0x154] sm:$0x8]
        %v1109 = vld [vmem:[#allocation2 + $0x158] sm:$0xf]
        %v1110 = vld [vmem:[#allocation2 + $0x15c] sm:$0xf]
        %v1111 = vld [vmem:[#allocation2 + $0x16c] sm:$0x8]
        %v1112 = vld [vmem:[#allocation2 + $0x170] sm:$0xf]
        %v1113 = vld [vmem:[#allocation2 + $0x174] sm:$0xf]
        %vm1114 = vsmask.f32 4368
        %vm1115 = vmor %vm849, %vm1114
        %v1117 = vshrl.u32 %v1066, 16
        %v1119 = vrot.slane %v1117, 7
        %v1120 = vrot.slane %v1119, 4
        %v1122 = vshrl.u32 %v1067, 16
        %v1124 = vrot.slane %v1122, 7
        %v1125 = vshll.u32 %v1067, 16
        %v1127 = vor.u32 %v1124, %v1125
        %v1128 = vsel %vm1115, %v1120, %v1127
        %v1129 = vrot.slane %v1124, 4
        %v1131 = vshrl.u32 %v1068, 16
        %v1133 = vrot.slane %v1131, 7
        %v1134 = vshll.u32 %v1068, 16
        %v1136 = vor.u32 %v1133, %v1134
        %v1137 = vsel %vm1115, %v1129, %v1136
        %v1139 = vshrl.u32 %v1069, 16
        %v1141 = vrot.slane %v1139, 7
        %v1142 = vrot.slane %v1141, 4
        %v1144 = vshrl.u32 %v1070, 16
        %v1146 = vrot.slane %v1144, 7
        %v1147 = vshll.u32 %v1070, 16
        %v1149 = vor.u32 %v1146, %v1147
        %v1150 = vsel %vm1115, %v1142, %v1149
        %v1151 = vrot.slane %v1146, 4
        %v1153 = vshrl.u32 %v1071, 16
        %v1155 = vrot.slane %v1153, 7
        %v1156 = vshll.u32 %v1071, 16
        %v1158 = vor.u32 %v1155, %v1156
        %v1159 = vsel %vm1115, %v1151, %v1158
        %v1161 = vshrl.u32 %v1072, 16
        %v1163 = vrot.slane %v1161, 7
        %v1164 = vrot.slane %v1163, 4
        %v1166 = vshrl.u32 %v1073, 16
        %v1168 = vrot.slane %v1166, 7
        %v1169 = vshll.u32 %v1073, 16
        %v1171 = vor.u32 %v1168, %v1169
        %v1172 = vsel %vm1115, %v1164, %v1171
        %v1173 = vrot.slane %v1168, 4
        %v1175 = vshrl.u32 %v1074, 16
        %v1177 = vrot.slane %v1175, 7
        %v1178 = vshll.u32 %v1074, 16
        %v1180 = vor.u32 %v1177, %v1178
        %v1181 = vsel %vm1115, %v1173, %v1180
        %v1183 = vshrl.u32 %v1075, 16
        %v1185 = vrot.slane %v1183, 7
        %v1186 = vrot.slane %v1185, 4
        %v1188 = vshrl.u32 %v1076, 16
        %v1190 = vrot.slane %v1188, 7
        %v1191 = vshll.u32 %v1076, 16
        %v1193 = vor.u32 %v1190, %v1191
        %v1194 = vsel %vm1115, %v1186, %v1193
        %v1195 = vrot.slane %v1190, 4
        %v1197 = vshrl.u32 %v1077, 16
        %v1199 = vrot.slane %v1197, 7
        %v1200 = vshll.u32 %v1077, 16
        %v1202 = vor.u32 %v1199, %v1200
        %v1203 = vsel %vm1115, %v1195, %v1202
        %v1205 = vshrl.u32 %v1078, 16
        %v1207 = vrot.slane %v1205, 7
        %v1208 = vrot.slane %v1207, 4
        %v1210 = vshrl.u32 %v1079, 16
        %v1212 = vrot.slane %v1210, 7
        %v1213 = vshll.u32 %v1079, 16
        %v1215 = vor.u32 %v1212, %v1213
        %v1216 = vsel %vm1115, %v1208, %v1215
        %v1217 = vrot.slane %v1212, 4
        %v1219 = vshrl.u32 %v1080, 16
        %v1221 = vrot.slane %v1219, 7
        %v1222 = vshll.u32 %v1080, 16
        %v1224 = vor.u32 %v1221, %v1222
        %v1225 = vsel %vm1115, %v1217, %v1224
        %v1227 = vshrl.u32 %v1081, 16
        %v1229 = vrot.slane %v1227, 7
        %v1230 = vrot.slane %v1229, 4
        %v1232 = vshrl.u32 %v1082, 16
        %v1234 = vrot.slane %v1232, 7
        %v1235 = vshll.u32 %v1082, 16
        %v1237 = vor.u32 %v1234, %v1235
        %v1238 = vsel %vm1115, %v1230, %v1237
        %v1239 = vrot.slane %v1234, 4
        %v1241 = vshrl.u32 %v1083, 16
        %v1243 = vrot.slane %v1241, 7
        %v1244 = vshll.u32 %v1083, 16
        %v1246 = vor.u32 %v1243, %v1244
        %v1247 = vsel %vm1115, %v1239, %v1246
        %v1249 = vshrl.u32 %v1084, 16
        %v1251 = vrot.slane %v1249, 7
        %v1252 = vrot.slane %v1251, 4
        %v1254 = vshrl.u32 %v1085, 16
        %v1256 = vrot.slane %v1254, 7
        %v1257 = vshll.u32 %v1085, 16
        %v1259 = vor.u32 %v1256, %v1257
        %v1260 = vsel %vm1115, %v1252, %v1259
        %v1261 = vrot.slane %v1256, 4
        %v1263 = vshrl.u32 %v1086, 16
        %v1265 = vrot.slane %v1263, 7
        %v1266 = vshll.u32 %v1086, 16
        %v1268 = vor.u32 %v1265, %v1266
        %v1269 = vsel %vm1115, %v1261, %v1268
        %v1271 = vshrl.u32 %v1087, 16
        %v1273 = vrot.slane %v1271, 7
        %v1274 = vrot.slane %v1273, 4
        %v1276 = vshrl.u32 %v1088, 16
        %v1278 = vrot.slane %v1276, 7
        %v1279 = vshll.u32 %v1088, 16
        %v1281 = vor.u32 %v1278, %v1279
        %v1282 = vsel %vm1115, %v1274, %v1281
        %v1283 = vrot.slane %v1278, 4
        %v1285 = vshrl.u32 %v1089, 16
        %v1287 = vrot.slane %v1285, 7
        %v1288 = vshll.u32 %v1089, 16
        %v1290 = vor.u32 %v1287, %v1288
        %v1291 = vsel %vm1115, %v1283, %v1290
        %v1293 = vshrl.u32 %v1090, 16
        %v1295 = vrot.slane %v1293, 7
        %v1296 = vrot.slane %v1295, 4
        %v1298 = vshrl.u32 %v1091, 16
        %v1300 = vrot.slane %v1298, 7
        %v1301 = vshll.u32 %v1091, 16
        %v1303 = vor.u32 %v1300, %v1301
        %v1304 = vsel %vm1115, %v1296, %v1303
        %v1305 = vrot.slane %v1300, 4
        %v1307 = vshrl.u32 %v1092, 16
        %v1309 = vrot.slane %v1307, 7
        %v1310 = vshll.u32 %v1092, 16
        %v1312 = vor.u32 %v1309, %v1310
        %v1313 = vsel %vm1115, %v1305, %v1312
        %v1315 = vshrl.u32 %v1093, 16
        %v1317 = vrot.slane %v1315, 7
        %v1318 = vrot.slane %v1317, 4
        %v1320 = vshrl.u32 %v1094, 16
        %v1322 = vrot.slane %v1320, 7
        %v1323 = vshll.u32 %v1094, 16
        %v1325 = vor.u32 %v1322, %v1323
        %v1326 = vsel %vm1115, %v1318, %v1325
        %v1327 = vrot.slane %v1322, 4
        %v1329 = vshrl.u32 %v1095, 16
        %v1331 = vrot.slane %v1329, 7
        %v1332 = vshll.u32 %v1095, 16
        %v1334 = vor.u32 %v1331, %v1332
        %v1335 = vsel %vm1115, %v1327, %v1334
        %v1337 = vshrl.u32 %v1096, 16
        %v1339 = vrot.slane %v1337, 7
        %v1340 = vrot.slane %v1339, 4
        %v1342 = vshrl.u32 %v1097, 16
        %v1344 = vrot.slane %v1342, 7
        %v1345 = vshll.u32 %v1097, 16
        %v1347 = vor.u32 %v1344, %v1345
        %v1348 = vsel %vm1115, %v1340, %v1347
        %v1349 = vrot.slane %v1344, 4
        %v1351 = vshrl.u32 %v1098, 16
        %v1353 = vrot.slane %v1351, 7
        %v1354 = vshll.u32 %v1098, 16
        %v1356 = vor.u32 %v1353, %v1354
        %v1357 = vsel %vm1115, %v1349, %v1356
        %v1359 = vshrl.u32 %v1099, 16
        %v1361 = vrot.slane %v1359, 7
        %v1362 = vrot.slane %v1361, 4
        %v1364 = vshrl.u32 %v1100, 16
        %v1366 = vrot.slane %v1364, 7
        %v1367 = vshll.u32 %v1100, 16
        %v1369 = vor.u32 %v1366, %v1367
        %v1370 = vsel %vm1115, %v1362, %v1369
        %v1371 = vrot.slane %v1366, 4
        %v1373 = vshrl.u32 %v1101, 16
        %v1375 = vrot.slane %v1373, 7
        %v1376 = vshll.u32 %v1101, 16
        %v1378 = vor.u32 %v1375, %v1376
        %v1379 = vsel %vm1115, %v1371, %v1378
        %v1381 = vshrl.u32 %v1102, 16
        %v1383 = vrot.slane %v1381, 7
        %v1384 = vrot.slane %v1383, 4
        %v1386 = vshrl.u32 %v1103, 16
        %v1388 = vrot.slane %v1386, 7
        %v1389 = vshll.u32 %v1103, 16
        %v1391 = vor.u32 %v1388, %v1389
        %v1392 = vsel %vm1115, %v1384, %v1391
        %v1393 = vrot.slane %v1388, 4
        %v1395 = vshrl.u32 %v1104, 16
        %v1397 = vrot.slane %v1395, 7
        %v1398 = vshll.u32 %v1104, 16
        %v1400 = vor.u32 %v1397, %v1398
        %v1401 = vsel %vm1115, %v1393, %v1400
        %v1403 = vshrl.u32 %v1105, 16
        %v1405 = vrot.slane %v1403, 7
        %v1406 = vrot.slane %v1405, 4
        %v1408 = vshrl.u32 %v1106, 16
        %v1410 = vrot.slane %v1408, 7
        %v1411 = vshll.u32 %v1106, 16
        %v1413 = vor.u32 %v1410, %v1411
        %v1414 = vsel %vm1115, %v1406, %v1413
        %v1415 = vrot.slane %v1410, 4
        %v1417 = vshrl.u32 %v1107, 16
        %v1419 = vrot.slane %v1417, 7
        %v1420 = vshll.u32 %v1107, 16
        %v1422 = vor.u32 %v1419, %v1420
        %v1423 = vsel %vm1115, %v1415, %v1422
        %v1425 = vshrl.u32 %v1108, 16
        %v1427 = vrot.slane %v1425, 7
        %v1428 = vrot.slane %v1427, 4
        %v1430 = vshrl.u32 %v1109, 16
        %v1432 = vrot.slane %v1430, 7
        %v1433 = vshll.u32 %v1109, 16
        %v1435 = vor.u32 %v1432, %v1433
        %v1436 = vsel %vm1115, %v1428, %v1435
        %v1437 = vrot.slane %v1432, 4
        %v1439 = vshrl.u32 %v1110, 16
        %v1441 = vrot.slane %v1439, 7
        %v1442 = vshll.u32 %v1110, 16
        %v1444 = vor.u32 %v1441, %v1442
        %v1445 = vsel %vm1115, %v1437, %v1444
        %v1447 = vshrl.u32 %v1111, 16
        %v1449 = vrot.slane %v1447, 7
        %v1450 = vrot.slane %v1449, 4
        %v1452 = vshrl.u32 %v1112, 16
        %v1454 = vrot.slane %v1452, 7
        %v1455 = vshll.u32 %v1112, 16
        %v1457 = vor.u32 %v1454, %v1455
        %v1458 = vsel %vm1115, %v1450, %v1457
        %v1459 = vrot.slane %v1454, 4
        %v1461 = vshrl.u32 %v1113, 16
        %v1463 = vrot.slane %v1461, 7
        %v1464 = vshll.u32 %v1113, 16
        %v1466 = vor.u32 %v1463, %v1464
        %v1467 = vsel %vm1115, %v1459, %v1466
        %1500 = vst.msk [vmem:[#allocation3] sm:$0xf] %vm777, %v1128
        %1501 = vst.msk [vmem:[#allocation3 + $0xc] sm:$0xf] %vm777, %v1137
        %1502 = vst.msk [vmem:[#allocation3 + $0x18] sm:$0xf] %vm777, %v1150
        %1503 = vst.msk [vmem:[#allocation3 + $0x24] sm:$0xf] %vm777, %v1159
        %1504 = vst.msk [vmem:[#allocation3 + $0x30] sm:$0xf] %vm777, %v1172
        %1505 = vst.msk [vmem:[#allocation3 + $0x3c] sm:$0xf] %vm777, %v1181
        %1506 = vst.msk [vmem:[#allocation3 + $0x48] sm:$0xf] %vm777, %v1194
        %1507 = vst.msk [vmem:[#allocation3 + $0x54] sm:$0xf] %vm777, %v1203
        %1508 = vst.msk [vmem:[#allocation3 + $0x60] sm:$0xf] %vm777, %v1216
        %1509 = vst.msk [vmem:[#allocation3 + $0x6c] sm:$0xf] %vm777, %v1225
        %1510 = vst.msk [vmem:[#allocation3 + $0x78] sm:$0xf] %vm777, %v1238
        %1511 = vst.msk [vmem:[#allocation3 + $0x84] sm:$0xf] %vm777, %v1247
        %1512 = vst.msk [vmem:[#allocation3 + $0x90] sm:$0xf] %vm777, %v1260
        %1513 = vst.msk [vmem:[#allocation3 + $0x9c] sm:$0xf] %vm777, %v1269
        %1514 = vst.msk [vmem:[#allocation3 + $0xa8] sm:$0xf] %vm777, %v1282
        %1515 = vst.msk [vmem:[#allocation3 + $0xb4] sm:$0xf] %vm777, %v1291
        %1516 = vst.msk [vmem:[#allocation3 + $0xc0] sm:$0xf] %vm777, %v1304
        %1517 = vst.msk [vmem:[#allocation3 + $0xcc] sm:$0xf] %vm777, %v1313
        %1518 = vst.msk [vmem:[#allocation3 + $0xd8] sm:$0xf] %vm777, %v1326
        %1519 = vst.msk [vmem:[#allocation3 + $0xe4] sm:$0xf] %vm777, %v1335
        %1520 = vst.msk [vmem:[#allocation3 + $0xf0] sm:$0xf] %vm777, %v1348
        %1521 = vst.msk [vmem:[#allocation3 + $0xfc] sm:$0xf] %vm777, %v1357
        %1522 = vst.msk [vmem:[#allocation3 + $0x108] sm:$0xf] %vm777, %v1370
        %1523 = vst.msk [vmem:[#allocation3 + $0x114] sm:$0xf] %vm777, %v1379
        %1524 = vst.msk [vmem:[#allocation3 + $0x120] sm:$0xf] %vm777, %v1392
        %1525 = vst.msk [vmem:[#allocation3 + $0x12c] sm:$0xf] %vm777, %v1401
        %1526 = vst.msk [vmem:[#allocation3 + $0x138] sm:$0xf] %vm777, %v1414
        %1527 = vst.msk [vmem:[#allocation3 + $0x144] sm:$0xf] %vm777, %v1423
        %1528 = vst.msk [vmem:[#allocation3 + $0x150] sm:$0xf] %vm777, %v1436
        %1529 = vst.msk [vmem:[#allocation3 + $0x15c] sm:$0xf] %vm777, %v1445
        %1530 = vst.msk [vmem:[#allocation3 + $0x168] sm:$0xf] %vm777, %v1458
        %1531 = vst.msk [vmem:[#allocation3 + $0x174] sm:$0xf] %vm777, %v1467
        %v1532 = vld [vmem:[#allocation2 + $0x8] sm:$0xf]
        %v1533 = vld [vmem:[#allocation2 + $0xc] sm:$0xf]
        %v1534 = vld [vmem:[#allocation2 + $0x20] sm:$0xf]
        %v1535 = vld [vmem:[#allocation2 + $0x24] sm:$0xf]
        %v1536 = vld [vmem:[#allocation2 + $0x38] sm:$0xf]
        %v1537 = vld [vmem:[#allocation2 + $0x3c] sm:$0xf]
        %v1538 = vld [vmem:[#allocation2 + $0x50] sm:$0xf]
        %v1539 = vld [vmem:[#allocation2 + $0x54] sm:$0xf]
        %v1540 = vld [vmem:[#allocation2 + $0x68] sm:$0xf]
        %v1541 = vld [vmem:[#allocation2 + $0x6c] sm:$0xf]
        %v1542 = vld [vmem:[#allocation2 + $0x80] sm:$0xf]
        %v1543 = vld [vmem:[#allocation2 + $0x84] sm:$0xf]
        %v1544 = vld [vmem:[#allocation2 + $0x98] sm:$0xf]
        %v1545 = vld [vmem:[#allocation2 + $0x9c] sm:$0xf]
        %v1546 = vld [vmem:[#allocation2 + $0xb0] sm:$0xf]
        %v1547 = vld [vmem:[#allocation2 + $0xb4] sm:$0xf]
        %v1548 = vld [vmem:[#allocation2 + $0xc8] sm:$0xf]
        %v1549 = vld [vmem:[#allocation2 + $0xcc] sm:$0xf]
        %v1550 = vld [vmem:[#allocation2 + $0xe0] sm:$0xf]
        %v1551 = vld [vmem:[#allocation2 + $0xe4] sm:$0xf]
        %v1552 = vld [vmem:[#allocation2 + $0xf8] sm:$0xf]
        %v1553 = vld [vmem:[#allocation2 + $0xfc] sm:$0xf]
        %v1554 = vld [vmem:[#allocation2 + $0x110] sm:$0xf]
        %v1555 = vld [vmem:[#allocation2 + $0x114] sm:$0xf]
        %v1556 = vld [vmem:[#allocation2 + $0x128] sm:$0xf]
        %v1557 = vld [vmem:[#allocation2 + $0x12c] sm:$0xf]
        %v1558 = vld [vmem:[#allocation2 + $0x140] sm:$0xf]
        %v1559 = vld [vmem:[#allocation2 + $0x144] sm:$0xf]
        %v1560 = vld [vmem:[#allocation2 + $0x158] sm:$0xf]
        %v1561 = vld [vmem:[#allocation2 + $0x15c] sm:$0xf]
        %v1562 = vld [vmem:[#allocation2 + $0x170] sm:$0xf]
        %v1563 = vld [vmem:[#allocation2 + $0x174] sm:$0xf]
        %1596 = vrot.lane.b32.xlu0 %v1532, 32
        %v1597 = vpop.permute.xlu0 %1596
        %1598 = vrot.lane.b32.xlu0 %v1533, 32
        %v1599 = vpop.permute.xlu0 %1598
        %1600 = vrot.lane.b32.xlu0 %v1534, 32
        %v1601 = vpop.permute.xlu0 %1600
        %1602 = vrot.lane.b32.xlu0 %v1535, 32
        %v1603 = vpop.permute.xlu0 %1602
        %1604 = vrot.lane.b32.xlu0 %v1536, 32
        %v1605 = vpop.permute.xlu0 %1604
        %1606 = vrot.lane.b32.xlu0 %v1537, 32
        %v1607 = vpop.permute.xlu0 %1606
        %1608 = vrot.lane.b32.xlu0 %v1538, 32
        %v1609 = vpop.permute.xlu0 %1608
        %1610 = vrot.lane.b32.xlu0 %v1539, 32
        %v1611 = vpop.permute.xlu0 %1610
        %1612 = vrot.lane.b32.xlu0 %v1540, 32
        %v1613 = vpop.permute.xlu0 %1612
        %1614 = vrot.lane.b32.xlu0 %v1541, 32
        %v1615 = vpop.permute.xlu0 %1614
        %1616 = vrot.lane.b32.xlu0 %v1542, 32
        %v1617 = vpop.permute.xlu0 %1616
        %1618 = vrot.lane.b32.xlu0 %v1543, 32
        %v1619 = vpop.permute.xlu0 %1618
        %1620 = vrot.lane.b32.xlu0 %v1544, 32
        %v1621 = vpop.permute.xlu0 %1620
        %1622 = vrot.lane.b32.xlu0 %v1545, 32
        %v1623 = vpop.permute.xlu0 %1622
        %1624 = vrot.lane.b32.xlu0 %v1546, 32
        %v1625 = vpop.permute.xlu0 %1624
        %1626 = vrot.lane.b32.xlu0 %v1547, 32
        %v1627 = vpop.permute.xlu0 %1626
        %1628 = vrot.lane.b32.xlu0 %v1548, 32
        %v1629 = vpop.permute.xlu0 %1628
        %1630 = vrot.lane.b32.xlu0 %v1549, 32
        %v1631 = vpop.permute.xlu0 %1630
        %1632 = vrot.lane.b32.xlu0 %v1550, 32
        %v1633 = vpop.permute.xlu0 %1632
        %1634 = vrot.lane.b32.xlu0 %v1551, 32
        %v1635 = vpop.permute.xlu0 %1634
        %1636 = vrot.lane.b32.xlu0 %v1552, 32
        %v1637 = vpop.permute.xlu0 %1636
        %1638 = vrot.lane.b32.xlu0 %v1553, 32
        %v1639 = vpop.permute.xlu0 %1638
        %1640 = vrot.lane.b32.xlu0 %v1554, 32
        %v1641 = vpop.permute.xlu0 %1640
        %1642 = vrot.lane.b32.xlu0 %v1555, 32
        %v1643 = vpop.permute.xlu0 %1642
        %1644 = vrot.lane.b32.xlu0 %v1556, 32
        %v1645 = vpop.permute.xlu0 %1644
        %1646 = vrot.lane.b32.xlu0 %v1557, 32
        %v1647 = vpop.permute.xlu0 %1646
        %1648 = vrot.lane.b32.xlu0 %v1558, 32
        %v1649 = vpop.permute.xlu0 %1648
        %1650 = vrot.lane.b32.xlu0 %v1559, 32
        %v1651 = vpop.permute.xlu0 %1650
        %1652 = vrot.lane.b32.xlu0 %v1560, 32
        %v1653 = vpop.permute.xlu0 %1652
        %1654 = vrot.lane.b32.xlu0 %v1561, 32
        %v1655 = vpop.permute.xlu0 %1654
        %1656 = vrot.lane.b32.xlu0 %v1562, 32
        %v1657 = vpop.permute.xlu0 %1656
        %1658 = vrot.lane.b32.xlu0 %v1563, 32
        %v1659 = vpop.permute.xlu0 %1658
        %vm1692 = vcmask 519424
        %1693 = vst.msk [vmem:[#allocation3] sm:$0xf] %vm1692, %v1597
        %1694 = vst.msk [vmem:[#allocation3 + $0xc] sm:$0xf] %vm1692, %v1599
        %1695 = vst.msk [vmem:[#allocation3 + $0x18] sm:$0xf] %vm1692, %v1601
        %1696 = vst.msk [vmem:[#allocation3 + $0x24] sm:$0xf] %vm1692, %v1603
        %1697 = vst.msk [vmem:[#allocation3 + $0x30] sm:$0xf] %vm1692, %v1605
        %1698 = vst.msk [vmem:[#allocation3 + $0x3c] sm:$0xf] %vm1692, %v1607
        %1699 = vst.msk [vmem:[#allocation3 + $0x48] sm:$0xf] %vm1692, %v1609
        %1700 = vst.msk [vmem:[#allocation3 + $0x54] sm:$0xf] %vm1692, %v1611
        %1701 = vst.msk [vmem:[#allocation3 + $0x60] sm:$0xf] %vm1692, %v1613
        %1702 = vst.msk [vmem:[#allocation3 + $0x6c] sm:$0xf] %vm1692, %v1615
        %1703 = vst.msk [vmem:[#allocation3 + $0x78] sm:$0xf] %vm1692, %v1617
        %1704 = vst.msk [vmem:[#allocation3 + $0x84] sm:$0xf] %vm1692, %v1619
        %1705 = vst.msk [vmem:[#allocation3 + $0x90] sm:$0xf] %vm1692, %v1621
        %1706 = vst.msk [vmem:[#allocation3 + $0x9c] sm:$0xf] %vm1692, %v1623
        %1707 = vst.msk [vmem:[#allocation3 + $0xa8] sm:$0xf] %vm1692, %v1625
        %1708 = vst.msk [vmem:[#allocation3 + $0xb4] sm:$0xf] %vm1692, %v1627
        %1709 = vst.msk [vmem:[#allocation3 + $0xc0] sm:$0xf] %vm1692, %v1629
        %1710 = vst.msk [vmem:[#allocation3 + $0xcc] sm:$0xf] %vm1692, %v1631
        %1711 = vst.msk [vmem:[#allocation3 + $0xd8] sm:$0xf] %vm1692, %v1633
        %1712 = vst.msk [vmem:[#allocation3 + $0xe4] sm:$0xf] %vm1692, %v1635
        %1713 = vst.msk [vmem:[#allocation3 + $0xf0] sm:$0xf] %vm1692, %v1637
        %1714 = vst.msk [vmem:[#allocation3 + $0xfc] sm:$0xf] %vm1692, %v1639
        %1715 = vst.msk [vmem:[#allocation3 + $0x108] sm:$0xf] %vm1692, %v1641
        %1716 = vst.msk [vmem:[#allocation3 + $0x114] sm:$0xf] %vm1692, %v1643
        %1717 = vst.msk [vmem:[#allocation3 + $0x120] sm:$0xf] %vm1692, %v1645
        %1718 = vst.msk [vmem:[#allocation3 + $0x12c] sm:$0xf] %vm1692, %v1647
        %1719 = vst.msk [vmem:[#allocation3 + $0x138] sm:$0xf] %vm1692, %v1649
        %1720 = vst.msk [vmem:[#allocation3 + $0x144] sm:$0xf] %vm1692, %v1651
        %1721 = vst.msk [vmem:[#allocation3 + $0x150] sm:$0xf] %vm1692, %v1653
        %1722 = vst.msk [vmem:[#allocation3 + $0x15c] sm:$0xf] %vm1692, %v1655
        %1723 = vst.msk [vmem:[#allocation3 + $0x168] sm:$0xf] %vm1692, %v1657
        %1724 = vst.msk [vmem:[#allocation3 + $0x174] sm:$0xf] %vm1692, %v1659
        %v1725 = vld [vmem:[#allocation2 + $0x8] sm:$0xf]
        %v1726 = vld [vmem:[#allocation2 + $0xc] sm:$0xf]
        %v1727 = vld [vmem:[#allocation2 + $0x10] sm:$0x1]
        %v1728 = vld [vmem:[#allocation2 + $0x20] sm:$0xf]
        %v1729 = vld [vmem:[#allocation2 + $0x24] sm:$0xf]
        %v1730 = vld [vmem:[#allocation2 + $0x28] sm:$0x1]
        %v1731 = vld [vmem:[#allocation2 + $0x38] sm:$0xf]
        %v1732 = vld [vmem:[#allocation2 + $0x3c] sm:$0xf]
        %v1733 = vld [vmem:[#allocation2 + $0x40] sm:$0x1]
        %v1734 = vld [vmem:[#allocation2 + $0x50] sm:$0xf]
        %v1735 = vld [vmem:[#allocation2 + $0x54] sm:$0xf]
        %v1736 = vld [vmem:[#allocation2 + $0x58] sm:$0x1]
        %v1737 = vld [vmem:[#allocation2 + $0x68] sm:$0xf]
        %v1738 = vld [vmem:[#allocation2 + $0x6c] sm:$0xf]
        %v1739 = vld [vmem:[#allocation2 + $0x70] sm:$0x1]
        %v1740 = vld [vmem:[#allocation2 + $0x80] sm:$0xf]
        %v1741 = vld [vmem:[#allocation2 + $0x84] sm:$0xf]
        %v1742 = vld [vmem:[#allocation2 + $0x88] sm:$0x1]
        %v1743 = vld [vmem:[#allocation2 + $0x98] sm:$0xf]
        %v1744 = vld [vmem:[#allocation2 + $0x9c] sm:$0xf]
        %v1745 = vld [vmem:[#allocation2 + $0xa0] sm:$0x1]
        %v1746 = vld [vmem:[#allocation2 + $0xb0] sm:$0xf]
        %v1747 = vld [vmem:[#allocation2 + $0xb4] sm:$0xf]
        %v1748 = vld [vmem:[#allocation2 + $0xb8] sm:$0x1]
        %v1749 = vld [vmem:[#allocation2 + $0xc8] sm:$0xf]
        %v1750 = vld [vmem:[#allocation2 + $0xcc] sm:$0xf]
        %v1751 = vld [vmem:[#allocation2 + $0xd0] sm:$0x1]
        %v1752 = vld [vmem:[#allocation2 + $0xe0] sm:$0xf]
        %v1753 = vld [vmem:[#allocation2 + $0xe4] sm:$0xf]
        %v1754 = vld [vmem:[#allocation2 + $0xe8] sm:$0x1]
        %v1755 = vld [vmem:[#allocation2 + $0xf8] sm:$0xf]
        %v1756 = vld [vmem:[#allocation2 + $0xfc] sm:$0xf]
        %v1757 = vld [vmem:[#allocation2 + $0x100] sm:$0x1]
        %v1758 = vld [vmem:[#allocation2 + $0x110] sm:$0xf]
        %v1759 = vld [vmem:[#allocation2 + $0x114] sm:$0xf]
        %v1760 = vld [vmem:[#allocation2 + $0x118] sm:$0x1]
        %v1761 = vld [vmem:[#allocation2 + $0x128] sm:$0xf]
        %v1762 = vld [vmem:[#allocation2 + $0x12c] sm:$0xf]
        %v1763 = vld [vmem:[#allocation2 + $0x130] sm:$0x1]
        %v1764 = vld [vmem:[#allocation2 + $0x140] sm:$0xf]
        %v1765 = vld [vmem:[#allocation2 + $0x144] sm:$0xf]
        %v1766 = vld [vmem:[#allocation2 + $0x148] sm:$0x1]
        %v1767 = vld [vmem:[#allocation2 + $0x158] sm:$0xf]
        %v1768 = vld [vmem:[#allocation2 + $0x15c] sm:$0xf]
        %v1769 = vld [vmem:[#allocation2 + $0x160] sm:$0x1]
        %v1770 = vld [vmem:[#allocation2 + $0x170] sm:$0xf]
        %v1771 = vld [vmem:[#allocation2 + $0x174] sm:$0xf]
        %v1772 = vld [vmem:[#allocation2 + $0x178] sm:$0x1]
        %vm1773 = vsmask.f32 3328
        %vm1774 = vsmask.f32 7440
        %vm1775 = vmor %vm1773, %vm1774
        %v1777 = vshrl.u32 %v1725, 16
        %v1779 = vrot.slane %v1777, 4
        %v1780 = vshll.u32 %v1725, 16
        %v1782 = vrot.slane %v1780, 5
        %v1783 = vor.u32 %v1779, %v1782
        %v1784 = vrot.slane %v1783, 4
        %v1786 = vshll.u32 %v1726, 16
        %v1788 = vrot.slane %v1786, 5
        %v1789 = vsel %vm1775, %v1784, %v1788
        %v1790 = vshrl.u32 %v1726, 16
        %v1792 = vrot.slane %v1790, 4
        %v1793 = vor.u32 %v1792, %v1788
        %v1794 = vrot.slane %v1793, 4
        %v1796 = vshll.u32 %v1727, 16
        %v1798 = vrot.slane %v1796, 5
        %v1799 = vsel %vm1775, %v1794, %v1798
        %v1801 = vshrl.u32 %v1728, 16
        %v1803 = vrot.slane %v1801, 4
        %v1804 = vshll.u32 %v1728, 16
        %v1806 = vrot.slane %v1804, 5
        %v1807 = vor.u32 %v1803, %v1806
        %v1808 = vrot.slane %v1807, 4
        %v1810 = vshll.u32 %v1729, 16
        %v1812 = vrot.slane %v1810, 5
        %v1813 = vsel %vm1775, %v1808, %v1812
        %v1814 = vshrl.u32 %v1729, 16
        %v1816 = vrot.slane %v1814, 4
        %v1817 = vor.u32 %v1816, %v1812
        %v1818 = vrot.slane %v1817, 4
        %v1820 = vshll.u32 %v1730, 16
        %v1822 = vrot.slane %v1820, 5
        %v1823 = vsel %vm1775, %v1818, %v1822
        %v1825 = vshrl.u32 %v1731, 16
        %v1827 = vrot.slane %v1825, 4
        %v1828 = vshll.u32 %v1731, 16
        %v1830 = vrot.slane %v1828, 5
        %v1831 = vor.u32 %v1827, %v1830
        %v1832 = vrot.slane %v1831, 4
        %v1834 = vshll.u32 %v1732, 16
        %v1836 = vrot.slane %v1834, 5
        %v1837 = vsel %vm1775, %v1832, %v1836
        %v1838 = vshrl.u32 %v1732, 16
        %v1840 = vrot.slane %v1838, 4
        %v1841 = vor.u32 %v1840, %v1836
        %v1842 = vrot.slane %v1841, 4
        %v1844 = vshll.u32 %v1733, 16
        %v1846 = vrot.slane %v1844, 5
        %v1847 = vsel %vm1775, %v1842, %v1846
        %v1849 = vshrl.u32 %v1734, 16
        %v1851 = vrot.slane %v1849, 4
        %v1852 = vshll.u32 %v1734, 16
        %v1854 = vrot.slane %v1852, 5
        %v1855 = vor.u32 %v1851, %v1854
        %v1856 = vrot.slane %v1855, 4
        %v1858 = vshll.u32 %v1735, 16
        %v1860 = vrot.slane %v1858, 5
        %v1861 = vsel %vm1775, %v1856, %v1860
        %v1862 = vshrl.u32 %v1735, 16
        %v1864 = vrot.slane %v1862, 4
        %v1865 = vor.u32 %v1864, %v1860
        %v1866 = vrot.slane %v1865, 4
        %v1868 = vshll.u32 %v1736, 16
        %v1870 = vrot.slane %v1868, 5
        %v1871 = vsel %vm1775, %v1866, %v1870
        %v1873 = vshrl.u32 %v1737, 16
        %v1875 = vrot.slane %v1873, 4
        %v1876 = vshll.u32 %v1737, 16
        %v1878 = vrot.slane %v1876, 5
        %v1879 = vor.u32 %v1875, %v1878
        %v1880 = vrot.slane %v1879, 4
        %v1882 = vshll.u32 %v1738, 16
        %v1884 = vrot.slane %v1882, 5
        %v1885 = vsel %vm1775, %v1880, %v1884
        %v1886 = vshrl.u32 %v1738, 16
        %v1888 = vrot.slane %v1886, 4
        %v1889 = vor.u32 %v1888, %v1884
        %v1890 = vrot.slane %v1889, 4
        %v1892 = vshll.u32 %v1739, 16
        %v1894 = vrot.slane %v1892, 5
        %v1895 = vsel %vm1775, %v1890, %v1894
        %v1897 = vshrl.u32 %v1740, 16
        %v1899 = vrot.slane %v1897, 4
        %v1900 = vshll.u32 %v1740, 16
        %v1902 = vrot.slane %v1900, 5
        %v1903 = vor.u32 %v1899, %v1902
        %v1904 = vrot.slane %v1903, 4
        %v1906 = vshll.u32 %v1741, 16
        %v1908 = vrot.slane %v1906, 5
        %v1909 = vsel %vm1775, %v1904, %v1908
        %v1910 = vshrl.u32 %v1741, 16
        %v1912 = vrot.slane %v1910, 4
        %v1913 = vor.u32 %v1912, %v1908
        %v1914 = vrot.slane %v1913, 4
        %v1916 = vshll.u32 %v1742, 16
        %v1918 = vrot.slane %v1916, 5
        %v1919 = vsel %vm1775, %v1914, %v1918
        %v1921 = vshrl.u32 %v1743, 16
        %v1923 = vrot.slane %v1921, 4
        %v1924 = vshll.u32 %v1743, 16
        %v1926 = vrot.slane %v1924, 5
        %v1927 = vor.u32 %v1923, %v1926
        %v1928 = vrot.slane %v1927, 4
        %v1930 = vshll.u32 %v1744, 16
        %v1932 = vrot.slane %v1930, 5
        %v1933 = vsel %vm1775, %v1928, %v1932
        %v1934 = vshrl.u32 %v1744, 16
        %v1936 = vrot.slane %v1934, 4
        %v1937 = vor.u32 %v1936, %v1932
        %v1938 = vrot.slane %v1937, 4
        %v1940 = vshll.u32 %v1745, 16
        %v1942 = vrot.slane %v1940, 5
        %v1943 = vsel %vm1775, %v1938, %v1942
        %v1945 = vshrl.u32 %v1746, 16
        %v1947 = vrot.slane %v1945, 4
        %v1948 = vshll.u32 %v1746, 16
        %v1950 = vrot.slane %v1948, 5
        %v1951 = vor.u32 %v1947, %v1950
        %v1952 = vrot.slane %v1951, 4
        %v1954 = vshll.u32 %v1747, 16
        %v1956 = vrot.slane %v1954, 5
        %v1957 = vsel %vm1775, %v1952, %v1956
        %v1958 = vshrl.u32 %v1747, 16
        %v1960 = vrot.slane %v1958, 4
        %v1961 = vor.u32 %v1960, %v1956
        %v1962 = vrot.slane %v1961, 4
        %v1964 = vshll.u32 %v1748, 16
        %v1966 = vrot.slane %v1964, 5
        %v1967 = vsel %vm1775, %v1962, %v1966
        %v1969 = vshrl.u32 %v1749, 16
        %v1971 = vrot.slane %v1969, 4
        %v1972 = vshll.u32 %v1749, 16
        %v1974 = vrot.slane %v1972, 5
        %v1975 = vor.u32 %v1971, %v1974
        %v1976 = vrot.slane %v1975, 4
        %v1978 = vshll.u32 %v1750, 16
        %v1980 = vrot.slane %v1978, 5
        %v1981 = vsel %vm1775, %v1976, %v1980
        %v1982 = vshrl.u32 %v1750, 16
        %v1984 = vrot.slane %v1982, 4
        %v1985 = vor.u32 %v1984, %v1980
        %v1986 = vrot.slane %v1985, 4
        %v1988 = vshll.u32 %v1751, 16
        %v1990 = vrot.slane %v1988, 5
        %v1991 = vsel %vm1775, %v1986, %v1990
        %v1993 = vshrl.u32 %v1752, 16
        %v1995 = vrot.slane %v1993, 4
        %v1996 = vshll.u32 %v1752, 16
        %v1998 = vrot.slane %v1996, 5
        %v1999 = vor.u32 %v1995, %v1998
        %v2000 = vrot.slane %v1999, 4
        %v2002 = vshll.u32 %v1753, 16
        %v2004 = vrot.slane %v2002, 5
        %v2005 = vsel %vm1775, %v2000, %v2004
        %v2006 = vshrl.u32 %v1753, 16
        %v2008 = vrot.slane %v2006, 4
        %v2009 = vor.u32 %v2008, %v2004
        %v2010 = vrot.slane %v2009, 4
        %v2012 = vshll.u32 %v1754, 16
        %v2014 = vrot.slane %v2012, 5
        %v2015 = vsel %vm1775, %v2010, %v2014
        %v2017 = vshrl.u32 %v1755, 16
        %v2019 = vrot.slane %v2017, 4
        %v2020 = vshll.u32 %v1755, 16
        %v2022 = vrot.slane %v2020, 5
        %v2023 = vor.u32 %v2019, %v2022
        %v2024 = vrot.slane %v2023, 4
        %v2026 = vshll.u32 %v1756, 16
        %v2028 = vrot.slane %v2026, 5
        %v2029 = vsel %vm1775, %v2024, %v2028
        %v2030 = vshrl.u32 %v1756, 16
        %v2032 = vrot.slane %v2030, 4
        %v2033 = vor.u32 %v2032, %v2028
        %v2034 = vrot.slane %v2033, 4
        %v2036 = vshll.u32 %v1757, 16
        %v2038 = vrot.slane %v2036, 5
        %v2039 = vsel %vm1775, %v2034, %v2038
        %v2041 = vshrl.u32 %v1758, 16
        %v2043 = vrot.slane %v2041, 4
        %v2044 = vshll.u32 %v1758, 16
        %v2046 = vrot.slane %v2044, 5
        %v2047 = vor.u32 %v2043, %v2046
        %v2048 = vrot.slane %v2047, 4
        %v2050 = vshll.u32 %v1759, 16
        %v2052 = vrot.slane %v2050, 5
        %v2053 = vsel %vm1775, %v2048, %v2052
        %v2054 = vshrl.u32 %v1759, 16
        %v2056 = vrot.slane %v2054, 4
        %v2057 = vor.u32 %v2056, %v2052
        %v2058 = vrot.slane %v2057, 4
        %v2060 = vshll.u32 %v1760, 16
        %v2062 = vrot.slane %v2060, 5
        %v2063 = vsel %vm1775, %v2058, %v2062
        %v2065 = vshrl.u32 %v1761, 16
        %v2067 = vrot.slane %v2065, 4
        %v2068 = vshll.u32 %v1761, 16
        %v2070 = vrot.slane %v2068, 5
        %v2071 = vor.u32 %v2067, %v2070
        %v2072 = vrot.slane %v2071, 4
        %v2074 = vshll.u32 %v1762, 16
        %v2076 = vrot.slane %v2074, 5
        %v2077 = vsel %vm1775, %v2072, %v2076
        %v2078 = vshrl.u32 %v1762, 16
        %v2080 = vrot.slane %v2078, 4
        %v2081 = vor.u32 %v2080, %v2076
        %v2082 = vrot.slane %v2081, 4
        %v2084 = vshll.u32 %v1763, 16
        %v2086 = vrot.slane %v2084, 5
        %v2087 = vsel %vm1775, %v2082, %v2086
        %v2089 = vshrl.u32 %v1764, 16
        %v2091 = vrot.slane %v2089, 4
        %v2092 = vshll.u32 %v1764, 16
        %v2094 = vrot.slane %v2092, 5
        %v2095 = vor.u32 %v2091, %v2094
        %v2096 = vrot.slane %v2095, 4
        %v2098 = vshll.u32 %v1765, 16
        %v2100 = vrot.slane %v2098, 5
        %v2101 = vsel %vm1775, %v2096, %v2100
        %v2102 = vshrl.u32 %v1765, 16
        %v2104 = vrot.slane %v2102, 4
        %v2105 = vor.u32 %v2104, %v2100
        %v2106 = vrot.slane %v2105, 4
        %v2108 = vshll.u32 %v1766, 16
        %v2110 = vrot.slane %v2108, 5
        %v2111 = vsel %vm1775, %v2106, %v2110
        %v2113 = vshrl.u32 %v1767, 16
        %v2115 = vrot.slane %v2113, 4
        %v2116 = vshll.u32 %v1767, 16
        %v2118 = vrot.slane %v2116, 5
        %v2119 = vor.u32 %v2115, %v2118
        %v2120 = vrot.slane %v2119, 4
        %v2122 = vshll.u32 %v1768, 16
        %v2124 = vrot.slane %v2122, 5
        %v2125 = vsel %vm1775, %v2120, %v2124
        %v2126 = vshrl.u32 %v1768, 16
        %v2128 = vrot.slane %v2126, 4
        %v2129 = vor.u32 %v2128, %v2124
        %v2130 = vrot.slane %v2129, 4
        %v2132 = vshll.u32 %v1769, 16
        %v2134 = vrot.slane %v2132, 5
        %v2135 = vsel %vm1775, %v2130, %v2134
        %v2137 = vshrl.u32 %v1770, 16
        %v2139 = vrot.slane %v2137, 4
        %v2140 = vshll.u32 %v1770, 16
        %v2142 = vrot.slane %v2140, 5
        %v2143 = vor.u32 %v2139, %v2142
        %v2144 = vrot.slane %v2143, 4
        %v2146 = vshll.u32 %v1771, 16
        %v2148 = vrot.slane %v2146, 5
        %v2149 = vsel %vm1775, %v2144, %v2148
        %v2150 = vshrl.u32 %v1771, 16
        %v2152 = vrot.slane %v2150, 4
        %v2153 = vor.u32 %v2152, %v2148
        %v2154 = vrot.slane %v2153, 4
        %v2156 = vshll.u32 %v1772, 16
        %v2158 = vrot.slane %v2156, 5
        %v2159 = vsel %vm1775, %v2154, %v2158
        %2160 = vrot.lane.b32.xlu0 %v1789, 64
        %v2161 = vpop.permute.xlu0 %2160
        %2162 = vrot.lane.b32.xlu0 %v1799, 64
        %v2163 = vpop.permute.xlu0 %2162
        %2164 = vrot.lane.b32.xlu0 %v1813, 64
        %v2165 = vpop.permute.xlu0 %2164
        %2166 = vrot.lane.b32.xlu0 %v1823, 64
        %v2167 = vpop.permute.xlu0 %2166
        %2168 = vrot.lane.b32.xlu0 %v1837, 64
        %v2169 = vpop.permute.xlu0 %2168
        %2170 = vrot.lane.b32.xlu0 %v1847, 64
        %v2171 = vpop.permute.xlu0 %2170
        %2172 = vrot.lane.b32.xlu0 %v1861, 64
        %v2173 = vpop.permute.xlu0 %2172
        %2174 = vrot.lane.b32.xlu0 %v1871, 64
        %v2175 = vpop.permute.xlu0 %2174
        %2176 = vrot.lane.b32.xlu0 %v1885, 64
        %v2177 = vpop.permute.xlu0 %2176
        %2178 = vrot.lane.b32.xlu0 %v1895, 64
        %v2179 = vpop.permute.xlu0 %2178
        %2180 = vrot.lane.b32.xlu0 %v1909, 64
        %v2181 = vpop.permute.xlu0 %2180
        %2182 = vrot.lane.b32.xlu0 %v1919, 64
        %v2183 = vpop.permute.xlu0 %2182
        %2184 = vrot.lane.b32.xlu0 %v1933, 64
        %v2185 = vpop.permute.xlu0 %2184
        %2186 = vrot.lane.b32.xlu0 %v1943, 64
        %v2187 = vpop.permute.xlu0 %2186
        %2188 = vrot.lane.b32.xlu0 %v1957, 64
        %v2189 = vpop.permute.xlu0 %2188
        %2190 = vrot.lane.b32.xlu0 %v1967, 64
        %v2191 = vpop.permute.xlu0 %2190
        %2192 = vrot.lane.b32.xlu0 %v1981, 64
        %v2193 = vpop.permute.xlu0 %2192
        %2194 = vrot.lane.b32.xlu0 %v1991, 64
        %v2195 = vpop.permute.xlu0 %2194
        %2196 = vrot.lane.b32.xlu0 %v2005, 64
        %v2197 = vpop.permute.xlu0 %2196
        %2198 = vrot.lane.b32.xlu0 %v2015, 64
        %v2199 = vpop.permute.xlu0 %2198
        %2200 = vrot.lane.b32.xlu0 %v2029, 64
        %v2201 = vpop.permute.xlu0 %2200
        %2202 = vrot.lane.b32.xlu0 %v2039, 64
        %v2203 = vpop.permute.xlu0 %2202
        %2204 = vrot.lane.b32.xlu0 %v2053, 64
        %v2205 = vpop.permute.xlu0 %2204
        %2206 = vrot.lane.b32.xlu0 %v2063, 64
        %v2207 = vpop.permute.xlu0 %2206
        %2208 = vrot.lane.b32.xlu0 %v2077, 64
        %v2209 = vpop.permute.xlu0 %2208
        %2210 = vrot.lane.b32.xlu0 %v2087, 64
        %v2211 = vpop.permute.xlu0 %2210
        %2212 = vrot.lane.b32.xlu0 %v2101, 64
        %v2213 = vpop.permute.xlu0 %2212
        %2214 = vrot.lane.b32.xlu0 %v2111, 64
        %v2215 = vpop.permute.xlu0 %2214
        %2216 = vrot.lane.b32.xlu0 %v2125, 64
        %v2217 = vpop.permute.xlu0 %2216
        %2218 = vrot.lane.b32.xlu0 %v2135, 64
        %v2219 = vpop.permute.xlu0 %2218
        %2220 = vrot.lane.b32.xlu0 %v2149, 64
        %v2221 = vpop.permute.xlu0 %2220
        %2222 = vrot.lane.b32.xlu0 %v2159, 64
        %v2223 = vpop.permute.xlu0 %2222
        %vm2256 = vcmask 781824
        %2257 = vst.msk [vmem:[#allocation3] sm:$0xf] %vm2256, %v2161
        %2258 = vst.msk [vmem:[#allocation3 + $0xc] sm:$0xf] %vm2256, %v2163
        %2259 = vst.msk [vmem:[#allocation3 + $0x18] sm:$0xf] %vm2256, %v2165
        %2260 = vst.msk [vmem:[#allocation3 + $0x24] sm:$0xf] %vm2256, %v2167
        %2261 = vst.msk [vmem:[#allocation3 + $0x30] sm:$0xf] %vm2256, %v2169
        %2262 = vst.msk [vmem:[#allocation3 + $0x3c] sm:$0xf] %vm2256, %v2171
        %2263 = vst.msk [vmem:[#allocation3 + $0x48] sm:$0xf] %vm2256, %v2173
        %2264 = vst.msk [vmem:[#allocation3 + $0x54] sm:$0xf] %vm2256, %v2175
        %2265 = vst.msk [vmem:[#allocation3 + $0x60] sm:$0xf] %vm2256, %v2177
        %2266 = vst.msk [vmem:[#allocation3 + $0x6c] sm:$0xf] %vm2256, %v2179
        %2267 = vst.msk [vmem:[#allocation3 + $0x78] sm:$0xf] %vm2256, %v2181
        %2268 = vst.msk [vmem:[#allocation3 + $0x84] sm:$0xf] %vm2256, %v2183
        %2269 = vst.msk [vmem:[#allocation3 + $0x90] sm:$0xf] %vm2256, %v2185
        %2270 = vst.msk [vmem:[#allocation3 + $0x9c] sm:$0xf] %vm2256, %v2187
        %2271 = vst.msk [vmem:[#allocation3 + $0xa8] sm:$0xf] %vm2256, %v2189
        %2272 = vst.msk [vmem:[#allocation3 + $0xb4] sm:$0xf] %vm2256, %v2191
        %2273 = vst.msk [vmem:[#allocation3 + $0xc0] sm:$0xf] %vm2256, %v2193
        %2274 = vst.msk [vmem:[#allocation3 + $0xcc] sm:$0xf] %vm2256, %v2195
        %2275 = vst.msk [vmem:[#allocation3 + $0xd8] sm:$0xf] %vm2256, %v2197
        %2276 = vst.msk [vmem:[#allocation3 + $0xe4] sm:$0xf] %vm2256, %v2199
        %2277 = vst.msk [vmem:[#allocation3 + $0xf0] sm:$0xf] %vm2256, %v2201
        %2278 = vst.msk [vmem:[#allocation3 + $0xfc] sm:$0xf] %vm2256, %v2203
        %2279 = vst.msk [vmem:[#allocation3 + $0x108] sm:$0xf] %vm2256, %v2205
        %2280 = vst.msk [vmem:[#allocation3 + $0x114] sm:$0xf] %vm2256, %v2207
        %2281 = vst.msk [vmem:[#allocation3 + $0x120] sm:$0xf] %vm2256, %v2209
        %2282 = vst.msk [vmem:[#allocation3 + $0x12c] sm:$0xf] %vm2256, %v2211
        %2283 = vst.msk [vmem:[#allocation3 + $0x138] sm:$0xf] %vm2256, %v2213
        %2284 = vst.msk [vmem:[#allocation3 + $0x144] sm:$0xf] %vm2256, %v2215
        %2285 = vst.msk [vmem:[#allocation3 + $0x150] sm:$0xf] %vm2256, %v2217
        %2286 = vst.msk [vmem:[#allocation3 + $0x15c] sm:$0xf] %vm2256, %v2219
        %2287 = vst.msk [vmem:[#allocation3 + $0x168] sm:$0xf] %vm2256, %v2221
        %2288 = vst.msk [vmem:[#allocation3 + $0x174] sm:$0xf] %vm2256, %v2223
        %v2289 = vld [vmem:[%s1033 + $0x4] sm:$0x8]
        %v2290 = vld [vmem:[%s1033 + $0x8] sm:$0xf]
        %v2291 = vld [vmem:[%s1033 + $0xc] sm:$0xf]
        %v2292 = vld [vmem:[%s1033 + $0x1c] sm:$0x8]
        %v2293 = vld [vmem:[%s1033 + $0x20] sm:$0xf]
        %v2294 = vld [vmem:[%s1033 + $0x24] sm:$0xf]
        %v2295 = vld [vmem:[%s1033 + $0x34] sm:$0x8]
        %v2296 = vld [vmem:[%s1033 + $0x38] sm:$0xf]
        %v2297 = vld [vmem:[%s1033 + $0x3c] sm:$0xf]
        %v2298 = vld [vmem:[%s1033 + $0x4c] sm:$0x8]
        %v2299 = vld [vmem:[%s1033 + $0x50] sm:$0xf]
        %v2300 = vld [vmem:[%s1033 + $0x54] sm:$0xf]
        %v2301 = vld [vmem:[%s1033 + $0x64] sm:$0x8]
        %v2302 = vld [vmem:[%s1033 + $0x68] sm:$0xf]
        %v2303 = vld [vmem:[%s1033 + $0x6c] sm:$0xf]
        %v2304 = vld [vmem:[%s1033 + $0x7c] sm:$0x8]
        %v2305 = vld [vmem:[%s1033 + $0x80] sm:$0xf]
        %v2306 = vld [vmem:[%s1033 + $0x84] sm:$0xf]
        %v2307 = vld [vmem:[%s1033 + $0x94] sm:$0x8]
        %v2308 = vld [vmem:[%s1033 + $0x98] sm:$0xf]
        %v2309 = vld [vmem:[%s1033 + $0x9c] sm:$0xf]
        %v2310 = vld [vmem:[%s1033 + $0xac] sm:$0x8]
        %v2311 = vld [vmem:[%s1033 + $0xb0] sm:$0xf]
        %v2312 = vld [vmem:[%s1033 + $0xb4] sm:$0xf]
        %v2313 = vld [vmem:[%s1033 + $0xc4] sm:$0x8]
        %v2314 = vld [vmem:[%s1033 + $0xc8] sm:$0xf]
        %v2315 = vld [vmem:[%s1033 + $0xcc] sm:$0xf]
        %v2316 = vld [vmem:[%s1033 + $0xdc] sm:$0x8]
        %v2317 = vld [vmem:[%s1033 + $0xe0] sm:$0xf]
        %v2318 = vld [vmem:[%s1033 + $0xe4] sm:$0xf]
        %v2319 = vld [vmem:[%s1033 + $0xf4] sm:$0x8]
        %v2320 = vld [vmem:[%s1033 + $0xf8] sm:$0xf]
        %v2321 = vld [vmem:[%s1033 + $0xfc] sm:$0xf]
        %v2322 = vld [vmem:[%s1033 + $0x10c] sm:$0x8]
        %v2323 = vld [vmem:[%s1033 + $0x110] sm:$0xf]
        %v2324 = vld [vmem:[%s1033 + $0x114] sm:$0xf]
        %v2325 = vld [vmem:[%s1033 + $0x124] sm:$0x8]
        %v2326 = vld [vmem:[%s1033 + $0x128] sm:$0xf]
        %v2327 = vld [vmem:[%s1033 + $0x12c] sm:$0xf]
        %v2328 = vld [vmem:[%s1033 + $0x13c] sm:$0x8]
        %v2329 = vld [vmem:[%s1033 + $0x140] sm:$0xf]
        %v2330 = vld [vmem:[%s1033 + $0x144] sm:$0xf]
        %v2331 = vld [vmem:[%s1033 + $0x154] sm:$0x8]
        %v2332 = vld [vmem:[%s1033 + $0x158] sm:$0xf]
        %v2333 = vld [vmem:[%s1033 + $0x15c] sm:$0xf]
        %v2334 = vld [vmem:[%s1033 + $0x16c] sm:$0x8]
        %v2335 = vld [vmem:[%s1033 + $0x170] sm:$0xf]
        %v2336 = vld [vmem:[%s1033 + $0x174] sm:$0xf]
        %v2338 = vshrl.u32 %v2289, 16
        %v2340 = vrot.slane %v2338, 7
        %v2341 = vrot.slane %v2340, 4
        %v2343 = vshrl.u32 %v2290, 16
        %v2345 = vrot.slane %v2343, 7
        %v2346 = vshll.u32 %v2290, 16
        %v2348 = vor.u32 %v2345, %v2346
        %v2349 = vsel %vm1115, %v2341, %v2348
        %v2350 = vrot.slane %v2345, 4
        %v2352 = vshrl.u32 %v2291, 16
        %v2354 = vrot.slane %v2352, 7
        %v2355 = vshll.u32 %v2291, 16
        %v2357 = vor.u32 %v2354, %v2355
        %v2358 = vsel %vm1115, %v2350, %v2357
        %v2360 = vshrl.u32 %v2292, 16
        %v2362 = vrot.slane %v2360, 7
        %v2363 = vrot.slane %v2362, 4
        %v2365 = vshrl.u32 %v2293, 16
        %v2367 = vrot.slane %v2365, 7
        %v2368 = vshll.u32 %v2293, 16
        %v2370 = vor.u32 %v2367, %v2368
        %v2371 = vsel %vm1115, %v2363, %v2370
        %v2372 = vrot.slane %v2367, 4
        %v2374 = vshrl.u32 %v2294, 16
        %v2376 = vrot.slane %v2374, 7
        %v2377 = vshll.u32 %v2294, 16
        %v2379 = vor.u32 %v2376, %v2377
        %v2380 = vsel %vm1115, %v2372, %v2379
        %v2382 = vshrl.u32 %v2295, 16
        %v2384 = vrot.slane %v2382, 7
        %v2385 = vrot.slane %v2384, 4
        %v2387 = vshrl.u32 %v2296, 16
        %v2389 = vrot.slane %v2387, 7
        %v2390 = vshll.u32 %v2296, 16
        %v2392 = vor.u32 %v2389, %v2390
        %v2393 = vsel %vm1115, %v2385, %v2392
        %v2394 = vrot.slane %v2389, 4
        %v2396 = vshrl.u32 %v2297, 16
        %v2398 = vrot.slane %v2396, 7
        %v2399 = vshll.u32 %v2297, 16
        %v2401 = vor.u32 %v2398, %v2399
        %v2402 = vsel %vm1115, %v2394, %v2401
        %v2404 = vshrl.u32 %v2298, 16
        %v2406 = vrot.slane %v2404, 7
        %v2407 = vrot.slane %v2406, 4
        %v2409 = vshrl.u32 %v2299, 16
        %v2411 = vrot.slane %v2409, 7
        %v2412 = vshll.u32 %v2299, 16
        %v2414 = vor.u32 %v2411, %v2412
        %v2415 = vsel %vm1115, %v2407, %v2414
        %v2416 = vrot.slane %v2411, 4
        %v2418 = vshrl.u32 %v2300, 16
        %v2420 = vrot.slane %v2418, 7
        %v2421 = vshll.u32 %v2300, 16
        %v2423 = vor.u32 %v2420, %v2421
        %v2424 = vsel %vm1115, %v2416, %v2423
        %v2426 = vshrl.u32 %v2301, 16
        %v2428 = vrot.slane %v2426, 7
        %v2429 = vrot.slane %v2428, 4
        %v2431 = vshrl.u32 %v2302, 16
        %v2433 = vrot.slane %v2431, 7
        %v2434 = vshll.u32 %v2302, 16
        %v2436 = vor.u32 %v2433, %v2434
        %v2437 = vsel %vm1115, %v2429, %v2436
        %v2438 = vrot.slane %v2433, 4
        %v2440 = vshrl.u32 %v2303, 16
        %v2442 = vrot.slane %v2440, 7
        %v2443 = vshll.u32 %v2303, 16
        %v2445 = vor.u32 %v2442, %v2443
        %v2446 = vsel %vm1115, %v2438, %v2445
        %v2448 = vshrl.u32 %v2304, 16
        %v2450 = vrot.slane %v2448, 7
        %v2451 = vrot.slane %v2450, 4
        %v2453 = vshrl.u32 %v2305, 16
        %v2455 = vrot.slane %v2453, 7
        %v2456 = vshll.u32 %v2305, 16
        %v2458 = vor.u32 %v2455, %v2456
        %v2459 = vsel %vm1115, %v2451, %v2458
        %v2460 = vrot.slane %v2455, 4
        %v2462 = vshrl.u32 %v2306, 16
        %v2464 = vrot.slane %v2462, 7
        %v2465 = vshll.u32 %v2306, 16
        %v2467 = vor.u32 %v2464, %v2465
        %v2468 = vsel %vm1115, %v2460, %v2467
        %v2470 = vshrl.u32 %v2307, 16
        %v2472 = vrot.slane %v2470, 7
        %v2473 = vrot.slane %v2472, 4
        %v2475 = vshrl.u32 %v2308, 16
        %v2477 = vrot.slane %v2475, 7
        %v2478 = vshll.u32 %v2308, 16
        %v2480 = vor.u32 %v2477, %v2478
        %v2481 = vsel %vm1115, %v2473, %v2480
        %v2482 = vrot.slane %v2477, 4
        %v2484 = vshrl.u32 %v2309, 16
        %v2486 = vrot.slane %v2484, 7
        %v2487 = vshll.u32 %v2309, 16
        %v2489 = vor.u32 %v2486, %v2487
        %v2490 = vsel %vm1115, %v2482, %v2489
        %v2492 = vshrl.u32 %v2310, 16
        %v2494 = vrot.slane %v2492, 7
        %v2495 = vrot.slane %v2494, 4
        %v2497 = vshrl.u32 %v2311, 16
        %v2499 = vrot.slane %v2497, 7
        %v2500 = vshll.u32 %v2311, 16
        %v2502 = vor.u32 %v2499, %v2500
        %v2503 = vsel %vm1115, %v2495, %v2502
        %v2504 = vrot.slane %v2499, 4
        %v2506 = vshrl.u32 %v2312, 16
        %v2508 = vrot.slane %v2506, 7
        %v2509 = vshll.u32 %v2312, 16
        %v2511 = vor.u32 %v2508, %v2509
        %v2512 = vsel %vm1115, %v2504, %v2511
        %v2514 = vshrl.u32 %v2313, 16
        %v2516 = vrot.slane %v2514, 7
        %v2517 = vrot.slane %v2516, 4
        %v2519 = vshrl.u32 %v2314, 16
        %v2521 = vrot.slane %v2519, 7
        %v2522 = vshll.u32 %v2314, 16
        %v2524 = vor.u32 %v2521, %v2522
        %v2525 = vsel %vm1115, %v2517, %v2524
        %v2526 = vrot.slane %v2521, 4
        %v2528 = vshrl.u32 %v2315, 16
        %v2530 = vrot.slane %v2528, 7
        %v2531 = vshll.u32 %v2315, 16
        %v2533 = vor.u32 %v2530, %v2531
        %v2534 = vsel %vm1115, %v2526, %v2533
        %v2536 = vshrl.u32 %v2316, 16
        %v2538 = vrot.slane %v2536, 7
        %v2539 = vrot.slane %v2538, 4
        %v2541 = vshrl.u32 %v2317, 16
        %v2543 = vrot.slane %v2541, 7
        %v2544 = vshll.u32 %v2317, 16
        %v2546 = vor.u32 %v2543, %v2544
        %v2547 = vsel %vm1115, %v2539, %v2546
        %v2548 = vrot.slane %v2543, 4
        %v2550 = vshrl.u32 %v2318, 16
        %v2552 = vrot.slane %v2550, 7
        %v2553 = vshll.u32 %v2318, 16
        %v2555 = vor.u32 %v2552, %v2553
        %v2556 = vsel %vm1115, %v2548, %v2555
        %v2558 = vshrl.u32 %v2319, 16
        %v2560 = vrot.slane %v2558, 7
        %v2561 = vrot.slane %v2560, 4
        %v2563 = vshrl.u32 %v2320, 16
        %v2565 = vrot.slane %v2563, 7
        %v2566 = vshll.u32 %v2320, 16
        %v2568 = vor.u32 %v2565, %v2566
        %v2569 = vsel %vm1115, %v2561, %v2568
        %v2570 = vrot.slane %v2565, 4
        %v2572 = vshrl.u32 %v2321, 16
        %v2574 = vrot.slane %v2572, 7
        %v2575 = vshll.u32 %v2321, 16
        %v2577 = vor.u32 %v2574, %v2575
        %v2578 = vsel %vm1115, %v2570, %v2577
        %v2580 = vshrl.u32 %v2322, 16
        %v2582 = vrot.slane %v2580, 7
        %v2583 = vrot.slane %v2582, 4
        %v2585 = vshrl.u32 %v2323, 16
        %v2587 = vrot.slane %v2585, 7
        %v2588 = vshll.u32 %v2323, 16
        %v2590 = vor.u32 %v2587, %v2588
        %v2591 = vsel %vm1115, %v2583, %v2590
        %v2592 = vrot.slane %v2587, 4
        %v2594 = vshrl.u32 %v2324, 16
        %v2596 = vrot.slane %v2594, 7
        %v2597 = vshll.u32 %v2324, 16
        %v2599 = vor.u32 %v2596, %v2597
        %v2600 = vsel %vm1115, %v2592, %v2599
        %v2602 = vshrl.u32 %v2325, 16
        %v2604 = vrot.slane %v2602, 7
        %v2605 = vrot.slane %v2604, 4
        %v2607 = vshrl.u32 %v2326, 16
        %v2609 = vrot.slane %v2607, 7
        %v2610 = vshll.u32 %v2326, 16
        %v2612 = vor.u32 %v2609, %v2610
        %v2613 = vsel %vm1115, %v2605, %v2612
        %v2614 = vrot.slane %v2609, 4
        %v2616 = vshrl.u32 %v2327, 16
        %v2618 = vrot.slane %v2616, 7
        %v2619 = vshll.u32 %v2327, 16
        %v2621 = vor.u32 %v2618, %v2619
        %v2622 = vsel %vm1115, %v2614, %v2621
        %v2624 = vshrl.u32 %v2328, 16
        %v2626 = vrot.slane %v2624, 7
        %v2627 = vrot.slane %v2626, 4
        %v2629 = vshrl.u32 %v2329, 16
        %v2631 = vrot.slane %v2629, 7
        %v2632 = vshll.u32 %v2329, 16
        %v2634 = vor.u32 %v2631, %v2632
        %v2635 = vsel %vm1115, %v2627, %v2634
        %v2636 = vrot.slane %v2631, 4
        %v2638 = vshrl.u32 %v2330, 16
        %v2640 = vrot.slane %v2638, 7
        %v2641 = vshll.u32 %v2330, 16
        %v2643 = vor.u32 %v2640, %v2641
        %v2644 = vsel %vm1115, %v2636, %v2643
        %v2646 = vshrl.u32 %v2331, 16
        %v2648 = vrot.slane %v2646, 7
        %v2649 = vrot.slane %v2648, 4
        %v2651 = vshrl.u32 %v2332, 16
        %v2653 = vrot.slane %v2651, 7
        %v2654 = vshll.u32 %v2332, 16
        %v2656 = vor.u32 %v2653, %v2654
        %v2657 = vsel %vm1115, %v2649, %v2656
        %v2658 = vrot.slane %v2653, 4
        %v2660 = vshrl.u32 %v2333, 16
        %v2662 = vrot.slane %v2660, 7
        %v2663 = vshll.u32 %v2333, 16
        %v2665 = vor.u32 %v2662, %v2663
        %v2666 = vsel %vm1115, %v2658, %v2665
        %v2668 = vshrl.u32 %v2334, 16
        %v2670 = vrot.slane %v2668, 7
        %v2671 = vrot.slane %v2670, 4
        %v2673 = vshrl.u32 %v2335, 16
        %v2675 = vrot.slane %v2673, 7
        %v2676 = vshll.u32 %v2335, 16
        %v2678 = vor.u32 %v2675, %v2676
        %v2679 = vsel %vm1115, %v2671, %v2678
        %v2680 = vrot.slane %v2675, 4
        %v2682 = vshrl.u32 %v2336, 16
        %v2684 = vrot.slane %v2682, 7
        %v2685 = vshll.u32 %v2336, 16
        %v2687 = vor.u32 %v2684, %v2685
        %v2688 = vsel %vm1115, %v2680, %v2687
        %2689 = vrot.lane.b32.xlu0 %v2349, 96
        %v2690 = vpop.permute.xlu0 %2689
        %2691 = vrot.lane.b32.xlu0 %v2358, 96
        %v2692 = vpop.permute.xlu0 %2691
        %2693 = vrot.lane.b32.xlu0 %v2371, 96
        %v2694 = vpop.permute.xlu0 %2693
        %2695 = vrot.lane.b32.xlu0 %v2380, 96
        %v2696 = vpop.permute.xlu0 %2695
        %2697 = vrot.lane.b32.xlu0 %v2393, 96
        %v2698 = vpop.permute.xlu0 %2697
        %2699 = vrot.lane.b32.xlu0 %v2402, 96
        %v2700 = vpop.permute.xlu0 %2699
        %2701 = vrot.lane.b32.xlu0 %v2415, 96
        %v2702 = vpop.permute.xlu0 %2701
        %2703 = vrot.lane.b32.xlu0 %v2424, 96
        %v2704 = vpop.permute.xlu0 %2703
        %2705 = vrot.lane.b32.xlu0 %v2437, 96
        %v2706 = vpop.permute.xlu0 %2705
        %2707 = vrot.lane.b32.xlu0 %v2446, 96
        %v2708 = vpop.permute.xlu0 %2707
        %2709 = vrot.lane.b32.xlu0 %v2459, 96
        %v2710 = vpop.permute.xlu0 %2709
        %2711 = vrot.lane.b32.xlu0 %v2468, 96
        %v2712 = vpop.permute.xlu0 %2711
        %2713 = vrot.lane.b32.xlu0 %v2481, 96
        %v2714 = vpop.permute.xlu0 %2713
        %2715 = vrot.lane.b32.xlu0 %v2490, 96
        %v2716 = vpop.permute.xlu0 %2715
        %2717 = vrot.lane.b32.xlu0 %v2503, 96
        %v2718 = vpop.permute.xlu0 %2717
        %2719 = vrot.lane.b32.xlu0 %v2512, 96
        %v2720 = vpop.permute.xlu0 %2719
        %2721 = vrot.lane.b32.xlu0 %v2525, 96
        %v2722 = vpop.permute.xlu0 %2721
        %2723 = vrot.lane.b32.xlu0 %v2534, 96
        %v2724 = vpop.permute.xlu0 %2723
        %2725 = vrot.lane.b32.xlu0 %v2547, 96
        %v2726 = vpop.permute.xlu0 %2725
        %2727 = vrot.lane.b32.xlu0 %v2556, 96
        %v2728 = vpop.permute.xlu0 %2727
        %2729 = vrot.lane.b32.xlu0 %v2569, 96
        %v2730 = vpop.permute.xlu0 %2729
        %2731 = vrot.lane.b32.xlu0 %v2578, 96
        %v2732 = vpop.permute.xlu0 %2731
        %2733 = vrot.lane.b32.xlu0 %v2591, 96
        %v2734 = vpop.permute.xlu0 %2733
        %2735 = vrot.lane.b32.xlu0 %v2600, 96
        %v2736 = vpop.permute.xlu0 %2735
        %2737 = vrot.lane.b32.xlu0 %v2613, 96
        %v2738 = vpop.permute.xlu0 %2737
        %2739 = vrot.lane.b32.xlu0 %v2622, 96
        %v2740 = vpop.permute.xlu0 %2739
        %2741 = vrot.lane.b32.xlu0 %v2635, 96
        %v2742 = vpop.permute.xlu0 %2741
        %2743 = vrot.lane.b32.xlu0 %v2644, 96
        %v2744 = vpop.permute.xlu0 %2743
        %2745 = vrot.lane.b32.xlu0 %v2657, 96
        %v2746 = vpop.permute.xlu0 %2745
        %2747 = vrot.lane.b32.xlu0 %v2666, 96
        %v2748 = vpop.permute.xlu0 %2747
        %2749 = vrot.lane.b32.xlu0 %v2679, 96
        %v2750 = vpop.permute.xlu0 %2749
        %2751 = vrot.lane.b32.xlu0 %v2688, 96
        %v2752 = vpop.permute.xlu0 %2751
        %vm2785 = vcmask 1044224
        %2786 = vst.msk [vmem:[#allocation3] sm:$0xf] %vm2785, %v2690
        %2787 = vst.msk [vmem:[#allocation3 + $0xc] sm:$0xf] %vm2785, %v2692
        %2788 = vst.msk [vmem:[#allocation3 + $0x18] sm:$0xf] %vm2785, %v2694
        %2789 = vst.msk [vmem:[#allocation3 + $0x24] sm:$0xf] %vm2785, %v2696
        %2790 = vst.msk [vmem:[#allocation3 + $0x30] sm:$0xf] %vm2785, %v2698
        %2791 = vst.msk [vmem:[#allocation3 + $0x3c] sm:$0xf] %vm2785, %v2700
        %2792 = vst.msk [vmem:[#allocation3 + $0x48] sm:$0xf] %vm2785, %v2702
        %2793 = vst.msk [vmem:[#allocation3 + $0x54] sm:$0xf] %vm2785, %v2704
        %2794 = vst.msk [vmem:[#allocation3 + $0x60] sm:$0xf] %vm2785, %v2706
        %2795 = vst.msk [vmem:[#allocation3 + $0x6c] sm:$0xf] %vm2785, %v2708
        %2796 = vst.msk [vmem:[#allocation3 + $0x78] sm:$0xf] %vm2785, %v2710
        %2797 = vst.msk [vmem:[#allocation3 + $0x84] sm:$0xf] %vm2785, %v2712
        %2798 = vst.msk [vmem:[#allocation3 + $0x90] sm:$0xf] %vm2785, %v2714
        %2799 = vst.msk [vmem:[#allocation3 + $0x9c] sm:$0xf] %vm2785, %v2716
        %2800 = vst.msk [vmem:[#allocation3 + $0xa8] sm:$0xf] %vm2785, %v2718
        %2801 = vst.msk [vmem:[#allocation3 + $0xb4] sm:$0xf] %vm2785, %v2720
        %2802 = vst.msk [vmem:[#allocation3 + $0xc0] sm:$0xf] %vm2785, %v2722
        %2803 = vst.msk [vmem:[#allocation3 + $0xcc] sm:$0xf] %vm2785, %v2724
        %2804 = vst.msk [vmem:[#allocation3 + $0xd8] sm:$0xf] %vm2785, %v2726
        %2805 = vst.msk [vmem:[#allocation3 + $0xe4] sm:$0xf] %vm2785, %v2728
        %2806 = vst.msk [vmem:[#allocation3 + $0xf0] sm:$0xf] %vm2785, %v2730
        %2807 = vst.msk [vmem:[#allocation3 + $0xfc] sm:$0xf] %vm2785, %v2732
        %2808 = vst.msk [vmem:[#allocation3 + $0x108] sm:$0xf] %vm2785, %v2734
        %2809 = vst.msk [vmem:[#allocation3 + $0x114] sm:$0xf] %vm2785, %v2736
        %2810 = vst.msk [vmem:[#allocation3 + $0x120] sm:$0xf] %vm2785, %v2738
        %2811 = vst.msk [vmem:[#allocation3 + $0x12c] sm:$0xf] %vm2785, %v2740
        %2812 = vst.msk [vmem:[#allocation3 + $0x138] sm:$0xf] %vm2785, %v2742
        %2813 = vst.msk [vmem:[#allocation3 + $0x144] sm:$0xf] %vm2785, %v2744
        %2814 = vst.msk [vmem:[#allocation3 + $0x150] sm:$0xf] %vm2785, %v2746
        %2815 = vst.msk [vmem:[#allocation3 + $0x15c] sm:$0xf] %vm2785, %v2748
        %2816 = vst.msk [vmem:[#allocation3 + $0x168] sm:$0xf] %vm2785, %v2750
        %2817 = vst.msk [vmem:[#allocation3 + $0x174] sm:$0xf] %vm2785, %v2752
        %v2818 = vld [vmem:[%s1033 + $0x8] sm:$0xf]
        %v2819 = vld [vmem:[%s1033 + $0xc] sm:$0xf]
        %v2820 = vld [vmem:[%s1033 + $0x20] sm:$0xf]
        %v2821 = vld [vmem:[%s1033 + $0x24] sm:$0xf]
        %v2822 = vld [vmem:[%s1033 + $0x38] sm:$0xf]
        %v2823 = vld [vmem:[%s1033 + $0x3c] sm:$0xf]
        %v2824 = vld [vmem:[%s1033 + $0x50] sm:$0xf]
        %v2825 = vld [vmem:[%s1033 + $0x54] sm:$0xf]
        %v2826 = vld [vmem:[%s1033 + $0x68] sm:$0xf]
        %v2827 = vld [vmem:[%s1033 + $0x6c] sm:$0xf]
        %v2828 = vld [vmem:[%s1033 + $0x80] sm:$0xf]
        %v2829 = vld [vmem:[%s1033 + $0x84] sm:$0xf]
        %v2830 = vld [vmem:[%s1033 + $0x98] sm:$0xf]
        %v2831 = vld [vmem:[%s1033 + $0x9c] sm:$0xf]
        %v2832 = vld [vmem:[%s1033 + $0xb0] sm:$0xf]
        %v2833 = vld [vmem:[%s1033 + $0xb4] sm:$0xf]
        %v2834 = vld [vmem:[%s1033 + $0xc8] sm:$0xf]
        %v2835 = vld [vmem:[%s1033 + $0xcc] sm:$0xf]
        %v2836 = vld [vmem:[%s1033 + $0xe0] sm:$0xf]
        %v2837 = vld [vmem:[%s1033 + $0xe4] sm:$0xf]
        %v2838 = vld [vmem:[%s1033 + $0xf8] sm:$0xf]
        %v2839 = vld [vmem:[%s1033 + $0xfc] sm:$0xf]
        %v2840 = vld [vmem:[%s1033 + $0x110] sm:$0xf]
        %v2841 = vld [vmem:[%s1033 + $0x114] sm:$0xf]
        %v2842 = vld [vmem:[%s1033 + $0x128] sm:$0xf]
        %v2843 = vld [vmem:[%s1033 + $0x12c] sm:$0xf]
        %v2844 = vld [vmem:[%s1033 + $0x140] sm:$0xf]
        %v2845 = vld [vmem:[%s1033 + $0x144] sm:$0xf]
        %v2846 = vld [vmem:[%s1033 + $0x158] sm:$0xf]
        %v2847 = vld [vmem:[%s1033 + $0x15c] sm:$0xf]
        %v2848 = vld [vmem:[%s1033 + $0x170] sm:$0xf]
        %v2849 = vld [vmem:[%s1033 + $0x174] sm:$0xf]
        %2850 = vst.msk [vmem:[#allocation3 + $0x4] sm:$0xf] %vm777, %v2818
        %2851 = vst.msk [vmem:[#allocation3 + $0x10] sm:$0xf] %vm777, %v2819
        %2852 = vst.msk [vmem:[#allocation3 + $0x1c] sm:$0xf] %vm777, %v2820
        %2853 = vst.msk [vmem:[#allocation3 + $0x28] sm:$0xf] %vm777, %v2821
        %2854 = vst.msk [vmem:[#allocation3 + $0x34] sm:$0xf] %vm777, %v2822
        %2855 = vst.msk [vmem:[#allocation3 + $0x40] sm:$0xf] %vm777, %v2823
        %2856 = vst.msk [vmem:[#allocation3 + $0x4c] sm:$0xf] %vm777, %v2824
        %2857 = vst.msk [vmem:[#allocation3 + $0x58] sm:$0xf] %vm777, %v2825
        %2858 = vst.msk [vmem:[#allocation3 + $0x64] sm:$0xf] %vm777, %v2826
        %2859 = vst.msk [vmem:[#allocation3 + $0x70] sm:$0xf] %vm777, %v2827
        %2860 = vst.msk [vmem:[#allocation3 + $0x7c] sm:$0xf] %vm777, %v2828
        %2861 = vst.msk [vmem:[#allocation3 + $0x88] sm:$0xf] %vm777, %v2829
        %2862 = vst.msk [vmem:[#allocation3 + $0x94] sm:$0xf] %vm777, %v2830
        %2863 = vst.msk [vmem:[#allocation3 + $0xa0] sm:$0xf] %vm777, %v2831
        %2864 = vst.msk [vmem:[#allocation3 + $0xac] sm:$0xf] %vm777, %v2832
        %2865 = vst.msk [vmem:[#allocation3 + $0xb8] sm:$0xf] %vm777, %v2833
        %2866 = vst.msk [vmem:[#allocation3 + $0xc4] sm:$0xf] %vm777, %v2834
        %2867 = vst.msk [vmem:[#allocation3 + $0xd0] sm:$0xf] %vm777, %v2835
        %2868 = vst.msk [vmem:[#allocation3 + $0xdc] sm:$0xf] %vm777, %v2836
        %2869 = vst.msk [vmem:[#allocation3 + $0xe8] sm:$0xf] %vm777, %v2837
        %2870 = vst.msk [vmem:[#allocation3 + $0xf4] sm:$0xf] %vm777, %v2838
        %2871 = vst.msk [vmem:[#allocation3 + $0x100] sm:$0xf] %vm777, %v2839
        %2872 = vst.msk [vmem:[#allocation3 + $0x10c] sm:$0xf] %vm777, %v2840
        %2873 = vst.msk [vmem:[#allocation3 + $0x118] sm:$0xf] %vm777, %v2841
        %2874 = vst.msk [vmem:[#allocation3 + $0x124] sm:$0xf] %vm777, %v2842
        %2875 = vst.msk [vmem:[#allocation3 + $0x130] sm:$0xf] %vm777, %v2843
        %2876 = vst.msk [vmem:[#allocation3 + $0x13c] sm:$0xf] %vm777, %v2844
        %2877 = vst.msk [vmem:[#allocation3 + $0x148] sm:$0xf] %vm777, %v2845
        %2878 = vst.msk [vmem:[#allocation3 + $0x154] sm:$0xf] %vm777, %v2846
        %2879 = vst.msk [vmem:[#allocation3 + $0x160] sm:$0xf] %vm777, %v2847
        %2880 = vst.msk [vmem:[#allocation3 + $0x16c] sm:$0xf] %vm777, %v2848
        %2881 = vst.msk [vmem:[#allocation3 + $0x178] sm:$0xf] %vm777, %v2849
        %v2882 = vld [vmem:[%s1033 + $0x8] sm:$0xf]
        %v2883 = vld [vmem:[%s1033 + $0xc] sm:$0xf]
        %v2884 = vld [vmem:[%s1033 + $0x10] sm:$0x1]
        %v2885 = vld [vmem:[%s1033 + $0x20] sm:$0xf]
        %v2886 = vld [vmem:[%s1033 + $0x24] sm:$0xf]
        %v2887 = vld [vmem:[%s1033 + $0x28] sm:$0x1]
        %v2888 = vld [vmem:[%s1033 + $0x38] sm:$0xf]
        %v2889 = vld [vmem:[%s1033 + $0x3c] sm:$0xf]
        %v2890 = vld [vmem:[%s1033 + $0x40] sm:$0x1]
        %v2891 = vld [vmem:[%s1033 + $0x50] sm:$0xf]
        %v2892 = vld [vmem:[%s1033 + $0x54] sm:$0xf]
        %v2893 = vld [vmem:[%s1033 + $0x58] sm:$0x1]
        %v2894 = vld [vmem:[%s1033 + $0x68] sm:$0xf]
        %v2895 = vld [vmem:[%s1033 + $0x6c] sm:$0xf]
        %v2896 = vld [vmem:[%s1033 + $0x70] sm:$0x1]
        %v2897 = vld [vmem:[%s1033 + $0x80] sm:$0xf]
        %v2898 = vld [vmem:[%s1033 + $0x84] sm:$0xf]
        %v2899 = vld [vmem:[%s1033 + $0x88] sm:$0x1]
        %v2900 = vld [vmem:[%s1033 + $0x98] sm:$0xf]
        %v2901 = vld [vmem:[%s1033 + $0x9c] sm:$0xf]
        %v2902 = vld [vmem:[%s1033 + $0xa0] sm:$0x1]
        %v2903 = vld [vmem:[%s1033 + $0xb0] sm:$0xf]
        %v2904 = vld [vmem:[%s1033 + $0xb4] sm:$0xf]
        %v2905 = vld [vmem:[%s1033 + $0xb8] sm:$0x1]
        %v2906 = vld [vmem:[%s1033 + $0xc8] sm:$0xf]
        %v2907 = vld [vmem:[%s1033 + $0xcc] sm:$0xf]
        %v2908 = vld [vmem:[%s1033 + $0xd0] sm:$0x1]
        %v2909 = vld [vmem:[%s1033 + $0xe0] sm:$0xf]
        %v2910 = vld [vmem:[%s1033 + $0xe4] sm:$0xf]
        %v2911 = vld [vmem:[%s1033 + $0xe8] sm:$0x1]
        %v2912 = vld [vmem:[%s1033 + $0xf8] sm:$0xf]
        %v2913 = vld [vmem:[%s1033 + $0xfc] sm:$0xf]
        %v2914 = vld [vmem:[%s1033 + $0x100] sm:$0x1]
        %v2915 = vld [vmem:[%s1033 + $0x110] sm:$0xf]
        %v2916 = vld [vmem:[%s1033 + $0x114] sm:$0xf]
        %v2917 = vld [vmem:[%s1033 + $0x118] sm:$0x1]
        %v2918 = vld [vmem:[%s1033 + $0x128] sm:$0xf]
        %v2919 = vld [vmem:[%s1033 + $0x12c] sm:$0xf]
        %v2920 = vld [vmem:[%s1033 + $0x130] sm:$0x1]
        %v2921 = vld [vmem:[%s1033 + $0x140] sm:$0xf]
        %v2922 = vld [vmem:[%s1033 + $0x144] sm:$0xf]
        %v2923 = vld [vmem:[%s1033 + $0x148] sm:$0x1]
        %v2924 = vld [vmem:[%s1033 + $0x158] sm:$0xf]
        %v2925 = vld [vmem:[%s1033 + $0x15c] sm:$0xf]
        %v2926 = vld [vmem:[%s1033 + $0x160] sm:$0x1]
        %v2927 = vld [vmem:[%s1033 + $0x170] sm:$0xf]
        %v2928 = vld [vmem:[%s1033 + $0x174] sm:$0xf]
        %v2929 = vld [vmem:[%s1033 + $0x178] sm:$0x1]
        %v2931 = vshrl.u32 %v2882, 16
        %v2933 = vrot.slane %v2931, 4
        %v2934 = vshll.u32 %v2882, 16
        %v2936 = vrot.slane %v2934, 5
        %v2937 = vor.u32 %v2933, %v2936
        %v2938 = vrot.slane %v2937, 4
        %v2940 = vshll.u32 %v2883, 16
        %v2942 = vrot.slane %v2940, 5
        %v2943 = vsel %vm1775, %v2938, %v2942
        %v2944 = vshrl.u32 %v2883, 16
        %v2946 = vrot.slane %v2944, 4
        %v2947 = vor.u32 %v2946, %v2942
        %v2948 = vrot.slane %v2947, 4
        %v2950 = vshll.u32 %v2884, 16
        %v2952 = vrot.slane %v2950, 5
        %v2953 = vsel %vm1775, %v2948, %v2952
        %v2955 = vshrl.u32 %v2885, 16
        %v2957 = vrot.slane %v2955, 4
        %v2958 = vshll.u32 %v2885, 16
        %v2960 = vrot.slane %v2958, 5
        %v2961 = vor.u32 %v2957, %v2960
        %v2962 = vrot.slane %v2961, 4
        %v2964 = vshll.u32 %v2886, 16
        %v2966 = vrot.slane %v2964, 5
        %v2967 = vsel %vm1775, %v2962, %v2966
        %v2968 = vshrl.u32 %v2886, 16
        %v2970 = vrot.slane %v2968, 4
        %v2971 = vor.u32 %v2970, %v2966
        %v2972 = vrot.slane %v2971, 4
        %v2974 = vshll.u32 %v2887, 16
        %v2976 = vrot.slane %v2974, 5
        %v2977 = vsel %vm1775, %v2972, %v2976
        %v2979 = vshrl.u32 %v2888, 16
        %v2981 = vrot.slane %v2979, 4
        %v2982 = vshll.u32 %v2888, 16
        %v2984 = vrot.slane %v2982, 5
        %v2985 = vor.u32 %v2981, %v2984
        %v2986 = vrot.slane %v2985, 4
        %v2988 = vshll.u32 %v2889, 16
        %v2990 = vrot.slane %v2988, 5
        %v2991 = vsel %vm1775, %v2986, %v2990
        %v2992 = vshrl.u32 %v2889, 16
        %v2994 = vrot.slane %v2992, 4
        %v2995 = vor.u32 %v2994, %v2990
        %v2996 = vrot.slane %v2995, 4
        %v2998 = vshll.u32 %v2890, 16
        %v3000 = vrot.slane %v2998, 5
        %v3001 = vsel %vm1775, %v2996, %v3000
        %v3003 = vshrl.u32 %v2891, 16
        %v3005 = vrot.slane %v3003, 4
        %v3006 = vshll.u32 %v2891, 16
        %v3008 = vrot.slane %v3006, 5
        %v3009 = vor.u32 %v3005, %v3008
        %v3010 = vrot.slane %v3009, 4
        %v3012 = vshll.u32 %v2892, 16
        %v3014 = vrot.slane %v3012, 5
        %v3015 = vsel %vm1775, %v3010, %v3014
        %v3016 = vshrl.u32 %v2892, 16
        %v3018 = vrot.slane %v3016, 4
        %v3019 = vor.u32 %v3018, %v3014
        %v3020 = vrot.slane %v3019, 4
        %v3022 = vshll.u32 %v2893, 16
        %v3024 = vrot.slane %v3022, 5
        %v3025 = vsel %vm1775, %v3020, %v3024
        %v3027 = vshrl.u32 %v2894, 16
        %v3029 = vrot.slane %v3027, 4
        %v3030 = vshll.u32 %v2894, 16
        %v3032 = vrot.slane %v3030, 5
        %v3033 = vor.u32 %v3029, %v3032
        %v3034 = vrot.slane %v3033, 4
        %v3036 = vshll.u32 %v2895, 16
        %v3038 = vrot.slane %v3036, 5
        %v3039 = vsel %vm1775, %v3034, %v3038
        %v3040 = vshrl.u32 %v2895, 16
        %v3042 = vrot.slane %v3040, 4
        %v3043 = vor.u32 %v3042, %v3038
        %v3044 = vrot.slane %v3043, 4
        %v3046 = vshll.u32 %v2896, 16
        %v3048 = vrot.slane %v3046, 5
        %v3049 = vsel %vm1775, %v3044, %v3048
        %v3051 = vshrl.u32 %v2897, 16
        %v3053 = vrot.slane %v3051, 4
        %v3054 = vshll.u32 %v2897, 16
        %v3056 = vrot.slane %v3054, 5
        %v3057 = vor.u32 %v3053, %v3056
        %v3058 = vrot.slane %v3057, 4
        %v3060 = vshll.u32 %v2898, 16
        %v3062 = vrot.slane %v3060, 5
        %v3063 = vsel %vm1775, %v3058, %v3062
        %v3064 = vshrl.u32 %v2898, 16
        %v3066 = vrot.slane %v3064, 4
        %v3067 = vor.u32 %v3066, %v3062
        %v3068 = vrot.slane %v3067, 4
        %v3070 = vshll.u32 %v2899, 16
        %v3072 = vrot.slane %v3070, 5
        %v3073 = vsel %vm1775, %v3068, %v3072
        %v3075 = vshrl.u32 %v2900, 16
        %v3077 = vrot.slane %v3075, 4
        %v3078 = vshll.u32 %v2900, 16
        %v3080 = vrot.slane %v3078, 5
        %v3081 = vor.u32 %v3077, %v3080
        %v3082 = vrot.slane %v3081, 4
        %v3084 = vshll.u32 %v2901, 16
        %v3086 = vrot.slane %v3084, 5
        %v3087 = vsel %vm1775, %v3082, %v3086
        %v3088 = vshrl.u32 %v2901, 16
        %v3090 = vrot.slane %v3088, 4
        %v3091 = vor.u32 %v3090, %v3086
        %v3092 = vrot.slane %v3091, 4
        %v3094 = vshll.u32 %v2902, 16
        %v3096 = vrot.slane %v3094, 5
        %v3097 = vsel %vm1775, %v3092, %v3096
        %v3099 = vshrl.u32 %v2903, 16
        %v3101 = vrot.slane %v3099, 4
        %v3102 = vshll.u32 %v2903, 16
        %v3104 = vrot.slane %v3102, 5
        %v3105 = vor.u32 %v3101, %v3104
        %v3106 = vrot.slane %v3105, 4
        %v3108 = vshll.u32 %v2904, 16
        %v3110 = vrot.slane %v3108, 5
        %v3111 = vsel %vm1775, %v3106, %v3110
        %v3112 = vshrl.u32 %v2904, 16
        %v3114 = vrot.slane %v3112, 4
        %v3115 = vor.u32 %v3114, %v3110
        %v3116 = vrot.slane %v3115, 4
        %v3118 = vshll.u32 %v2905, 16
        %v3120 = vrot.slane %v3118, 5
        %v3121 = vsel %vm1775, %v3116, %v3120
        %v3123 = vshrl.u32 %v2906, 16
        %v3125 = vrot.slane %v3123, 4
        %v3126 = vshll.u32 %v2906, 16
        %v3128 = vrot.slane %v3126, 5
        %v3129 = vor.u32 %v3125, %v3128
        %v3130 = vrot.slane %v3129, 4
        %v3132 = vshll.u32 %v2907, 16
        %v3134 = vrot.slane %v3132, 5
        %v3135 = vsel %vm1775, %v3130, %v3134
        %v3136 = vshrl.u32 %v2907, 16
        %v3138 = vrot.slane %v3136, 4
        %v3139 = vor.u32 %v3138, %v3134
        %v3140 = vrot.slane %v3139, 4
        %v3142 = vshll.u32 %v2908, 16
        %v3144 = vrot.slane %v3142, 5
        %v3145 = vsel %vm1775, %v3140, %v3144
        %v3147 = vshrl.u32 %v2909, 16
        %v3149 = vrot.slane %v3147, 4
        %v3150 = vshll.u32 %v2909, 16
        %v3152 = vrot.slane %v3150, 5
        %v3153 = vor.u32 %v3149, %v3152
        %v3154 = vrot.slane %v3153, 4
        %v3156 = vshll.u32 %v2910, 16
        %v3158 = vrot.slane %v3156, 5
        %v3159 = vsel %vm1775, %v3154, %v3158
        %v3160 = vshrl.u32 %v2910, 16
        %v3162 = vrot.slane %v3160, 4
        %v3163 = vor.u32 %v3162, %v3158
        %v3164 = vrot.slane %v3163, 4
        %v3166 = vshll.u32 %v2911, 16
        %v3168 = vrot.slane %v3166, 5
        %v3169 = vsel %vm1775, %v3164, %v3168
        %v3171 = vshrl.u32 %v2912, 16
        %v3173 = vrot.slane %v3171, 4
        %v3174 = vshll.u32 %v2912, 16
        %v3176 = vrot.slane %v3174, 5
        %v3177 = vor.u32 %v3173, %v3176
        %v3178 = vrot.slane %v3177, 4
        %v3180 = vshll.u32 %v2913, 16
        %v3182 = vrot.slane %v3180, 5
        %v3183 = vsel %vm1775, %v3178, %v3182
        %v3184 = vshrl.u32 %v2913, 16
        %v3186 = vrot.slane %v3184, 4
        %v3187 = vor.u32 %v3186, %v3182
        %v3188 = vrot.slane %v3187, 4
        %v3190 = vshll.u32 %v2914, 16
        %v3192 = vrot.slane %v3190, 5
        %v3193 = vsel %vm1775, %v3188, %v3192
        %v3195 = vshrl.u32 %v2915, 16
        %v3197 = vrot.slane %v3195, 4
        %v3198 = vshll.u32 %v2915, 16
        %v3200 = vrot.slane %v3198, 5
        %v3201 = vor.u32 %v3197, %v3200
        %v3202 = vrot.slane %v3201, 4
        %v3204 = vshll.u32 %v2916, 16
        %v3206 = vrot.slane %v3204, 5
        %v3207 = vsel %vm1775, %v3202, %v3206
        %v3208 = vshrl.u32 %v2916, 16
        %v3210 = vrot.slane %v3208, 4
        %v3211 = vor.u32 %v3210, %v3206
        %v3212 = vrot.slane %v3211, 4
        %v3214 = vshll.u32 %v2917, 16
        %v3216 = vrot.slane %v3214, 5
        %v3217 = vsel %vm1775, %v3212, %v3216
        %v3219 = vshrl.u32 %v2918, 16
        %v3221 = vrot.slane %v3219, 4
        %v3222 = vshll.u32 %v2918, 16
        %v3224 = vrot.slane %v3222, 5
        %v3225 = vor.u32 %v3221, %v3224
        %v3226 = vrot.slane %v3225, 4
        %v3228 = vshll.u32 %v2919, 16
        %v3230 = vrot.slane %v3228, 5
        %v3231 = vsel %vm1775, %v3226, %v3230
        %v3232 = vshrl.u32 %v2919, 16
        %v3234 = vrot.slane %v3232, 4
        %v3235 = vor.u32 %v3234, %v3230
        %v3236 = vrot.slane %v3235, 4
        %v3238 = vshll.u32 %v2920, 16
        %v3240 = vrot.slane %v3238, 5
        %v3241 = vsel %vm1775, %v3236, %v3240
        %v3243 = vshrl.u32 %v2921, 16
        %v3245 = vrot.slane %v3243, 4
        %v3246 = vshll.u32 %v2921, 16
        %v3248 = vrot.slane %v3246, 5
        %v3249 = vor.u32 %v3245, %v3248
        %v3250 = vrot.slane %v3249, 4
        %v3252 = vshll.u32 %v2922, 16
        %v3254 = vrot.slane %v3252, 5
        %v3255 = vsel %vm1775, %v3250, %v3254
        %v3256 = vshrl.u32 %v2922, 16
        %v3258 = vrot.slane %v3256, 4
        %v3259 = vor.u32 %v3258, %v3254
        %v3260 = vrot.slane %v3259, 4
        %v3262 = vshll.u32 %v2923, 16
        %v3264 = vrot.slane %v3262, 5
        %v3265 = vsel %vm1775, %v3260, %v3264
        %v3267 = vshrl.u32 %v2924, 16
        %v3269 = vrot.slane %v3267, 4
        %v3270 = vshll.u32 %v2924, 16
        %v3272 = vrot.slane %v3270, 5
        %v3273 = vor.u32 %v3269, %v3272
        %v3274 = vrot.slane %v3273, 4
        %v3276 = vshll.u32 %v2925, 16
        %v3278 = vrot.slane %v3276, 5
        %v3279 = vsel %vm1775, %v3274, %v3278
        %v3280 = vshrl.u32 %v2925, 16
        %v3282 = vrot.slane %v3280, 4
        %v3283 = vor.u32 %v3282, %v3278
        %v3284 = vrot.slane %v3283, 4
        %v3286 = vshll.u32 %v2926, 16
        %v3288 = vrot.slane %v3286, 5
        %v3289 = vsel %vm1775, %v3284, %v3288
        %v3291 = vshrl.u32 %v2927, 16
        %v3293 = vrot.slane %v3291, 4
        %v3294 = vshll.u32 %v2927, 16
        %v3296 = vrot.slane %v3294, 5
        %v3297 = vor.u32 %v3293, %v3296
        %v3298 = vrot.slane %v3297, 4
        %v3300 = vshll.u32 %v2928, 16
        %v3302 = vrot.slane %v3300, 5
        %v3303 = vsel %vm1775, %v3298, %v3302
        %v3304 = vshrl.u32 %v2928, 16
        %v3306 = vrot.slane %v3304, 4
        %v3307 = vor.u32 %v3306, %v3302
        %v3308 = vrot.slane %v3307, 4
        %v3310 = vshll.u32 %v2929, 16
        %v3312 = vrot.slane %v3310, 5
        %v3313 = vsel %vm1775, %v3308, %v3312
        %3314 = vrot.lane.b32.xlu0 %v2943, 32
        %v3315 = vpop.permute.xlu0 %3314
        %3316 = vrot.lane.b32.xlu0 %v2953, 32
        %v3317 = vpop.permute.xlu0 %3316
        %3318 = vrot.lane.b32.xlu0 %v2967, 32
        %v3319 = vpop.permute.xlu0 %3318
        %3320 = vrot.lane.b32.xlu0 %v2977, 32
        %v3321 = vpop.permute.xlu0 %3320
        %3322 = vrot.lane.b32.xlu0 %v2991, 32
        %v3323 = vpop.permute.xlu0 %3322
        %3324 = vrot.lane.b32.xlu0 %v3001, 32
        %v3325 = vpop.permute.xlu0 %3324
        %3326 = vrot.lane.b32.xlu0 %v3015, 32
        %v3327 = vpop.permute.xlu0 %3326
        %3328 = vrot.lane.b32.xlu0 %v3025, 32
        %v3329 = vpop.permute.xlu0 %3328
        %3330 = vrot.lane.b32.xlu0 %v3039, 32
        %v3331 = vpop.permute.xlu0 %3330
        %3332 = vrot.lane.b32.xlu0 %v3049, 32
        %v3333 = vpop.permute.xlu0 %3332
        %3334 = vrot.lane.b32.xlu0 %v3063, 32
        %v3335 = vpop.permute.xlu0 %3334
        %3336 = vrot.lane.b32.xlu0 %v3073, 32
        %v3337 = vpop.permute.xlu0 %3336
        %3338 = vrot.lane.b32.xlu0 %v3087, 32
        %v3339 = vpop.permute.xlu0 %3338
        %3340 = vrot.lane.b32.xlu0 %v3097, 32
        %v3341 = vpop.permute.xlu0 %3340
        %3342 = vrot.lane.b32.xlu0 %v3111, 32
        %v3343 = vpop.permute.xlu0 %3342
        %3344 = vrot.lane.b32.xlu0 %v3121, 32
        %v3345 = vpop.permute.xlu0 %3344
        %3346 = vrot.lane.b32.xlu0 %v3135, 32
        %v3347 = vpop.permute.xlu0 %3346
        %3348 = vrot.lane.b32.xlu0 %v3145, 32
        %v3349 = vpop.permute.xlu0 %3348
        %3350 = vrot.lane.b32.xlu0 %v3159, 32
        %v3351 = vpop.permute.xlu0 %3350
        %3352 = vrot.lane.b32.xlu0 %v3169, 32
        %v3353 = vpop.permute.xlu0 %3352
        %3354 = vrot.lane.b32.xlu0 %v3183, 32
        %v3355 = vpop.permute.xlu0 %3354
        %3356 = vrot.lane.b32.xlu0 %v3193, 32
        %v3357 = vpop.permute.xlu0 %3356
        %3358 = vrot.lane.b32.xlu0 %v3207, 32
        %v3359 = vpop.permute.xlu0 %3358
        %3360 = vrot.lane.b32.xlu0 %v3217, 32
        %v3361 = vpop.permute.xlu0 %3360
        %3362 = vrot.lane.b32.xlu0 %v3231, 32
        %v3363 = vpop.permute.xlu0 %3362
        %3364 = vrot.lane.b32.xlu0 %v3241, 32
        %v3365 = vpop.permute.xlu0 %3364
        %3366 = vrot.lane.b32.xlu0 %v3255, 32
        %v3367 = vpop.permute.xlu0 %3366
        %3368 = vrot.lane.b32.xlu0 %v3265, 32
        %v3369 = vpop.permute.xlu0 %3368
        %3370 = vrot.lane.b32.xlu0 %v3279, 32
        %v3371 = vpop.permute.xlu0 %3370
        %3372 = vrot.lane.b32.xlu0 %v3289, 32
        %v3373 = vpop.permute.xlu0 %3372
        %3374 = vrot.lane.b32.xlu0 %v3303, 32
        %v3375 = vpop.permute.xlu0 %3374
        %3376 = vrot.lane.b32.xlu0 %v3313, 32
        %v3377 = vpop.permute.xlu0 %3376
        %3410 = vst.msk [vmem:[#allocation3 + $0x4] sm:$0xf] %vm1692, %v3315
        %3411 = vst.msk [vmem:[#allocation3 + $0x10] sm:$0xf] %vm1692, %v3317
        %3412 = vst.msk [vmem:[#allocation3 + $0x1c] sm:$0xf] %vm1692, %v3319
        %3413 = vst.msk [vmem:[#allocation3 + $0x28] sm:$0xf] %vm1692, %v3321
        %3414 = vst.msk [vmem:[#allocation3 + $0x34] sm:$0xf] %vm1692, %v3323
        %3415 = vst.msk [vmem:[#allocation3 + $0x40] sm:$0xf] %vm1692, %v3325
        %3416 = vst.msk [vmem:[#allocation3 + $0x4c] sm:$0xf] %vm1692, %v3327
        %3417 = vst.msk [vmem:[#allocation3 + $0x58] sm:$0xf] %vm1692, %v3329
        %3418 = vst.msk [vmem:[#allocation3 + $0x64] sm:$0xf] %vm1692, %v3331
        %3419 = vst.msk [vmem:[#allocation3 + $0x70] sm:$0xf] %vm1692, %v3333
        %3420 = vst.msk [vmem:[#allocation3 + $0x7c] sm:$0xf] %vm1692, %v3335
        %3421 = vst.msk [vmem:[#allocation3 + $0x88] sm:$0xf] %vm1692, %v3337
        %3422 = vst.msk [vmem:[#allocation3 + $0x94] sm:$0xf] %vm1692, %v3339
        %3423 = vst.msk [vmem:[#allocation3 + $0xa0] sm:$0xf] %vm1692, %v3341
        %3424 = vst.msk [vmem:[#allocation3 + $0xac] sm:$0xf] %vm1692, %v3343
        %3425 = vst.msk [vmem:[#allocation3 + $0xb8] sm:$0xf] %vm1692, %v3345
        %3426 = vst.msk [vmem:[#allocation3 + $0xc4] sm:$0xf] %vm1692, %v3347
        %3427 = vst.msk [vmem:[#allocation3 + $0xd0] sm:$0xf] %vm1692, %v3349
        %3428 = vst.msk [vmem:[#allocation3 + $0xdc] sm:$0xf] %vm1692, %v3351
        %3429 = vst.msk [vmem:[#allocation3 + $0xe8] sm:$0xf] %vm1692, %v3353
        %3430 = vst.msk [vmem:[#allocation3 + $0xf4] sm:$0xf] %vm1692, %v3355
        %3431 = vst.msk [vmem:[#allocation3 + $0x100] sm:$0xf] %vm1692, %v3357
        %3432 = vst.msk [vmem:[#allocation3 + $0x10c] sm:$0xf] %vm1692, %v3359
        %3433 = vst.msk [vmem:[#allocation3 + $0x118] sm:$0xf] %vm1692, %v3361
        %3434 = vst.msk [vmem:[#allocation3 + $0x124] sm:$0xf] %vm1692, %v3363
        %3435 = vst.msk [vmem:[#allocation3 + $0x130] sm:$0xf] %vm1692, %v3365
        %3436 = vst.msk [vmem:[#allocation3 + $0x13c] sm:$0xf] %vm1692, %v3367
        %3437 = vst.msk [vmem:[#allocation3 + $0x148] sm:$0xf] %vm1692, %v3369
        %3438 = vst.msk [vmem:[#allocation3 + $0x154] sm:$0xf] %vm1692, %v3371
        %3439 = vst.msk [vmem:[#allocation3 + $0x160] sm:$0xf] %vm1692, %v3373
        %3440 = vst.msk [vmem:[#allocation3 + $0x16c] sm:$0xf] %vm1692, %v3375
        %3441 = vst.msk [vmem:[#allocation3 + $0x178] sm:$0xf] %vm1692, %v3377
        %s3442 = scalar_lea.vmem [#allocation2], 48
        %v3443 = vld [vmem:[%s3442 + $0x4] sm:$0x8]
        %v3444 = vld [vmem:[%s3442 + $0x8] sm:$0xf]
        %v3445 = vld [vmem:[%s3442 + $0xc] sm:$0xf]
        %v3446 = vld [vmem:[%s3442 + $0x1c] sm:$0x8]
        %v3447 = vld [vmem:[%s3442 + $0x20] sm:$0xf]
        %v3448 = vld [vmem:[%s3442 + $0x24] sm:$0xf]
        %v3449 = vld [vmem:[%s3442 + $0x34] sm:$0x8]
        %v3450 = vld [vmem:[%s3442 + $0x38] sm:$0xf]
        %v3451 = vld [vmem:[%s3442 + $0x3c] sm:$0xf]
        %v3452 = vld [vmem:[%s3442 + $0x4c] sm:$0x8]
        %v3453 = vld [vmem:[%s3442 + $0x50] sm:$0xf]
        %v3454 = vld [vmem:[%s3442 + $0x54] sm:$0xf]
        %v3455 = vld [vmem:[%s3442 + $0x64] sm:$0x8]
        %v3456 = vld [vmem:[%s3442 + $0x68] sm:$0xf]
        %v3457 = vld [vmem:[%s3442 + $0x6c] sm:$0xf]
        %v3458 = vld [vmem:[%s3442 + $0x7c] sm:$0x8]
        %v3459 = vld [vmem:[%s3442 + $0x80] sm:$0xf]
        %v3460 = vld [vmem:[%s3442 + $0x84] sm:$0xf]
        %v3461 = vld [vmem:[%s3442 + $0x94] sm:$0x8]
        %v3462 = vld [vmem:[%s3442 + $0x98] sm:$0xf]
        %v3463 = vld [vmem:[%s3442 + $0x9c] sm:$0xf]
        %v3464 = vld [vmem:[%s3442 + $0xac] sm:$0x8]
        %v3465 = vld [vmem:[%s3442 + $0xb0] sm:$0xf]
        %v3466 = vld [vmem:[%s3442 + $0xb4] sm:$0xf]
        %v3467 = vld [vmem:[%s3442 + $0xc4] sm:$0x8]
        %v3468 = vld [vmem:[%s3442 + $0xc8] sm:$0xf]
        %v3469 = vld [vmem:[%s3442 + $0xcc] sm:$0xf]
        %v3470 = vld [vmem:[%s3442 + $0xdc] sm:$0x8]
        %v3471 = vld [vmem:[%s3442 + $0xe0] sm:$0xf]
        %v3472 = vld [vmem:[%s3442 + $0xe4] sm:$0xf]
        %v3473 = vld [vmem:[%s3442 + $0xf4] sm:$0x8]
        %v3474 = vld [vmem:[%s3442 + $0xf8] sm:$0xf]
        %v3475 = vld [vmem:[%s3442 + $0xfc] sm:$0xf]
        %v3476 = vld [vmem:[%s3442 + $0x10c] sm:$0x8]
        %v3477 = vld [vmem:[%s3442 + $0x110] sm:$0xf]
        %v3478 = vld [vmem:[%s3442 + $0x114] sm:$0xf]
        %v3479 = vld [vmem:[%s3442 + $0x124] sm:$0x8]
        %v3480 = vld [vmem:[%s3442 + $0x128] sm:$0xf]
        %v3481 = vld [vmem:[%s3442 + $0x12c] sm:$0xf]
        %v3482 = vld [vmem:[%s3442 + $0x13c] sm:$0x8]
        %v3483 = vld [vmem:[%s3442 + $0x140] sm:$0xf]
        %v3484 = vld [vmem:[%s3442 + $0x144] sm:$0xf]
        %v3485 = vld [vmem:[%s3442 + $0x154] sm:$0x8]
        %v3486 = vld [vmem:[%s3442 + $0x158] sm:$0xf]
        %v3487 = vld [vmem:[%s3442 + $0x15c] sm:$0xf]
        %v3488 = vld [vmem:[%s3442 + $0x16c] sm:$0x8]
        %v3489 = vld [vmem:[%s3442 + $0x170] sm:$0xf]
        %v3490 = vld [vmem:[%s3442 + $0x174] sm:$0xf]
        %v3492 = vshrl.u32 %v3443, 16
        %v3494 = vrot.slane %v3492, 7
        %v3495 = vrot.slane %v3494, 4
        %v3497 = vshrl.u32 %v3444, 16
        %v3499 = vrot.slane %v3497, 7
        %v3500 = vshll.u32 %v3444, 16
        %v3502 = vor.u32 %v3499, %v3500
        %v3503 = vsel %vm1115, %v3495, %v3502
        %v3504 = vrot.slane %v3499, 4
        %v3506 = vshrl.u32 %v3445, 16
        %v3508 = vrot.slane %v3506, 7
        %v3509 = vshll.u32 %v3445, 16
        %v3511 = vor.u32 %v3508, %v3509
        %v3512 = vsel %vm1115, %v3504, %v3511
        %v3514 = vshrl.u32 %v3446, 16
        %v3516 = vrot.slane %v3514, 7
        %v3517 = vrot.slane %v3516, 4
        %v3519 = vshrl.u32 %v3447, 16
        %v3521 = vrot.slane %v3519, 7
        %v3522 = vshll.u32 %v3447, 16
        %v3524 = vor.u32 %v3521, %v3522
        %v3525 = vsel %vm1115, %v3517, %v3524
        %v3526 = vrot.slane %v3521, 4
        %v3528 = vshrl.u32 %v3448, 16
        %v3530 = vrot.slane %v3528, 7
        %v3531 = vshll.u32 %v3448, 16
        %v3533 = vor.u32 %v3530, %v3531
        %v3534 = vsel %vm1115, %v3526, %v3533
        %v3536 = vshrl.u32 %v3449, 16
        %v3538 = vrot.slane %v3536, 7
        %v3539 = vrot.slane %v3538, 4
        %v3541 = vshrl.u32 %v3450, 16
        %v3543 = vrot.slane %v3541, 7
        %v3544 = vshll.u32 %v3450, 16
        %v3546 = vor.u32 %v3543, %v3544
        %v3547 = vsel %vm1115, %v3539, %v3546
        %v3548 = vrot.slane %v3543, 4
        %v3550 = vshrl.u32 %v3451, 16
        %v3552 = vrot.slane %v3550, 7
        %v3553 = vshll.u32 %v3451, 16
        %v3555 = vor.u32 %v3552, %v3553
        %v3556 = vsel %vm1115, %v3548, %v3555
        %v3558 = vshrl.u32 %v3452, 16
        %v3560 = vrot.slane %v3558, 7
        %v3561 = vrot.slane %v3560, 4
        %v3563 = vshrl.u32 %v3453, 16
        %v3565 = vrot.slane %v3563, 7
        %v3566 = vshll.u32 %v3453, 16
        %v3568 = vor.u32 %v3565, %v3566
        %v3569 = vsel %vm1115, %v3561, %v3568
        %v3570 = vrot.slane %v3565, 4
        %v3572 = vshrl.u32 %v3454, 16
        %v3574 = vrot.slane %v3572, 7
        %v3575 = vshll.u32 %v3454, 16
        %v3577 = vor.u32 %v3574, %v3575
        %v3578 = vsel %vm1115, %v3570, %v3577
        %v3580 = vshrl.u32 %v3455, 16
        %v3582 = vrot.slane %v3580, 7
        %v3583 = vrot.slane %v3582, 4
        %v3585 = vshrl.u32 %v3456, 16
        %v3587 = vrot.slane %v3585, 7
        %v3588 = vshll.u32 %v3456, 16
        %v3590 = vor.u32 %v3587, %v3588
        %v3591 = vsel %vm1115, %v3583, %v3590
        %v3592 = vrot.slane %v3587, 4
        %v3594 = vshrl.u32 %v3457, 16
        %v3596 = vrot.slane %v3594, 7
        %v3597 = vshll.u32 %v3457, 16
        %v3599 = vor.u32 %v3596, %v3597
        %v3600 = vsel %vm1115, %v3592, %v3599
        %v3602 = vshrl.u32 %v3458, 16
        %v3604 = vrot.slane %v3602, 7
        %v3605 = vrot.slane %v3604, 4
        %v3607 = vshrl.u32 %v3459, 16
        %v3609 = vrot.slane %v3607, 7
        %v3610 = vshll.u32 %v3459, 16
        %v3612 = vor.u32 %v3609, %v3610
        %v3613 = vsel %vm1115, %v3605, %v3612
        %v3614 = vrot.slane %v3609, 4
        %v3616 = vshrl.u32 %v3460, 16
        %v3618 = vrot.slane %v3616, 7
        %v3619 = vshll.u32 %v3460, 16
        %v3621 = vor.u32 %v3618, %v3619
        %v3622 = vsel %vm1115, %v3614, %v3621
        %v3624 = vshrl.u32 %v3461, 16
        %v3626 = vrot.slane %v3624, 7
        %v3627 = vrot.slane %v3626, 4
        %v3629 = vshrl.u32 %v3462, 16
        %v3631 = vrot.slane %v3629, 7
        %v3632 = vshll.u32 %v3462, 16
        %v3634 = vor.u32 %v3631, %v3632
        %v3635 = vsel %vm1115, %v3627, %v3634
        %v3636 = vrot.slane %v3631, 4
        %v3638 = vshrl.u32 %v3463, 16
        %v3640 = vrot.slane %v3638, 7
        %v3641 = vshll.u32 %v3463, 16
        %v3643 = vor.u32 %v3640, %v3641
        %v3644 = vsel %vm1115, %v3636, %v3643
        %v3646 = vshrl.u32 %v3464, 16
        %v3648 = vrot.slane %v3646, 7
        %v3649 = vrot.slane %v3648, 4
        %v3651 = vshrl.u32 %v3465, 16
        %v3653 = vrot.slane %v3651, 7
        %v3654 = vshll.u32 %v3465, 16
        %v3656 = vor.u32 %v3653, %v3654
        %v3657 = vsel %vm1115, %v3649, %v3656
        %v3658 = vrot.slane %v3653, 4
        %v3660 = vshrl.u32 %v3466, 16
        %v3662 = vrot.slane %v3660, 7
        %v3663 = vshll.u32 %v3466, 16
        %v3665 = vor.u32 %v3662, %v3663
        %v3666 = vsel %vm1115, %v3658, %v3665
        %v3668 = vshrl.u32 %v3467, 16
        %v3670 = vrot.slane %v3668, 7
        %v3671 = vrot.slane %v3670, 4
        %v3673 = vshrl.u32 %v3468, 16
        %v3675 = vrot.slane %v3673, 7
        %v3676 = vshll.u32 %v3468, 16
        %v3678 = vor.u32 %v3675, %v3676
        %v3679 = vsel %vm1115, %v3671, %v3678
        %v3680 = vrot.slane %v3675, 4
        %v3682 = vshrl.u32 %v3469, 16
        %v3684 = vrot.slane %v3682, 7
        %v3685 = vshll.u32 %v3469, 16
        %v3687 = vor.u32 %v3684, %v3685
        %v3688 = vsel %vm1115, %v3680, %v3687
        %v3690 = vshrl.u32 %v3470, 16
        %v3692 = vrot.slane %v3690, 7
        %v3693 = vrot.slane %v3692, 4
        %v3695 = vshrl.u32 %v3471, 16
        %v3697 = vrot.slane %v3695, 7
        %v3698 = vshll.u32 %v3471, 16
        %v3700 = vor.u32 %v3697, %v3698
        %v3701 = vsel %vm1115, %v3693, %v3700
        %v3702 = vrot.slane %v3697, 4
        %v3704 = vshrl.u32 %v3472, 16
        %v3706 = vrot.slane %v3704, 7
        %v3707 = vshll.u32 %v3472, 16
        %v3709 = vor.u32 %v3706, %v3707
        %v3710 = vsel %vm1115, %v3702, %v3709
        %v3712 = vshrl.u32 %v3473, 16
        %v3714 = vrot.slane %v3712, 7
        %v3715 = vrot.slane %v3714, 4
        %v3717 = vshrl.u32 %v3474, 16
        %v3719 = vrot.slane %v3717, 7
        %v3720 = vshll.u32 %v3474, 16
        %v3722 = vor.u32 %v3719, %v3720
        %v3723 = vsel %vm1115, %v3715, %v3722
        %v3724 = vrot.slane %v3719, 4
        %v3726 = vshrl.u32 %v3475, 16
        %v3728 = vrot.slane %v3726, 7
        %v3729 = vshll.u32 %v3475, 16
        %v3731 = vor.u32 %v3728, %v3729
        %v3732 = vsel %vm1115, %v3724, %v3731
        %v3734 = vshrl.u32 %v3476, 16
        %v3736 = vrot.slane %v3734, 7
        %v3737 = vrot.slane %v3736, 4
        %v3739 = vshrl.u32 %v3477, 16
        %v3741 = vrot.slane %v3739, 7
        %v3742 = vshll.u32 %v3477, 16
        %v3744 = vor.u32 %v3741, %v3742
        %v3745 = vsel %vm1115, %v3737, %v3744
        %v3746 = vrot.slane %v3741, 4
        %v3748 = vshrl.u32 %v3478, 16
        %v3750 = vrot.slane %v3748, 7
        %v3751 = vshll.u32 %v3478, 16
        %v3753 = vor.u32 %v3750, %v3751
        %v3754 = vsel %vm1115, %v3746, %v3753
        %v3756 = vshrl.u32 %v3479, 16
        %v3758 = vrot.slane %v3756, 7
        %v3759 = vrot.slane %v3758, 4
        %v3761 = vshrl.u32 %v3480, 16
        %v3763 = vrot.slane %v3761, 7
        %v3764 = vshll.u32 %v3480, 16
        %v3766 = vor.u32 %v3763, %v3764
        %v3767 = vsel %vm1115, %v3759, %v3766
        %v3768 = vrot.slane %v3763, 4
        %v3770 = vshrl.u32 %v3481, 16
        %v3772 = vrot.slane %v3770, 7
        %v3773 = vshll.u32 %v3481, 16
        %v3775 = vor.u32 %v3772, %v3773
        %v3776 = vsel %vm1115, %v3768, %v3775
        %v3778 = vshrl.u32 %v3482, 16
        %v3780 = vrot.slane %v3778, 7
        %v3781 = vrot.slane %v3780, 4
        %v3783 = vshrl.u32 %v3483, 16
        %v3785 = vrot.slane %v3783, 7
        %v3786 = vshll.u32 %v3483, 16
        %v3788 = vor.u32 %v3785, %v3786
        %v3789 = vsel %vm1115, %v3781, %v3788
        %v3790 = vrot.slane %v3785, 4
        %v3792 = vshrl.u32 %v3484, 16
        %v3794 = vrot.slane %v3792, 7
        %v3795 = vshll.u32 %v3484, 16
        %v3797 = vor.u32 %v3794, %v3795
        %v3798 = vsel %vm1115, %v3790, %v3797
        %v3800 = vshrl.u32 %v3485, 16
        %v3802 = vrot.slane %v3800, 7
        %v3803 = vrot.slane %v3802, 4
        %v3805 = vshrl.u32 %v3486, 16
        %v3807 = vrot.slane %v3805, 7
        %v3808 = vshll.u32 %v3486, 16
        %v3810 = vor.u32 %v3807, %v3808
        %v3811 = vsel %vm1115, %v3803, %v3810
        %v3812 = vrot.slane %v3807, 4
        %v3814 = vshrl.u32 %v3487, 16
        %v3816 = vrot.slane %v3814, 7
        %v3817 = vshll.u32 %v3487, 16
        %v3819 = vor.u32 %v3816, %v3817
        %v3820 = vsel %vm1115, %v3812, %v3819
        %v3822 = vshrl.u32 %v3488, 16
        %v3824 = vrot.slane %v3822, 7
        %v3825 = vrot.slane %v3824, 4
        %v3827 = vshrl.u32 %v3489, 16
        %v3829 = vrot.slane %v3827, 7
        %v3830 = vshll.u32 %v3489, 16
        %v3832 = vor.u32 %v3829, %v3830
        %v3833 = vsel %vm1115, %v3825, %v3832
        %v3834 = vrot.slane %v3829, 4
        %v3836 = vshrl.u32 %v3490, 16
        %v3838 = vrot.slane %v3836, 7
        %v3839 = vshll.u32 %v3490, 16
        %v3841 = vor.u32 %v3838, %v3839
        %v3842 = vsel %vm1115, %v3834, %v3841
        %3843 = vrot.lane.b32.xlu0 %v3503, 64
        %v3844 = vpop.permute.xlu0 %3843
        %3845 = vrot.lane.b32.xlu0 %v3512, 64
        %v3846 = vpop.permute.xlu0 %3845
        %3847 = vrot.lane.b32.xlu0 %v3525, 64
        %v3848 = vpop.permute.xlu0 %3847
        %3849 = vrot.lane.b32.xlu0 %v3534, 64
        %v3850 = vpop.permute.xlu0 %3849
        %3851 = vrot.lane.b32.xlu0 %v3547, 64
        %v3852 = vpop.permute.xlu0 %3851
        %3853 = vrot.lane.b32.xlu0 %v3556, 64
        %v3854 = vpop.permute.xlu0 %3853
        %3855 = vrot.lane.b32.xlu0 %v3569, 64
        %v3856 = vpop.permute.xlu0 %3855
        %3857 = vrot.lane.b32.xlu0 %v3578, 64
        %v3858 = vpop.permute.xlu0 %3857
        %3859 = vrot.lane.b32.xlu0 %v3591, 64
        %v3860 = vpop.permute.xlu0 %3859
        %3861 = vrot.lane.b32.xlu0 %v3600, 64
        %v3862 = vpop.permute.xlu0 %3861
        %3863 = vrot.lane.b32.xlu0 %v3613, 64
        %v3864 = vpop.permute.xlu0 %3863
        %3865 = vrot.lane.b32.xlu0 %v3622, 64
        %v3866 = vpop.permute.xlu0 %3865
        %3867 = vrot.lane.b32.xlu0 %v3635, 64
        %v3868 = vpop.permute.xlu0 %3867
        %3869 = vrot.lane.b32.xlu0 %v3644, 64
        %v3870 = vpop.permute.xlu0 %3869
        %3871 = vrot.lane.b32.xlu0 %v3657, 64
        %v3872 = vpop.permute.xlu0 %3871
        %3873 = vrot.lane.b32.xlu0 %v3666, 64
        %v3874 = vpop.permute.xlu0 %3873
        %3875 = vrot.lane.b32.xlu0 %v3679, 64
        %v3876 = vpop.permute.xlu0 %3875
        %3877 = vrot.lane.b32.xlu0 %v3688, 64
        %v3878 = vpop.permute.xlu0 %3877
        %3879 = vrot.lane.b32.xlu0 %v3701, 64
        %v3880 = vpop.permute.xlu0 %3879
        %3881 = vrot.lane.b32.xlu0 %v3710, 64
        %v3882 = vpop.permute.xlu0 %3881
        %3883 = vrot.lane.b32.xlu0 %v3723, 64
        %v3884 = vpop.permute.xlu0 %3883
        %3885 = vrot.lane.b32.xlu0 %v3732, 64
        %v3886 = vpop.permute.xlu0 %3885
        %3887 = vrot.lane.b32.xlu0 %v3745, 64
        %v3888 = vpop.permute.xlu0 %3887
        %3889 = vrot.lane.b32.xlu0 %v3754, 64
        %v3890 = vpop.permute.xlu0 %3889
        %3891 = vrot.lane.b32.xlu0 %v3767, 64
        %v3892 = vpop.permute.xlu0 %3891
        %3893 = vrot.lane.b32.xlu0 %v3776, 64
        %v3894 = vpop.permute.xlu0 %3893
        %3895 = vrot.lane.b32.xlu0 %v3789, 64
        %v3896 = vpop.permute.xlu0 %3895
        %3897 = vrot.lane.b32.xlu0 %v3798, 64
        %v3898 = vpop.permute.xlu0 %3897
        %3899 = vrot.lane.b32.xlu0 %v3811, 64
        %v3900 = vpop.permute.xlu0 %3899
        %3901 = vrot.lane.b32.xlu0 %v3820, 64
        %v3902 = vpop.permute.xlu0 %3901
        %3903 = vrot.lane.b32.xlu0 %v3833, 64
        %v3904 = vpop.permute.xlu0 %3903
        %3905 = vrot.lane.b32.xlu0 %v3842, 64
        %v3906 = vpop.permute.xlu0 %3905
        %3939 = vst.msk [vmem:[#allocation3 + $0x4] sm:$0xf] %vm2256, %v3844
        %3940 = vst.msk [vmem:[#allocation3 + $0x10] sm:$0xf] %vm2256, %v3846
        %3941 = vst.msk [vmem:[#allocation3 + $0x1c] sm:$0xf] %vm2256, %v3848
        %3942 = vst.msk [vmem:[#allocation3 + $0x28] sm:$0xf] %vm2256, %v3850
        %3943 = vst.msk [vmem:[#allocation3 + $0x34] sm:$0xf] %vm2256, %v3852
        %3944 = vst.msk [vmem:[#allocation3 + $0x40] sm:$0xf] %vm2256, %v3854
        %3945 = vst.msk [vmem:[#allocation3 + $0x4c] sm:$0xf] %vm2256, %v3856
        %3946 = vst.msk [vmem:[#allocation3 + $0x58] sm:$0xf] %vm2256, %v3858
        %3947 = vst.msk [vmem:[#allocation3 + $0x64] sm:$0xf] %vm2256, %v3860
        %3948 = vst.msk [vmem:[#allocation3 + $0x70] sm:$0xf] %vm2256, %v3862
        %3949 = vst.msk [vmem:[#allocation3 + $0x7c] sm:$0xf] %vm2256, %v3864
        %3950 = vst.msk [vmem:[#allocation3 + $0x88] sm:$0xf] %vm2256, %v3866
        %3951 = vst.msk [vmem:[#allocation3 + $0x94] sm:$0xf] %vm2256, %v3868
        %3952 = vst.msk [vmem:[#allocation3 + $0xa0] sm:$0xf] %vm2256, %v3870
        %3953 = vst.msk [vmem:[#allocation3 + $0xac] sm:$0xf] %vm2256, %v3872
        %3954 = vst.msk [vmem:[#allocation3 + $0xb8] sm:$0xf] %vm2256, %v3874
        %3955 = vst.msk [vmem:[#allocation3 + $0xc4] sm:$0xf] %vm2256, %v3876
        %3956 = vst.msk [vmem:[#allocation3 + $0xd0] sm:$0xf] %vm2256, %v3878
        %3957 = vst.msk [vmem:[#allocation3 + $0xdc] sm:$0xf] %vm2256, %v3880
        %3958 = vst.msk [vmem:[#allocation3 + $0xe8] sm:$0xf] %vm2256, %v3882
        %3959 = vst.msk [vmem:[#allocation3 + $0xf4] sm:$0xf] %vm2256, %v3884
        %3960 = vst.msk [vmem:[#allocation3 + $0x100] sm:$0xf] %vm2256, %v3886
        %3961 = vst.msk [vmem:[#allocation3 + $0x10c] sm:$0xf] %vm2256, %v3888
        %3962 = vst.msk [vmem:[#allocation3 + $0x118] sm:$0xf] %vm2256, %v3890
        %3963 = vst.msk [vmem:[#allocation3 + $0x124] sm:$0xf] %vm2256, %v3892
        %3964 = vst.msk [vmem:[#allocation3 + $0x130] sm:$0xf] %vm2256, %v3894
        %3965 = vst.msk [vmem:[#allocation3 + $0x13c] sm:$0xf] %vm2256, %v3896
        %3966 = vst.msk [vmem:[#allocation3 + $0x148] sm:$0xf] %vm2256, %v3898
        %3967 = vst.msk [vmem:[#allocation3 + $0x154] sm:$0xf] %vm2256, %v3900
        %3968 = vst.msk [vmem:[#allocation3 + $0x160] sm:$0xf] %vm2256, %v3902
        %3969 = vst.msk [vmem:[#allocation3 + $0x16c] sm:$0xf] %vm2256, %v3904
        %3970 = vst.msk [vmem:[#allocation3 + $0x178] sm:$0xf] %vm2256, %v3906
        %v3971 = vld [vmem:[%s3442 + $0x8] sm:$0xf]
        %v3972 = vld [vmem:[%s3442 + $0xc] sm:$0xf]
        %v3973 = vld [vmem:[%s3442 + $0x20] sm:$0xf]
        %v3974 = vld [vmem:[%s3442 + $0x24] sm:$0xf]
        %v3975 = vld [vmem:[%s3442 + $0x38] sm:$0xf]
        %v3976 = vld [vmem:[%s3442 + $0x3c] sm:$0xf]
        %v3977 = vld [vmem:[%s3442 + $0x50] sm:$0xf]
        %v3978 = vld [vmem:[%s3442 + $0x54] sm:$0xf]
        %v3979 = vld [vmem:[%s3442 + $0x68] sm:$0xf]
        %v3980 = vld [vmem:[%s3442 + $0x6c] sm:$0xf]
        %v3981 = vld [vmem:[%s3442 + $0x80] sm:$0xf]
        %v3982 = vld [vmem:[%s3442 + $0x84] sm:$0xf]
        %v3983 = vld [vmem:[%s3442 + $0x98] sm:$0xf]
        %v3984 = vld [vmem:[%s3442 + $0x9c] sm:$0xf]
        %v3985 = vld [vmem:[%s3442 + $0xb0] sm:$0xf]
        %v3986 = vld [vmem:[%s3442 + $0xb4] sm:$0xf]
        %v3987 = vld [vmem:[%s3442 + $0xc8] sm:$0xf]
        %v3988 = vld [vmem:[%s3442 + $0xcc] sm:$0xf]
        %v3989 = vld [vmem:[%s3442 + $0xe0] sm:$0xf]
        %v3990 = vld [vmem:[%s3442 + $0xe4] sm:$0xf]
        %v3991 = vld [vmem:[%s3442 + $0xf8] sm:$0xf]
        %v3992 = vld [vmem:[%s3442 + $0xfc] sm:$0xf]
        %v3993 = vld [vmem:[%s3442 + $0x110] sm:$0xf]
        %v3994 = vld [vmem:[%s3442 + $0x114] sm:$0xf]
        %v3995 = vld [vmem:[%s3442 + $0x128] sm:$0xf]
        %v3996 = vld [vmem:[%s3442 + $0x12c] sm:$0xf]
        %v3997 = vld [vmem:[%s3442 + $0x140] sm:$0xf]
        %v3998 = vld [vmem:[%s3442 + $0x144] sm:$0xf]
        %v3999 = vld [vmem:[%s3442 + $0x158] sm:$0xf]
        %v4000 = vld [vmem:[%s3442 + $0x15c] sm:$0xf]
        %v4001 = vld [vmem:[%s3442 + $0x170] sm:$0xf]
        %v4002 = vld [vmem:[%s3442 + $0x174] sm:$0xf]
        %4035 = vrot.lane.b32.xlu0 %v3971, 96
        %v4036 = vpop.permute.xlu0 %4035
        %4037 = vrot.lane.b32.xlu0 %v3972, 96
        %v4038 = vpop.permute.xlu0 %4037
        %4039 = vrot.lane.b32.xlu0 %v3973, 96
        %v4040 = vpop.permute.xlu0 %4039
        %4041 = vrot.lane.b32.xlu0 %v3974, 96
        %v4042 = vpop.permute.xlu0 %4041
        %4043 = vrot.lane.b32.xlu0 %v3975, 96
        %v4044 = vpop.permute.xlu0 %4043
        %4045 = vrot.lane.b32.xlu0 %v3976, 96
        %v4046 = vpop.permute.xlu0 %4045
        %4047 = vrot.lane.b32.xlu0 %v3977, 96
        %v4048 = vpop.permute.xlu0 %4047
        %4049 = vrot.lane.b32.xlu0 %v3978, 96
        %v4050 = vpop.permute.xlu0 %4049
        %4051 = vrot.lane.b32.xlu0 %v3979, 96
        %v4052 = vpop.permute.xlu0 %4051
        %4053 = vrot.lane.b32.xlu0 %v3980, 96
        %v4054 = vpop.permute.xlu0 %4053
        %4055 = vrot.lane.b32.xlu0 %v3981, 96
        %v4056 = vpop.permute.xlu0 %4055
        %4057 = vrot.lane.b32.xlu0 %v3982, 96
        %v4058 = vpop.permute.xlu0 %4057
        %4059 = vrot.lane.b32.xlu0 %v3983, 96
        %v4060 = vpop.permute.xlu0 %4059
        %4061 = vrot.lane.b32.xlu0 %v3984, 96
        %v4062 = vpop.permute.xlu0 %4061
        %4063 = vrot.lane.b32.xlu0 %v3985, 96
        %v4064 = vpop.permute.xlu0 %4063
        %4065 = vrot.lane.b32.xlu0 %v3986, 96
        %v4066 = vpop.permute.xlu0 %4065
        %4067 = vrot.lane.b32.xlu0 %v3987, 96
        %v4068 = vpop.permute.xlu0 %4067
        %4069 = vrot.lane.b32.xlu0 %v3988, 96
        %v4070 = vpop.permute.xlu0 %4069
        %4071 = vrot.lane.b32.xlu0 %v3989, 96
        %v4072 = vpop.permute.xlu0 %4071
        %4073 = vrot.lane.b32.xlu0 %v3990, 96
        %v4074 = vpop.permute.xlu0 %4073
        %4075 = vrot.lane.b32.xlu0 %v3991, 96
        %v4076 = vpop.permute.xlu0 %4075
        %4077 = vrot.lane.b32.xlu0 %v3992, 96
        %v4078 = vpop.permute.xlu0 %4077
        %4079 = vrot.lane.b32.xlu0 %v3993, 96
        %v4080 = vpop.permute.xlu0 %4079
        %4081 = vrot.lane.b32.xlu0 %v3994, 96
        %v4082 = vpop.permute.xlu0 %4081
        %4083 = vrot.lane.b32.xlu0 %v3995, 96
        %v4084 = vpop.permute.xlu0 %4083
        %4085 = vrot.lane.b32.xlu0 %v3996, 96
        %v4086 = vpop.permute.xlu0 %4085
        %4087 = vrot.lane.b32.xlu0 %v3997, 96
        %v4088 = vpop.permute.xlu0 %4087
        %4089 = vrot.lane.b32.xlu0 %v3998, 96
        %v4090 = vpop.permute.xlu0 %4089
        %4091 = vrot.lane.b32.xlu0 %v3999, 96
        %v4092 = vpop.permute.xlu0 %4091
        %4093 = vrot.lane.b32.xlu0 %v4000, 96
        %v4094 = vpop.permute.xlu0 %4093
        %4095 = vrot.lane.b32.xlu0 %v4001, 96
        %v4096 = vpop.permute.xlu0 %4095
        %4097 = vrot.lane.b32.xlu0 %v4002, 96
        %v4098 = vpop.permute.xlu0 %4097
        %4131 = vst.msk [vmem:[#allocation3 + $0x4] sm:$0xf] %vm2785, %v4036
        %4132 = vst.msk [vmem:[#allocation3 + $0x10] sm:$0xf] %vm2785, %v4038
        %4133 = vst.msk [vmem:[#allocation3 + $0x1c] sm:$0xf] %vm2785, %v4040
        %4134 = vst.msk [vmem:[#allocation3 + $0x28] sm:$0xf] %vm2785, %v4042
        %4135 = vst.msk [vmem:[#allocation3 + $0x34] sm:$0xf] %vm2785, %v4044
        %4136 = vst.msk [vmem:[#allocation3 + $0x40] sm:$0xf] %vm2785, %v4046
        %4137 = vst.msk [vmem:[#allocation3 + $0x4c] sm:$0xf] %vm2785, %v4048
        %4138 = vst.msk [vmem:[#allocation3 + $0x58] sm:$0xf] %vm2785, %v4050
        %4139 = vst.msk [vmem:[#allocation3 + $0x64] sm:$0xf] %vm2785, %v4052
        %4140 = vst.msk [vmem:[#allocation3 + $0x70] sm:$0xf] %vm2785, %v4054
        %4141 = vst.msk [vmem:[#allocation3 + $0x7c] sm:$0xf] %vm2785, %v4056
        %4142 = vst.msk [vmem:[#allocation3 + $0x88] sm:$0xf] %vm2785, %v4058
        %4143 = vst.msk [vmem:[#allocation3 + $0x94] sm:$0xf] %vm2785, %v4060
        %4144 = vst.msk [vmem:[#allocation3 + $0xa0] sm:$0xf] %vm2785, %v4062
        %4145 = vst.msk [vmem:[#allocation3 + $0xac] sm:$0xf] %vm2785, %v4064
        %4146 = vst.msk [vmem:[#allocation3 + $0xb8] sm:$0xf] %vm2785, %v4066
        %4147 = vst.msk [vmem:[#allocation3 + $0xc4] sm:$0xf] %vm2785, %v4068
        %4148 = vst.msk [vmem:[#allocation3 + $0xd0] sm:$0xf] %vm2785, %v4070
        %4149 = vst.msk [vmem:[#allocation3 + $0xdc] sm:$0xf] %vm2785, %v4072
        %4150 = vst.msk [vmem:[#allocation3 + $0xe8] sm:$0xf] %vm2785, %v4074
        %4151 = vst.msk [vmem:[#allocation3 + $0xf4] sm:$0xf] %vm2785, %v4076
        %4152 = vst.msk [vmem:[#allocation3 + $0x100] sm:$0xf] %vm2785, %v4078
        %4153 = vst.msk [vmem:[#allocation3 + $0x10c] sm:$0xf] %vm2785, %v4080
        %4154 = vst.msk [vmem:[#allocation3 + $0x118] sm:$0xf] %vm2785, %v4082
        %4155 = vst.msk [vmem:[#allocation3 + $0x124] sm:$0xf] %vm2785, %v4084
        %4156 = vst.msk [vmem:[#allocation3 + $0x130] sm:$0xf] %vm2785, %v4086
        %4157 = vst.msk [vmem:[#allocation3 + $0x13c] sm:$0xf] %vm2785, %v4088
        %4158 = vst.msk [vmem:[#allocation3 + $0x148] sm:$0xf] %vm2785, %v4090
        %4159 = vst.msk [vmem:[#allocation3 + $0x154] sm:$0xf] %vm2785, %v4092
        %4160 = vst.msk [vmem:[#allocation3 + $0x160] sm:$0xf] %vm2785, %v4094
        %4161 = vst.msk [vmem:[#allocation3 + $0x16c] sm:$0xf] %vm2785, %v4096
        %4162 = vst.msk [vmem:[#allocation3 + $0x178] sm:$0xf] %vm2785, %v4098
        %v4163 = vld [vmem:[%s3442 + $0x8] sm:$0xf]
        %v4164 = vld [vmem:[%s3442 + $0xc] sm:$0xf]
        %v4165 = vld [vmem:[%s3442 + $0x10] sm:$0x1]
        %v4166 = vld [vmem:[%s3442 + $0x20] sm:$0xf]
        %v4167 = vld [vmem:[%s3442 + $0x24] sm:$0xf]
        %v4168 = vld [vmem:[%s3442 + $0x28] sm:$0x1]
        %v4169 = vld [vmem:[%s3442 + $0x38] sm:$0xf]
        %v4170 = vld [vmem:[%s3442 + $0x3c] sm:$0xf]
        %v4171 = vld [vmem:[%s3442 + $0x40] sm:$0x1]
        %v4172 = vld [vmem:[%s3442 + $0x50] sm:$0xf]
        %v4173 = vld [vmem:[%s3442 + $0x54] sm:$0xf]
        %v4174 = vld [vmem:[%s3442 + $0x58] sm:$0x1]
        %v4175 = vld [vmem:[%s3442 + $0x68] sm:$0xf]
        %v4176 = vld [vmem:[%s3442 + $0x6c] sm:$0xf]
        %v4177 = vld [vmem:[%s3442 + $0x70] sm:$0x1]
        %v4178 = vld [vmem:[%s3442 + $0x80] sm:$0xf]
        %v4179 = vld [vmem:[%s3442 + $0x84] sm:$0xf]
        %v4180 = vld [vmem:[%s3442 + $0x88] sm:$0x1]
        %v4181 = vld [vmem:[%s3442 + $0x98] sm:$0xf]
        %v4182 = vld [vmem:[%s3442 + $0x9c] sm:$0xf]
        %v4183 = vld [vmem:[%s3442 + $0xa0] sm:$0x1]
        %v4184 = vld [vmem:[%s3442 + $0xb0] sm:$0xf]
        %v4185 = vld [vmem:[%s3442 + $0xb4] sm:$0xf]
        %v4186 = vld [vmem:[%s3442 + $0xb8] sm:$0x1]
        %v4187 = vld [vmem:[%s3442 + $0xc8] sm:$0xf]
        %v4188 = vld [vmem:[%s3442 + $0xcc] sm:$0xf]
        %v4189 = vld [vmem:[%s3442 + $0xd0] sm:$0x1]
        %v4190 = vld [vmem:[%s3442 + $0xe0] sm:$0xf]
        %v4191 = vld [vmem:[%s3442 + $0xe4] sm:$0xf]
        %v4192 = vld [vmem:[%s3442 + $0xe8] sm:$0x1]
        %v4193 = vld [vmem:[%s3442 + $0xf8] sm:$0xf]
        %v4194 = vld [vmem:[%s3442 + $0xfc] sm:$0xf]
        %v4195 = vld [vmem:[%s3442 + $0x100] sm:$0x1]
        %v4196 = vld [vmem:[%s3442 + $0x110] sm:$0xf]
        %v4197 = vld [vmem:[%s3442 + $0x114] sm:$0xf]
        %v4198 = vld [vmem:[%s3442 + $0x118] sm:$0x1]
        %v4199 = vld [vmem:[%s3442 + $0x128] sm:$0xf]
        %v4200 = vld [vmem:[%s3442 + $0x12c] sm:$0xf]
        %v4201 = vld [vmem:[%s3442 + $0x130] sm:$0x1]
        %v4202 = vld [vmem:[%s3442 + $0x140] sm:$0xf]
        %v4203 = vld [vmem:[%s3442 + $0x144] sm:$0xf]
        %v4204 = vld [vmem:[%s3442 + $0x148] sm:$0x1]
        %v4205 = vld [vmem:[%s3442 + $0x158] sm:$0xf]
        %v4206 = vld [vmem:[%s3442 + $0x15c] sm:$0xf]
        %v4207 = vld [vmem:[%s3442 + $0x160] sm:$0x1]
        %v4208 = vld [vmem:[%s3442 + $0x170] sm:$0xf]
        %v4209 = vld [vmem:[%s3442 + $0x174] sm:$0xf]
        %v4210 = vld [vmem:[%s3442 + $0x178] sm:$0x1]
        %v4212 = vshrl.u32 %v4163, 16
        %v4214 = vrot.slane %v4212, 4
        %v4215 = vshll.u32 %v4163, 16
        %v4217 = vrot.slane %v4215, 5
        %v4218 = vor.u32 %v4214, %v4217
        %v4219 = vrot.slane %v4218, 4
        %v4221 = vshll.u32 %v4164, 16
        %v4223 = vrot.slane %v4221, 5
        %v4224 = vsel %vm1775, %v4219, %v4223
        %v4225 = vshrl.u32 %v4164, 16
        %v4227 = vrot.slane %v4225, 4
        %v4228 = vor.u32 %v4227, %v4223
        %v4229 = vrot.slane %v4228, 4
        %v4231 = vshll.u32 %v4165, 16
        %v4233 = vrot.slane %v4231, 5
        %v4234 = vsel %vm1775, %v4229, %v4233
        %v4236 = vshrl.u32 %v4166, 16
        %v4238 = vrot.slane %v4236, 4
        %v4239 = vshll.u32 %v4166, 16
        %v4241 = vrot.slane %v4239, 5
        %v4242 = vor.u32 %v4238, %v4241
        %v4243 = vrot.slane %v4242, 4
        %v4245 = vshll.u32 %v4167, 16
        %v4247 = vrot.slane %v4245, 5
        %v4248 = vsel %vm1775, %v4243, %v4247
        %v4249 = vshrl.u32 %v4167, 16
        %v4251 = vrot.slane %v4249, 4
        %v4252 = vor.u32 %v4251, %v4247
        %v4253 = vrot.slane %v4252, 4
        %v4255 = vshll.u32 %v4168, 16
        %v4257 = vrot.slane %v4255, 5
        %v4258 = vsel %vm1775, %v4253, %v4257
        %v4260 = vshrl.u32 %v4169, 16
        %v4262 = vrot.slane %v4260, 4
        %v4263 = vshll.u32 %v4169, 16
        %v4265 = vrot.slane %v4263, 5
        %v4266 = vor.u32 %v4262, %v4265
        %v4267 = vrot.slane %v4266, 4
        %v4269 = vshll.u32 %v4170, 16
        %v4271 = vrot.slane %v4269, 5
        %v4272 = vsel %vm1775, %v4267, %v4271
        %v4273 = vshrl.u32 %v4170, 16
        %v4275 = vrot.slane %v4273, 4
        %v4276 = vor.u32 %v4275, %v4271
        %v4277 = vrot.slane %v4276, 4
        %v4279 = vshll.u32 %v4171, 16
        %v4281 = vrot.slane %v4279, 5
        %v4282 = vsel %vm1775, %v4277, %v4281
        %v4284 = vshrl.u32 %v4172, 16
        %v4286 = vrot.slane %v4284, 4
        %v4287 = vshll.u32 %v4172, 16
        %v4289 = vrot.slane %v4287, 5
        %v4290 = vor.u32 %v4286, %v4289
        %v4291 = vrot.slane %v4290, 4
        %v4293 = vshll.u32 %v4173, 16
        %v4295 = vrot.slane %v4293, 5
        %v4296 = vsel %vm1775, %v4291, %v4295
        %v4297 = vshrl.u32 %v4173, 16
        %v4299 = vrot.slane %v4297, 4
        %v4300 = vor.u32 %v4299, %v4295
        %v4301 = vrot.slane %v4300, 4
        %v4303 = vshll.u32 %v4174, 16
        %v4305 = vrot.slane %v4303, 5
        %v4306 = vsel %vm1775, %v4301, %v4305
        %v4308 = vshrl.u32 %v4175, 16
        %v4310 = vrot.slane %v4308, 4
        %v4311 = vshll.u32 %v4175, 16
        %v4313 = vrot.slane %v4311, 5
        %v4314 = vor.u32 %v4310, %v4313
        %v4315 = vrot.slane %v4314, 4
        %v4317 = vshll.u32 %v4176, 16
        %v4319 = vrot.slane %v4317, 5
        %v4320 = vsel %vm1775, %v4315, %v4319
        %v4321 = vshrl.u32 %v4176, 16
        %v4323 = vrot.slane %v4321, 4
        %v4324 = vor.u32 %v4323, %v4319
        %v4325 = vrot.slane %v4324, 4
        %v4327 = vshll.u32 %v4177, 16
        %v4329 = vrot.slane %v4327, 5
        %v4330 = vsel %vm1775, %v4325, %v4329
        %v4332 = vshrl.u32 %v4178, 16
        %v4334 = vrot.slane %v4332, 4
        %v4335 = vshll.u32 %v4178, 16
        %v4337 = vrot.slane %v4335, 5
        %v4338 = vor.u32 %v4334, %v4337
        %v4339 = vrot.slane %v4338, 4
        %v4341 = vshll.u32 %v4179, 16
        %v4343 = vrot.slane %v4341, 5
        %v4344 = vsel %vm1775, %v4339, %v4343
        %v4345 = vshrl.u32 %v4179, 16
        %v4347 = vrot.slane %v4345, 4
        %v4348 = vor.u32 %v4347, %v4343
        %v4349 = vrot.slane %v4348, 4
        %v4351 = vshll.u32 %v4180, 16
        %v4353 = vrot.slane %v4351, 5
        %v4354 = vsel %vm1775, %v4349, %v4353
        %v4356 = vshrl.u32 %v4181, 16
        %v4358 = vrot.slane %v4356, 4
        %v4359 = vshll.u32 %v4181, 16
        %v4361 = vrot.slane %v4359, 5
        %v4362 = vor.u32 %v4358, %v4361
        %v4363 = vrot.slane %v4362, 4
        %v4365 = vshll.u32 %v4182, 16
        %v4367 = vrot.slane %v4365, 5
        %v4368 = vsel %vm1775, %v4363, %v4367
        %v4369 = vshrl.u32 %v4182, 16
        %v4371 = vrot.slane %v4369, 4
        %v4372 = vor.u32 %v4371, %v4367
        %v4373 = vrot.slane %v4372, 4
        %v4375 = vshll.u32 %v4183, 16
        %v4377 = vrot.slane %v4375, 5
        %v4378 = vsel %vm1775, %v4373, %v4377
        %v4380 = vshrl.u32 %v4184, 16
        %v4382 = vrot.slane %v4380, 4
        %v4383 = vshll.u32 %v4184, 16
        %v4385 = vrot.slane %v4383, 5
        %v4386 = vor.u32 %v4382, %v4385
        %v4387 = vrot.slane %v4386, 4
        %v4389 = vshll.u32 %v4185, 16
        %v4391 = vrot.slane %v4389, 5
        %v4392 = vsel %vm1775, %v4387, %v4391
        %v4393 = vshrl.u32 %v4185, 16
        %v4395 = vrot.slane %v4393, 4
        %v4396 = vor.u32 %v4395, %v4391
        %v4397 = vrot.slane %v4396, 4
        %v4399 = vshll.u32 %v4186, 16
        %v4401 = vrot.slane %v4399, 5
        %v4402 = vsel %vm1775, %v4397, %v4401
        %v4404 = vshrl.u32 %v4187, 16
        %v4406 = vrot.slane %v4404, 4
        %v4407 = vshll.u32 %v4187, 16
        %v4409 = vrot.slane %v4407, 5
        %v4410 = vor.u32 %v4406, %v4409
        %v4411 = vrot.slane %v4410, 4
        %v4413 = vshll.u32 %v4188, 16
        %v4415 = vrot.slane %v4413, 5
        %v4416 = vsel %vm1775, %v4411, %v4415
        %v4417 = vshrl.u32 %v4188, 16
        %v4419 = vrot.slane %v4417, 4
        %v4420 = vor.u32 %v4419, %v4415
        %v4421 = vrot.slane %v4420, 4
        %v4423 = vshll.u32 %v4189, 16
        %v4425 = vrot.slane %v4423, 5
        %v4426 = vsel %vm1775, %v4421, %v4425
        %v4428 = vshrl.u32 %v4190, 16
        %v4430 = vrot.slane %v4428, 4
        %v4431 = vshll.u32 %v4190, 16
        %v4433 = vrot.slane %v4431, 5
        %v4434 = vor.u32 %v4430, %v4433
        %v4435 = vrot.slane %v4434, 4
        %v4437 = vshll.u32 %v4191, 16
        %v4439 = vrot.slane %v4437, 5
        %v4440 = vsel %vm1775, %v4435, %v4439
        %v4441 = vshrl.u32 %v4191, 16
        %v4443 = vrot.slane %v4441, 4
        %v4444 = vor.u32 %v4443, %v4439
        %v4445 = vrot.slane %v4444, 4
        %v4447 = vshll.u32 %v4192, 16
        %v4449 = vrot.slane %v4447, 5
        %v4450 = vsel %vm1775, %v4445, %v4449
        %v4452 = vshrl.u32 %v4193, 16
        %v4454 = vrot.slane %v4452, 4
        %v4455 = vshll.u32 %v4193, 16
        %v4457 = vrot.slane %v4455, 5
        %v4458 = vor.u32 %v4454, %v4457
        %v4459 = vrot.slane %v4458, 4
        %v4461 = vshll.u32 %v4194, 16
        %v4463 = vrot.slane %v4461, 5
        %v4464 = vsel %vm1775, %v4459, %v4463
        %v4465 = vshrl.u32 %v4194, 16
        %v4467 = vrot.slane %v4465, 4
        %v4468 = vor.u32 %v4467, %v4463
        %v4469 = vrot.slane %v4468, 4
        %v4471 = vshll.u32 %v4195, 16
        %v4473 = vrot.slane %v4471, 5
        %v4474 = vsel %vm1775, %v4469, %v4473
        %v4476 = vshrl.u32 %v4196, 16
        %v4478 = vrot.slane %v4476, 4
        %v4479 = vshll.u32 %v4196, 16
        %v4481 = vrot.slane %v4479, 5
        %v4482 = vor.u32 %v4478, %v4481
        %v4483 = vrot.slane %v4482, 4
        %v4485 = vshll.u32 %v4197, 16
        %v4487 = vrot.slane %v4485, 5
        %v4488 = vsel %vm1775, %v4483, %v4487
        %v4489 = vshrl.u32 %v4197, 16
        %v4491 = vrot.slane %v4489, 4
        %v4492 = vor.u32 %v4491, %v4487
        %v4493 = vrot.slane %v4492, 4
        %v4495 = vshll.u32 %v4198, 16
        %v4497 = vrot.slane %v4495, 5
        %v4498 = vsel %vm1775, %v4493, %v4497
        %v4500 = vshrl.u32 %v4199, 16
        %v4502 = vrot.slane %v4500, 4
        %v4503 = vshll.u32 %v4199, 16
        %v4505 = vrot.slane %v4503, 5
        %v4506 = vor.u32 %v4502, %v4505
        %v4507 = vrot.slane %v4506, 4
        %v4509 = vshll.u32 %v4200, 16
        %v4511 = vrot.slane %v4509, 5
        %v4512 = vsel %vm1775, %v4507, %v4511
        %v4513 = vshrl.u32 %v4200, 16
        %v4515 = vrot.slane %v4513, 4
        %v4516 = vor.u32 %v4515, %v4511
        %v4517 = vrot.slane %v4516, 4
        %v4519 = vshll.u32 %v4201, 16
        %v4521 = vrot.slane %v4519, 5
        %v4522 = vsel %vm1775, %v4517, %v4521
        %v4524 = vshrl.u32 %v4202, 16
        %v4526 = vrot.slane %v4524, 4
        %v4527 = vshll.u32 %v4202, 16
        %v4529 = vrot.slane %v4527, 5
        %v4530 = vor.u32 %v4526, %v4529
        %v4531 = vrot.slane %v4530, 4
        %v4533 = vshll.u32 %v4203, 16
        %v4535 = vrot.slane %v4533, 5
        %v4536 = vsel %vm1775, %v4531, %v4535
        %v4537 = vshrl.u32 %v4203, 16
        %v4539 = vrot.slane %v4537, 4
        %v4540 = vor.u32 %v4539, %v4535
        %v4541 = vrot.slane %v4540, 4
        %v4543 = vshll.u32 %v4204, 16
        %v4545 = vrot.slane %v4543, 5
        %v4546 = vsel %vm1775, %v4541, %v4545
        %v4548 = vshrl.u32 %v4205, 16
        %v4550 = vrot.slane %v4548, 4
        %v4551 = vshll.u32 %v4205, 16
        %v4553 = vrot.slane %v4551, 5
        %v4554 = vor.u32 %v4550, %v4553
        %v4555 = vrot.slane %v4554, 4
        %v4557 = vshll.u32 %v4206, 16
        %v4559 = vrot.slane %v4557, 5
        %v4560 = vsel %vm1775, %v4555, %v4559
        %v4561 = vshrl.u32 %v4206, 16
        %v4563 = vrot.slane %v4561, 4
        %v4564 = vor.u32 %v4563, %v4559
        %v4565 = vrot.slane %v4564, 4
        %v4567 = vshll.u32 %v4207, 16
        %v4569 = vrot.slane %v4567, 5
        %v4570 = vsel %vm1775, %v4565, %v4569
        %v4572 = vshrl.u32 %v4208, 16
        %v4574 = vrot.slane %v4572, 4
        %v4575 = vshll.u32 %v4208, 16
        %v4577 = vrot.slane %v4575, 5
        %v4578 = vor.u32 %v4574, %v4577
        %v4579 = vrot.slane %v4578, 4
        %v4581 = vshll.u32 %v4209, 16
        %v4583 = vrot.slane %v4581, 5
        %v4584 = vsel %vm1775, %v4579, %v4583
        %v4585 = vshrl.u32 %v4209, 16
        %v4587 = vrot.slane %v4585, 4
        %v4588 = vor.u32 %v4587, %v4583
        %v4589 = vrot.slane %v4588, 4
        %v4591 = vshll.u32 %v4210, 16
        %v4593 = vrot.slane %v4591, 5
        %v4594 = vsel %vm1775, %v4589, %v4593
        %4627 = vst.msk [vmem:[#allocation3 + $0x8] sm:$0xf] %vm777, %v4224
        %4628 = vst.msk [vmem:[#allocation3 + $0x14] sm:$0xf] %vm777, %v4234
        %4629 = vst.msk [vmem:[#allocation3 + $0x20] sm:$0xf] %vm777, %v4248
        %4630 = vst.msk [vmem:[#allocation3 + $0x2c] sm:$0xf] %vm777, %v4258
        %4631 = vst.msk [vmem:[#allocation3 + $0x38] sm:$0xf] %vm777, %v4272
        %4632 = vst.msk [vmem:[#allocation3 + $0x44] sm:$0xf] %vm777, %v4282
        %4633 = vst.msk [vmem:[#allocation3 + $0x50] sm:$0xf] %vm777, %v4296
        %4634 = vst.msk [vmem:[#allocation3 + $0x5c] sm:$0xf] %vm777, %v4306
        %4635 = vst.msk [vmem:[#allocation3 + $0x68] sm:$0xf] %vm777, %v4320
        %4636 = vst.msk [vmem:[#allocation3 + $0x74] sm:$0xf] %vm777, %v4330
        %4637 = vst.msk [vmem:[#allocation3 + $0x80] sm:$0xf] %vm777, %v4344
        %4638 = vst.msk [vmem:[#allocation3 + $0x8c] sm:$0xf] %vm777, %v4354
        %4639 = vst.msk [vmem:[#allocation3 + $0x98] sm:$0xf] %vm777, %v4368
        %4640 = vst.msk [vmem:[#allocation3 + $0xa4] sm:$0xf] %vm777, %v4378
        %4641 = vst.msk [vmem:[#allocation3 + $0xb0] sm:$0xf] %vm777, %v4392
        %4642 = vst.msk [vmem:[#allocation3 + $0xbc] sm:$0xf] %vm777, %v4402
        %4643 = vst.msk [vmem:[#allocation3 + $0xc8] sm:$0xf] %vm777, %v4416
        %4644 = vst.msk [vmem:[#allocation3 + $0xd4] sm:$0xf] %vm777, %v4426
        %4645 = vst.msk [vmem:[#allocation3 + $0xe0] sm:$0xf] %vm777, %v4440
        %4646 = vst.msk [vmem:[#allocation3 + $0xec] sm:$0xf] %vm777, %v4450
        %4647 = vst.msk [vmem:[#allocation3 + $0xf8] sm:$0xf] %vm777, %v4464
        %4648 = vst.msk [vmem:[#allocation3 + $0x104] sm:$0xf] %vm777, %v4474
        %4649 = vst.msk [vmem:[#allocation3 + $0x110] sm:$0xf] %vm777, %v4488
        %4650 = vst.msk [vmem:[#allocation3 + $0x11c] sm:$0xf] %vm777, %v4498
        %4651 = vst.msk [vmem:[#allocation3 + $0x128] sm:$0xf] %vm777, %v4512
        %4652 = vst.msk [vmem:[#allocation3 + $0x134] sm:$0xf] %vm777, %v4522
        %4653 = vst.msk [vmem:[#allocation3 + $0x140] sm:$0xf] %vm777, %v4536
        %4654 = vst.msk [vmem:[#allocation3 + $0x14c] sm:$0xf] %vm777, %v4546
        %4655 = vst.msk [vmem:[#allocation3 + $0x158] sm:$0xf] %vm777, %v4560
        %4656 = vst.msk [vmem:[#allocation3 + $0x164] sm:$0xf] %vm777, %v4570
        %4657 = vst.msk [vmem:[#allocation3 + $0x170] sm:$0xf] %vm777, %v4584
        %4658 = vst.msk [vmem:[#allocation3 + $0x17c] sm:$0xf] %vm777, %v4594
        %v4659 = vld [vmem:[#allocation3] sm:$0xff]
        %v4660 = vld [vmem:[#allocation3 + $0x8] sm:$0xf]
        %v4661 = vld [vmem:[#allocation3 + $0xc] sm:$0xff]
        %v4662 = vld [vmem:[#allocation3 + $0x14] sm:$0xf]
        %v4663 = vld [vmem:[#allocation3 + $0x18] sm:$0xff]
        %v4664 = vld [vmem:[#allocation3 + $0x20] sm:$0xf]
        %v4665 = vld [vmem:[#allocation3 + $0x24] sm:$0xff]
        %v4666 = vld [vmem:[#allocation3 + $0x2c] sm:$0xf]
        %v4667 = vld [vmem:[#allocation3 + $0x30] sm:$0xff]
        %v4668 = vld [vmem:[#allocation3 + $0x38] sm:$0xf]
        %v4669 = vld [vmem:[#allocation3 + $0x3c] sm:$0xff]
        %v4670 = vld [vmem:[#allocation3 + $0x44] sm:$0xf]
        %v4671 = vld [vmem:[#allocation3 + $0x48] sm:$0xff]
        %v4672 = vld [vmem:[#allocation3 + $0x50] sm:$0xf]
        %v4673 = vld [vmem:[#allocation3 + $0x54] sm:$0xff]
        %v4674 = vld [vmem:[#allocation3 + $0x5c] sm:$0xf]
        %v4675 = vld [vmem:[#allocation3 + $0x60] sm:$0xff]
        %v4676 = vld [vmem:[#allocation3 + $0x68] sm:$0xf]
        %v4677 = vld [vmem:[#allocation3 + $0x6c] sm:$0xff]
        %v4678 = vld [vmem:[#allocation3 + $0x74] sm:$0xf]
        %v4679 = vld [vmem:[#allocation3 + $0x78] sm:$0xff]
        %v4680 = vld [vmem:[#allocation3 + $0x80] sm:$0xf]
        %v4681 = vld [vmem:[#allocation3 + $0x84] sm:$0xff]
        %v4682 = vld [vmem:[#allocation3 + $0x8c] sm:$0xf]
        %v4683 = vld [vmem:[#allocation3 + $0x90] sm:$0xff]
        %v4684 = vld [vmem:[#allocation3 + $0x98] sm:$0xf]
        %v4685 = vld [vmem:[#allocation3 + $0x9c] sm:$0xff]
        %v4686 = vld [vmem:[#allocation3 + $0xa4] sm:$0xf]
        %v4687 = vld [vmem:[#allocation3 + $0xa8] sm:$0xff]
        %v4688 = vld [vmem:[#allocation3 + $0xb0] sm:$0xf]
        %v4689 = vld [vmem:[#allocation3 + $0xb4] sm:$0xff]
        %v4690 = vld [vmem:[#allocation3 + $0xbc] sm:$0xf]
        %v4691 = vld [vmem:[#allocation3 + $0xc0] sm:$0xff]
        %v4692 = vld [vmem:[#allocation3 + $0xc8] sm:$0xf]
        %v4693 = vld [vmem:[#allocation3 + $0xcc] sm:$0xff]
        %v4694 = vld [vmem:[#allocation3 + $0xd4] sm:$0xf]
        %v4695 = vld [vmem:[#allocation3 + $0xd8] sm:$0xff]
        %v4696 = vld [vmem:[#allocation3 + $0xe0] sm:$0xf]
        %v4697 = vld [vmem:[#allocation3 + $0xe4] sm:$0xff]
        %v4698 = vld [vmem:[#allocation3 + $0xec] sm:$0xf]
        %v4699 = vld [vmem:[#allocation3 + $0xf0] sm:$0xff]
        %v4700 = vld [vmem:[#allocation3 + $0xf8] sm:$0xf]
        %v4701 = vld [vmem:[#allocation3 + $0xfc] sm:$0xff]
        %v4702 = vld [vmem:[#allocation3 + $0x104] sm:$0xf]
        %v4703 = vld [vmem:[#allocation3 + $0x108] sm:$0xff]
        %v4704 = vld [vmem:[#allocation3 + $0x110] sm:$0xf]
        %v4705 = vld [vmem:[#allocation3 + $0x114] sm:$0xff]
        %v4706 = vld [vmem:[#allocation3 + $0x11c] sm:$0xf]
        %v4707 = vld [vmem:[#allocation3 + $0x120] sm:$0xff]
        %v4708 = vld [vmem:[#allocation3 + $0x128] sm:$0xf]
        %v4709 = vld [vmem:[#allocation3 + $0x12c] sm:$0xff]
        %v4710 = vld [vmem:[#allocation3 + $0x134] sm:$0xf]
        %v4711 = vld [vmem:[#allocation3 + $0x138] sm:$0xff]
        %v4712 = vld [vmem:[#allocation3 + $0x140] sm:$0xf]
        %v4713 = vld [vmem:[#allocation3 + $0x144] sm:$0xff]
        %v4714 = vld [vmem:[#allocation3 + $0x14c] sm:$0xf]
        %v4715 = vld [vmem:[#allocation3 + $0x150] sm:$0xff]
        %v4716 = vld [vmem:[#allocation3 + $0x158] sm:$0xf]
        %v4717 = vld [vmem:[#allocation3 + $0x15c] sm:$0xff]
        %v4718 = vld [vmem:[#allocation3 + $0x164] sm:$0xf]
        %v4719 = vld [vmem:[#allocation3 + $0x168] sm:$0xff]
        %v4720 = vld [vmem:[#allocation3 + $0x170] sm:$0xf]
        %v4721 = vld [vmem:[#allocation3 + $0x174] sm:$0xff]
        %v4722 = vld [vmem:[#allocation3 + $0x17c] sm:$0xf]
        %v4723 = vld [vmem:[#allocation7] sm:$0xf]
        %v4724 = vld [vmem:[#allocation7 + $0x4] sm:$0xf]
        %v4725 = vld [vmem:[#allocation7 + $0x8] sm:$0xf]
        %v4726 = vld [vmem:[#allocation7 + $0xc] sm:$0xf]
        %v4727 = vld [vmem:[#allocation7 + $0x10] sm:$0xf]
        %v4728 = vld [vmem:[#allocation7 + $0x14] sm:$0xf]
        %v4729 = vld [vmem:[#allocation7 + $0x18] sm:$0xf]
        %v4730 = vld [vmem:[#allocation7 + $0x1c] sm:$0xf]
        %v4731 = vld [vmem:[#allocation7 + $0x20] sm:$0xf]
        %v4732 = vld [vmem:[#allocation7 + $0x24] sm:$0xf]
        %v4733 = vld [vmem:[#allocation7 + $0x28] sm:$0xf]
        %v4734 = vld [vmem:[#allocation7 + $0x2c] sm:$0xf]
        %v4735 = vld [vmem:[#allocation7 + $0x30] sm:$0xf]
        %v4736 = vld [vmem:[#allocation7 + $0x34] sm:$0xf]
        %v4737 = vld [vmem:[#allocation7 + $0x38] sm:$0xf]
        %v4738 = vld [vmem:[#allocation7 + $0x3c] sm:$0xf]
        %v4739 = vld [vmem:[#allocation7 + $0x40] sm:$0xf]
        %v4740 = vld [vmem:[#allocation7 + $0x44] sm:$0xf]
        %v4741 = vld [vmem:[#allocation7 + $0x48] sm:$0xf]
        %v4742 = vld [vmem:[#allocation7 + $0x4c] sm:$0xf]
        %v4743 = vld [vmem:[#allocation7 + $0x50] sm:$0xf]
        %v4744 = vld [vmem:[#allocation7 + $0x54] sm:$0xf]
        %v4745 = vld [vmem:[#allocation7 + $0x58] sm:$0xf]
        %v4746 = vld [vmem:[#allocation7 + $0x5c] sm:$0xf]
        %v4747 = vld [vmem:[#allocation7 + $0x60] sm:$0xf]
        %v4748 = vld [vmem:[#allocation7 + $0x64] sm:$0xf]
        %v4749 = vld [vmem:[#allocation7 + $0x68] sm:$0xf]
        %v4750 = vld [vmem:[#allocation7 + $0x6c] sm:$0xf]
        %v4751 = vld [vmem:[#allocation7 + $0x70] sm:$0xf]
        %v4752 = vld [vmem:[#allocation7 + $0x74] sm:$0xf]
        %v4753 = vld [vmem:[#allocation7 + $0x78] sm:$0xf]
        %v4754 = vld [vmem:[#allocation7 + $0x7c] sm:$0xf]
        %v4755 = vld [vmem:[#allocation7 + $0x80] sm:$0xf]
        %v4756 = vld [vmem:[#allocation7 + $0x84] sm:$0xf]
        %v4757 = vld [vmem:[#allocation7 + $0x88] sm:$0xf]
        %v4758 = vld [vmem:[#allocation7 + $0x8c] sm:$0xf]
        %v4823 = vunpack.c.l.b16 %v4659
        %v4824 = vunpack.c.h.b16 %v4659
        %v4825 = vunpack.c.l.b16 %v4660
        %v4826 = vunpack.c.l.b16 %v4661
        %v4827 = vunpack.c.h.b16 %v4661
        %v4828 = vunpack.c.l.b16 %v4662
        %v4829 = vunpack.c.l.b16 %v4663
        %v4830 = vunpack.c.h.b16 %v4663
        %v4831 = vunpack.c.l.b16 %v4664
        %v4832 = vunpack.c.l.b16 %v4665
        %v4833 = vunpack.c.h.b16 %v4665
        %v4834 = vunpack.c.l.b16 %v4666
        %v4835 = vunpack.c.l.b16 %v4667
        %v4836 = vunpack.c.h.b16 %v4667
        %v4837 = vunpack.c.l.b16 %v4668
        %v4838 = vunpack.c.l.b16 %v4669
        %v4839 = vunpack.c.h.b16 %v4669
        %v4840 = vunpack.c.l.b16 %v4670
        %v4841 = vunpack.c.l.b16 %v4671
        %v4842 = vunpack.c.h.b16 %v4671
        %v4843 = vunpack.c.l.b16 %v4672
        %v4844 = vunpack.c.l.b16 %v4673
        %v4845 = vunpack.c.h.b16 %v4673
        %v4846 = vunpack.c.l.b16 %v4674
        %v4847 = vunpack.c.l.b16 %v4675
        %v4848 = vunpack.c.h.b16 %v4675
        %v4849 = vunpack.c.l.b16 %v4676
        %v4850 = vunpack.c.l.b16 %v4677
        %v4851 = vunpack.c.h.b16 %v4677
        %v4852 = vunpack.c.l.b16 %v4678
        %v4853 = vunpack.c.l.b16 %v4679
        %v4854 = vunpack.c.h.b16 %v4679
        %v4855 = vunpack.c.l.b16 %v4680
        %v4856 = vunpack.c.l.b16 %v4681
        %v4857 = vunpack.c.h.b16 %v4681
        %v4858 = vunpack.c.l.b16 %v4682
        %v4859 = vunpack.c.l.b16 %v4683
        %v4860 = vunpack.c.h.b16 %v4683
        %v4861 = vunpack.c.l.b16 %v4684
        %v4862 = vunpack.c.l.b16 %v4685
        %v4863 = vunpack.c.h.b16 %v4685
        %v4864 = vunpack.c.l.b16 %v4686
        %v4865 = vunpack.c.l.b16 %v4687
        %v4866 = vunpack.c.h.b16 %v4687
        %v4867 = vunpack.c.l.b16 %v4688
        %v4868 = vunpack.c.l.b16 %v4689
        %v4869 = vunpack.c.h.b16 %v4689
        %v4870 = vunpack.c.l.b16 %v4690
        %v4871 = vunpack.c.l.b16 %v4691
        %v4872 = vunpack.c.h.b16 %v4691
        %v4873 = vunpack.c.l.b16 %v4692
        %v4874 = vunpack.c.l.b16 %v4693
        %v4875 = vunpack.c.h.b16 %v4693
        %v4876 = vunpack.c.l.b16 %v4694
        %v4877 = vunpack.c.l.b16 %v4695
        %v4878 = vunpack.c.h.b16 %v4695
        %v4879 = vunpack.c.l.b16 %v4696
        %v4880 = vunpack.c.l.b16 %v4697
        %v4881 = vunpack.c.h.b16 %v4697
        %v4882 = vunpack.c.l.b16 %v4698
        %v4883 = vunpack.c.l.b16 %v4699
        %v4884 = vunpack.c.h.b16 %v4699
        %v4885 = vunpack.c.l.b16 %v4700
        %v4886 = vunpack.c.l.b16 %v4701
        %v4887 = vunpack.c.h.b16 %v4701
        %v4888 = vunpack.c.l.b16 %v4702
        %v4889 = vunpack.c.l.b16 %v4703
        %v4890 = vunpack.c.h.b16 %v4703
        %v4891 = vunpack.c.l.b16 %v4704
        %v4892 = vunpack.c.l.b16 %v4705
        %v4893 = vunpack.c.h.b16 %v4705
        %v4894 = vunpack.c.l.b16 %v4706
        %v4895 = vunpack.c.l.b16 %v4707
        %v4896 = vunpack.c.h.b16 %v4707
        %v4897 = vunpack.c.l.b16 %v4708
        %v4898 = vunpack.c.l.b16 %v4709
        %v4899 = vunpack.c.h.b16 %v4709
        %v4900 = vunpack.c.l.b16 %v4710
        %v4901 = vunpack.c.l.b16 %v4711
        %v4902 = vunpack.c.h.b16 %v4711
        %v4903 = vunpack.c.l.b16 %v4712
        %v4904 = vunpack.c.l.b16 %v4713
        %v4905 = vunpack.c.h.b16 %v4713
        %v4906 = vunpack.c.l.b16 %v4714
        %v4907 = vunpack.c.l.b16 %v4715
        %v4908 = vunpack.c.h.b16 %v4715
        %v4909 = vunpack.c.l.b16 %v4716
        %v4910 = vunpack.c.l.b16 %v4717
        %v4911 = vunpack.c.h.b16 %v4717
        %v4912 = vunpack.c.l.b16 %v4718
        %v4913 = vunpack.c.l.b16 %v4719
        %v4914 = vunpack.c.h.b16 %v4719
        %v4915 = vunpack.c.l.b16 %v4720
        %v4916 = vunpack.c.l.b16 %v4721
        %v4917 = vunpack.c.h.b16 %v4721
        %v4918 = vunpack.c.l.b16 %v4722
        %v4919 = vpack.c.b16 %v4826, %v4823
        %v4920 = vpack.c.b16 %v4827, %v4824
        %v4921 = vpack.c.b16 %v4828, %v4825
        %v4922 = vpack.c.b16 %v4832, %v4829
        %v4923 = vpack.c.b16 %v4833, %v4830
        %v4924 = vpack.c.b16 %v4834, %v4831
        %v4925 = vpack.c.b16 %v4838, %v4835
        %v4926 = vpack.c.b16 %v4839, %v4836
        %v4927 = vpack.c.b16 %v4840, %v4837
        %v4928 = vpack.c.b16 %v4844, %v4841
        %v4929 = vpack.c.b16 %v4845, %v4842
        %v4930 = vpack.c.b16 %v4846, %v4843
        %v4931 = vpack.c.b16 %v4850, %v4847
        %v4932 = vpack.c.b16 %v4851, %v4848
        %v4933 = vpack.c.b16 %v4852, %v4849
        %v4934 = vpack.c.b16 %v4856, %v4853
        %v4935 = vpack.c.b16 %v4857, %v4854
        %v4936 = vpack.c.b16 %v4858, %v4855
        %v4937 = vpack.c.b16 %v4862, %v4859
        %v4938 = vpack.c.b16 %v4863, %v4860
        %v4939 = vpack.c.b16 %v4864, %v4861
        %v4940 = vpack.c.b16 %v4868, %v4865
        %v4941 = vpack.c.b16 %v4869, %v4866
        %v4942 = vpack.c.b16 %v4870, %v4867
        %v4943 = vpack.c.b16 %v4874, %v4871
        %v4944 = vpack.c.b16 %v4875, %v4872
        %v4945 = vpack.c.b16 %v4876, %v4873
        %v4946 = vpack.c.b16 %v4880, %v4877
        %v4947 = vpack.c.b16 %v4881, %v4878
        %v4948 = vpack.c.b16 %v4882, %v4879
        %v4949 = vpack.c.b16 %v4886, %v4883
        %v4950 = vpack.c.b16 %v4887, %v4884
        %v4951 = vpack.c.b16 %v4888, %v4885
        %v4952 = vpack.c.b16 %v4892, %v4889
        %v4953 = vpack.c.b16 %v4893, %v4890
        %v4954 = vpack.c.b16 %v4894, %v4891
        %v4955 = vpack.c.b16 %v4898, %v4895
        %v4956 = vpack.c.b16 %v4899, %v4896
        %v4957 = vpack.c.b16 %v4900, %v4897
        %v4958 = vpack.c.b16 %v4904, %v4901
        %v4959 = vpack.c.b16 %v4905, %v4902
        %v4960 = vpack.c.b16 %v4906, %v4903
        %v4961 = vpack.c.b16 %v4910, %v4907
        %v4962 = vpack.c.b16 %v4911, %v4908
        %v4963 = vpack.c.b16 %v4912, %v4909
        %v4964 = vpack.c.b16 %v4916, %v4913
        %v4965 = vpack.c.b16 %v4917, %v4914
        %v4966 = vpack.c.b16 %v4918, %v4915
        %v5035 = vunpack.c.l.b16 %v4723
        %v5036 = vunpack.c.l.b16 %v4724
        %v5037 = vunpack.c.l.b16 %v4725
        %v5038 = vunpack.c.l.b16 %v4726
        %v5039 = vunpack.c.l.b16 %v4727
        %v5040 = vunpack.c.l.b16 %v4728
        %v5041 = vunpack.c.l.b16 %v4729
        %v5042 = vunpack.c.l.b16 %v4730
        %v5043 = vunpack.c.l.b16 %v4731
        %v5044 = vunpack.c.l.b16 %v4732
        %v5045 = vunpack.c.l.b16 %v4733
        %v5046 = vunpack.c.l.b16 %v4734
        %v5047 = vunpack.c.l.b16 %v4735
        %v5048 = vunpack.c.l.b16 %v4736
        %v5049 = vunpack.c.l.b16 %v4737
        %v5050 = vunpack.c.l.b16 %v4738
        %v5051 = vunpack.c.l.b16 %v4739
        %v5052 = vunpack.c.l.b16 %v4740
        %v5053 = vunpack.c.l.b16 %v4741
        %v5054 = vunpack.c.l.b16 %v4742
        %v5055 = vunpack.c.l.b16 %v4743
        %v5056 = vunpack.c.l.b16 %v4744
        %v5057 = vunpack.c.l.b16 %v4745
        %v5058 = vunpack.c.l.b16 %v4746
        %v5059 = vunpack.c.l.b16 %v4747
        %v5060 = vunpack.c.l.b16 %v4748
        %v5061 = vunpack.c.l.b16 %v4749
        %v5062 = vunpack.c.l.b16 %v4750
        %v5063 = vunpack.c.l.b16 %v4751
        %v5064 = vunpack.c.l.b16 %v4752
        %v5065 = vunpack.c.l.b16 %v4753
        %v5066 = vunpack.c.l.b16 %v4754
        %v5067 = vunpack.c.l.b16 %v4755
        %v5068 = vunpack.c.l.b16 %v4756
        %v5069 = vunpack.c.l.b16 %v4757
        %v5070 = vunpack.c.l.b16 %v4758
        %v5071 = vpack.c.b16 %v5036, %v5035
        %v5072 = vpack.c.b16 %v5038, %v5037
        %v5073 = vpack.c.b16 %v5040, %v5039
        %v5074 = vpack.c.b16 %v5042, %v5041
        %v5075 = vpack.c.b16 %v5044, %v5043
        %v5076 = vpack.c.b16 %v5046, %v5045
        %v5077 = vpack.c.b16 %v5048, %v5047
        %v5078 = vpack.c.b16 %v5050, %v5049
        %v5079 = vpack.c.b16 %v5052, %v5051
        %v5080 = vpack.c.b16 %v5054, %v5053
        %v5081 = vpack.c.b16 %v5056, %v5055
        %v5082 = vpack.c.b16 %v5058, %v5057
        %v5083 = vpack.c.b16 %v5060, %v5059
        %v5084 = vpack.c.b16 %v5062, %v5061
        %v5085 = vpack.c.b16 %v5064, %v5063
        %v5086 = vpack.c.b16 %v5066, %v5065
        %v5087 = vpack.c.b16 %v5068, %v5067
        %v5088 = vpack.c.b16 %v5070, %v5069
        %vm5107 = vcmask 261120
        %v5109 = vsel %vm5107, %v4921, 0
        %v5112 = vsel %vm5107, %v4924, 0
        %v5115 = vsel %vm5107, %v4927, 0
        %v5118 = vsel %vm5107, %v4930, 0
        %v5121 = vsel %vm5107, %v4933, 0
        %v5124 = vsel %vm5107, %v4936, 0
        %v5127 = vsel %vm5107, %v4939, 0
        %v5130 = vsel %vm5107, %v4942, 0
        %v5133 = vsel %vm5107, %v4945, 0
        %v5136 = vsel %vm5107, %v4948, 0
        %v5139 = vsel %vm5107, %v4951, 0
        %v5142 = vsel %vm5107, %v4954, 0
        %v5145 = vsel %vm5107, %v4957, 0
        %v5148 = vsel %vm5107, %v4960, 0
        %v5151 = vsel %vm5107, %v4963, 0
        %v5154 = vsel %vm5107, %v4966, 0
        %5156 = vmatprep.subr.bf16.mxu0 0
        %5157 = vmatpush1.bf16.msra.mxu0 %v5078
        %5158 = vmatprep.subr.bf16.mxu0 0
        %5159 = vmatpush1.bf16.msra.mxu0 %v5077
        %5160 = vmatprep.subr.bf16.mxu0 0
        %5161 = vmatpush1.bf16.msra.mxu0 %v5076
        %5162 = vmatprep.subr.bf16.mxu0 0
        %5163 = vmatpush1.bf16.msra.mxu0 %v5075
        %5164 = vmatprep.subr.bf16.mxu0 0
        %5165 = vmatpush1.bf16.msra.mxu0 %v5074
        %5166 = vmatprep.subr.bf16.mxu0 0
        %5167 = vmatpush1.bf16.msra.mxu0 %v5073
        %5168 = vmatprep.subr.bf16.mxu0 0
        %5169 = vmatpush1.bf16.msra.mxu0 %v5072
        %5170 = vmatprep.subr.bf16.mxu0 0
        %5171 = vmatpush1.bf16.msra.mxu0 %v5071
        %5172 = vmatprep.subr.bf16.mxu0 0
        %5173 = vmatpush2.bf16.msra.mxu0 %v5086
        %5174 = vmatprep.subr.bf16.mxu0 0
        %5175 = vmatpush2.bf16.msra.mxu0 %v5085
        %5176 = vmatprep.subr.bf16.mxu0 0
        %5177 = vmatpush2.bf16.msra.mxu0 %v5084
        %5178 = vmatprep.subr.bf16.mxu0 0
        %5179 = vmatpush2.bf16.msra.mxu0 %v5083
        %5180 = vmatprep.subr.bf16.mxu0 0
        %5181 = vmatpush2.bf16.msra.mxu0 %v5082
        %5182 = vmatprep.subr.bf16.mxu0 0
        %5183 = vmatpush2.bf16.msra.mxu0 %v5081
        %5184 = vmatprep.subr.bf16.mxu0 0
        %5185 = vmatpush2.bf16.msra.mxu0 %v5080
        %5186 = vmatprep.subr.bf16.mxu0 0
        %5187 = vmatpush2.bf16.msra.mxu0 %v5079
        %5188 = vmatprep.mubr.bf16.mxu0 %v4920
        %5189 = vmatmul.mubr.bf16.gmra.mxu0 %v4919
        %v5190 = vpop.f32.mrf.mxu0
        %v5191 = vadd.f32 0.0, %v5190
        %v5192 = vpop.f32.mrf.mxu0
        %v5193 = vpop.f32.mrf.mxu0
        %v5194 = vadd.f32 0.0, %v5193
        %v5195 = vpop.f32.mrf.mxu0
        %5196 = vmatprep.mubr.bf16.mxu0 %v4923
        %5197 = vmatmul.mubr.bf16.gmra.mxu0 %v4922
        %v5198 = vpop.f32.mrf.mxu0
        %v5199 = vadd.f32 0.0, %v5198
        %v5200 = vpop.f32.mrf.mxu0
        %v5201 = vpop.f32.mrf.mxu0
        %v5202 = vadd.f32 0.0, %v5201
        %v5203 = vpop.f32.mrf.mxu0
        %5204 = vmatprep.mubr.bf16.mxu0 %v4926
        %5205 = vmatmul.mubr.bf16.gmra.mxu0 %v4925
        %v5206 = vpop.f32.mrf.mxu0
        %v5207 = vadd.f32 0.0, %v5206
        %v5208 = vpop.f32.mrf.mxu0
        %v5209 = vpop.f32.mrf.mxu0
        %v5210 = vadd.f32 0.0, %v5209
        %v5211 = vpop.f32.mrf.mxu0
        %5212 = vmatprep.mubr.bf16.mxu0 %v4929
        %5213 = vmatmul.mubr.bf16.gmra.mxu0 %v4928
        %v5214 = vpop.f32.mrf.mxu0
        %v5215 = vadd.f32 0.0, %v5214
        %v5216 = vpop.f32.mrf.mxu0
        %v5217 = vpop.f32.mrf.mxu0
        %v5218 = vadd.f32 0.0, %v5217
        %v5219 = vpop.f32.mrf.mxu0
        %5220 = vmatprep.mubr.bf16.mxu0 %v4932
        %5221 = vmatmul.mubr.bf16.gmra.mxu0 %v4931
        %v5222 = vpop.f32.mrf.mxu0
        %v5223 = vadd.f32 0.0, %v5222
        %v5224 = vpop.f32.mrf.mxu0
        %v5225 = vpop.f32.mrf.mxu0
        %v5226 = vadd.f32 0.0, %v5225
        %v5227 = vpop.f32.mrf.mxu0
        %5228 = vmatprep.mubr.bf16.mxu0 %v4935
        %5229 = vmatmul.mubr.bf16.gmra.mxu0 %v4934
        %v5230 = vpop.f32.mrf.mxu0
        %v5231 = vadd.f32 0.0, %v5230
        %v5232 = vpop.f32.mrf.mxu0
        %v5233 = vpop.f32.mrf.mxu0
        %v5234 = vadd.f32 0.0, %v5233
        %v5235 = vpop.f32.mrf.mxu0
        %5236 = vmatprep.mubr.bf16.mxu0 %v4938
        %5237 = vmatmul.mubr.bf16.gmra.mxu0 %v4937
        %v5238 = vpop.f32.mrf.mxu0
        %v5239 = vadd.f32 0.0, %v5238
        %v5240 = vpop.f32.mrf.mxu0
        %v5241 = vpop.f32.mrf.mxu0
        %v5242 = vadd.f32 0.0, %v5241
        %v5243 = vpop.f32.mrf.mxu0
        %5244 = vmatprep.mubr.bf16.mxu0 %v4941
        %5245 = vmatmul.mubr.bf16.gmra.mxu0 %v4940
        %v5246 = vpop.f32.mrf.mxu0
        %v5247 = vadd.f32 0.0, %v5246
        %v5248 = vpop.f32.mrf.mxu0
        %v5249 = vpop.f32.mrf.mxu0
        %v5250 = vadd.f32 0.0, %v5249
        %v5251 = vpop.f32.mrf.mxu0
        %5252 = vmatprep.mubr.bf16.mxu0 %v4944
        %5253 = vmatmul.mubr.bf16.gmra.mxu0 %v4943
        %v5254 = vpop.f32.mrf.mxu0
        %v5255 = vadd.f32 0.0, %v5254
        %v5256 = vpop.f32.mrf.mxu0
        %v5257 = vpop.f32.mrf.mxu0
        %v5258 = vadd.f32 0.0, %v5257
        %v5259 = vpop.f32.mrf.mxu0
        %5260 = vmatprep.mubr.bf16.mxu0 %v4947
        %5261 = vmatmul.mubr.bf16.gmra.mxu0 %v4946
        %v5262 = vpop.f32.mrf.mxu0
        %v5263 = vadd.f32 0.0, %v5262
        %v5264 = vpop.f32.mrf.mxu0
        %v5265 = vpop.f32.mrf.mxu0
        %v5266 = vadd.f32 0.0, %v5265
        %v5267 = vpop.f32.mrf.mxu0
        %5268 = vmatprep.mubr.bf16.mxu0 %v4950
        %5269 = vmatmul.mubr.bf16.gmra.mxu0 %v4949
        %v5270 = vpop.f32.mrf.mxu0
        %v5271 = vadd.f32 0.0, %v5270
        %v5272 = vpop.f32.mrf.mxu0
        %v5273 = vpop.f32.mrf.mxu0
        %v5274 = vadd.f32 0.0, %v5273
        %v5275 = vpop.f32.mrf.mxu0
        %5276 = vmatprep.mubr.bf16.mxu0 %v4953
        %5277 = vmatmul.mubr.bf16.gmra.mxu0 %v4952
        %v5278 = vpop.f32.mrf.mxu0
        %v5279 = vadd.f32 0.0, %v5278
        %v5280 = vpop.f32.mrf.mxu0
        %v5281 = vpop.f32.mrf.mxu0
        %v5282 = vadd.f32 0.0, %v5281
        %v5283 = vpop.f32.mrf.mxu0
        %5284 = vmatprep.mubr.bf16.mxu0 %v4956
        %5285 = vmatmul.mubr.bf16.gmra.mxu0 %v4955
        %v5286 = vpop.f32.mrf.mxu0
        %v5287 = vadd.f32 0.0, %v5286
        %v5288 = vpop.f32.mrf.mxu0
        %v5289 = vpop.f32.mrf.mxu0
        %v5290 = vadd.f32 0.0, %v5289
        %v5291 = vpop.f32.mrf.mxu0
        %5292 = vmatprep.mubr.bf16.mxu0 %v4959
        %5293 = vmatmul.mubr.bf16.gmra.mxu0 %v4958
        %v5294 = vpop.f32.mrf.mxu0
        %v5295 = vadd.f32 0.0, %v5294
        %v5296 = vpop.f32.mrf.mxu0
        %v5297 = vpop.f32.mrf.mxu0
        %v5298 = vadd.f32 0.0, %v5297
        %v5299 = vpop.f32.mrf.mxu0
        %5300 = vmatprep.mubr.bf16.mxu0 %v4962
        %5301 = vmatmul.mubr.bf16.gmra.mxu0 %v4961
        %v5302 = vpop.f32.mrf.mxu0
        %v5303 = vadd.f32 0.0, %v5302
        %v5304 = vpop.f32.mrf.mxu0
        %v5305 = vpop.f32.mrf.mxu0
        %v5306 = vadd.f32 0.0, %v5305
        %v5307 = vpop.f32.mrf.mxu0
        %5308 = vmatprep.mubr.bf16.mxu0 %v4965
        %5309 = vmatmul.mubr.bf16.gmra.mxu0 %v4964
        %v5310 = vpop.f32.mrf.mxu0
        %v5311 = vadd.f32 0.0, %v5310
        %v5312 = vpop.f32.mrf.mxu0
        %v5313 = vpop.f32.mrf.mxu0
        %v5314 = vadd.f32 0.0, %v5313
        %v5315 = vpop.f32.mrf.mxu0
        %5316 = vdwg.mxu0
        %5317 = vmatprep.subr.bf16.mxu0 0
        %5318 = vmatpush1.bf16.msra.mxu0 0
        %5319 = vmatprep.subr.bf16.mxu0 0
        %5320 = vmatpush1.bf16.msra.mxu0 0
        %5321 = vmatprep.subr.bf16.mxu0 0
        %5322 = vmatpush1.bf16.msra.mxu0 0
        %5323 = vmatprep.subr.bf16.mxu0 0
        %5324 = vmatpush1.bf16.msra.mxu0 0
        %5325 = vmatprep.subr.bf16.mxu0 0
        %5326 = vmatpush1.bf16.msra.mxu0 0
        %5327 = vmatprep.subr.bf16.mxu0 0
        %5328 = vmatpush1.bf16.msra.mxu0 0
        %5329 = vmatprep.subr.bf16.mxu0 0
        %5330 = vmatpush1.bf16.msra.mxu0 %v5088
        %5331 = vmatprep.subr.bf16.mxu0 0
        %5332 = vmatpush1.bf16.msra.mxu0 %v5087
        %5333 = vmatprep.subr.bf16.mxu0 0
        %5334 = vmatpush2.bf16.msra.mxu0 0
        %5335 = vmatprep.subr.bf16.mxu0 0
        %5336 = vmatpush2.bf16.msra.mxu0 0
        %5337 = vmatprep.subr.bf16.mxu0 0
        %5338 = vmatpush2.bf16.msra.mxu0 0
        %5339 = vmatprep.subr.bf16.mxu0 0
        %5340 = vmatpush2.bf16.msra.mxu0 0
        %5341 = vmatprep.subr.bf16.mxu0 0
        %5342 = vmatpush2.bf16.msra.mxu0 0
        %5343 = vmatprep.subr.bf16.mxu0 0
        %5344 = vmatpush2.bf16.msra.mxu0 0
        %5345 = vmatprep.subr.bf16.mxu0 0
        %5346 = vmatpush2.bf16.msra.mxu0 0
        %5347 = vmatprep.subr.bf16.mxu0 0
        %5348 = vmatpush2.bf16.msra.mxu0 0
        %5349 = vmatprep.mubr.bf16.mxu0 0
        %5350 = vmatmul.mubr.bf16.gmra.mxu0 %v5109
        %v5351 = vpop.f32.mrf.mxu0
        %v5352 = vadd.f32 %v5191, %v5351
        %v5353 = vpop.f32.mrf.mxu0
        %v5354 = vpop.f32.mrf.mxu0
        %v5355 = vadd.f32 %v5194, %v5354
        %v5356 = vpop.f32.mrf.mxu0
        %5357 = vmatprep.mubr.bf16.mxu0 0
        %5358 = vmatmul.mubr.bf16.gmra.mxu0 %v5112
        %v5359 = vpop.f32.mrf.mxu0
        %v5360 = vadd.f32 %v5199, %v5359
        %v5361 = vpop.f32.mrf.mxu0
        %v5362 = vpop.f32.mrf.mxu0
        %v5363 = vadd.f32 %v5202, %v5362
        %v5364 = vpop.f32.mrf.mxu0
        %5365 = vmatprep.mubr.bf16.mxu0 0
        %5366 = vmatmul.mubr.bf16.gmra.mxu0 %v5115
        %v5367 = vpop.f32.mrf.mxu0
        %v5368 = vadd.f32 %v5207, %v5367
        %v5369 = vpop.f32.mrf.mxu0
        %v5370 = vpop.f32.mrf.mxu0
        %v5371 = vadd.f32 %v5210, %v5370
        %v5372 = vpop.f32.mrf.mxu0
        %5373 = vmatprep.mubr.bf16.mxu0 0
        %5374 = vmatmul.mubr.bf16.gmra.mxu0 %v5118
        %v5375 = vpop.f32.mrf.mxu0
        %v5376 = vadd.f32 %v5215, %v5375
        %v5377 = vpop.f32.mrf.mxu0
        %v5378 = vpop.f32.mrf.mxu0
        %v5379 = vadd.f32 %v5218, %v5378
        %v5380 = vpop.f32.mrf.mxu0
        %5381 = vmatprep.mubr.bf16.mxu0 0
        %5382 = vmatmul.mubr.bf16.gmra.mxu0 %v5121
        %v5383 = vpop.f32.mrf.mxu0
        %v5384 = vadd.f32 %v5223, %v5383
        %v5385 = vpop.f32.mrf.mxu0
        %v5386 = vpop.f32.mrf.mxu0
        %v5387 = vadd.f32 %v5226, %v5386
        %v5388 = vpop.f32.mrf.mxu0
        %5389 = vmatprep.mubr.bf16.mxu0 0
        %5390 = vmatmul.mubr.bf16.gmra.mxu0 %v5124
        %v5391 = vpop.f32.mrf.mxu0
        %v5392 = vadd.f32 %v5231, %v5391
        %v5393 = vpop.f32.mrf.mxu0
        %v5394 = vpop.f32.mrf.mxu0
        %v5395 = vadd.f32 %v5234, %v5394
        %v5396 = vpop.f32.mrf.mxu0
        %5397 = vmatprep.mubr.bf16.mxu0 0
        %5398 = vmatmul.mubr.bf16.gmra.mxu0 %v5127
        %v5399 = vpop.f32.mrf.mxu0
        %v5400 = vadd.f32 %v5239, %v5399
        %v5401 = vpop.f32.mrf.mxu0
        %v5402 = vpop.f32.mrf.mxu0
        %v5403 = vadd.f32 %v5242, %v5402
        %v5404 = vpop.f32.mrf.mxu0
        %5405 = vmatprep.mubr.bf16.mxu0 0
        %5406 = vmatmul.mubr.bf16.gmra.mxu0 %v5130
        %v5407 = vpop.f32.mrf.mxu0
        %v5408 = vadd.f32 %v5247, %v5407
        %v5409 = vpop.f32.mrf.mxu0
        %v5410 = vpop.f32.mrf.mxu0
        %v5411 = vadd.f32 %v5250, %v5410
        %v5412 = vpop.f32.mrf.mxu0
        %5413 = vmatprep.mubr.bf16.mxu0 0
        %5414 = vmatmul.mubr.bf16.gmra.mxu0 %v5133
        %v5415 = vpop.f32.mrf.mxu0
        %v5416 = vadd.f32 %v5255, %v5415
        %v5417 = vpop.f32.mrf.mxu0
        %v5418 = vpop.f32.mrf.mxu0
        %v5419 = vadd.f32 %v5258, %v5418
        %v5420 = vpop.f32.mrf.mxu0
        %5421 = vmatprep.mubr.bf16.mxu0 0
        %5422 = vmatmul.mubr.bf16.gmra.mxu0 %v5136
        %v5423 = vpop.f32.mrf.mxu0
        %v5424 = vadd.f32 %v5263, %v5423
        %v5425 = vpop.f32.mrf.mxu0
        %v5426 = vpop.f32.mrf.mxu0
        %v5427 = vadd.f32 %v5266, %v5426
        %v5428 = vpop.f32.mrf.mxu0
        %5429 = vmatprep.mubr.bf16.mxu0 0
        %5430 = vmatmul.mubr.bf16.gmra.mxu0 %v5139
        %v5431 = vpop.f32.mrf.mxu0
        %v5432 = vadd.f32 %v5271, %v5431
        %v5433 = vpop.f32.mrf.mxu0
        %v5434 = vpop.f32.mrf.mxu0
        %v5435 = vadd.f32 %v5274, %v5434
        %v5436 = vpop.f32.mrf.mxu0
        %5437 = vmatprep.mubr.bf16.mxu0 0
        %5438 = vmatmul.mubr.bf16.gmra.mxu0 %v5142
        %v5439 = vpop.f32.mrf.mxu0
        %v5440 = vadd.f32 %v5279, %v5439
        %v5441 = vpop.f32.mrf.mxu0
        %v5442 = vpop.f32.mrf.mxu0
        %v5443 = vadd.f32 %v5282, %v5442
        %v5444 = vpop.f32.mrf.mxu0
        %5445 = vmatprep.mubr.bf16.mxu0 0
        %5446 = vmatmul.mubr.bf16.gmra.mxu0 %v5145
        %v5447 = vpop.f32.mrf.mxu0
        %v5448 = vadd.f32 %v5287, %v5447
        %v5449 = vpop.f32.mrf.mxu0
        %v5450 = vpop.f32.mrf.mxu0
        %v5451 = vadd.f32 %v5290, %v5450
        %v5452 = vpop.f32.mrf.mxu0
        %5453 = vmatprep.mubr.bf16.mxu0 0
        %5454 = vmatmul.mubr.bf16.gmra.mxu0 %v5148
        %v5455 = vpop.f32.mrf.mxu0
        %v5456 = vadd.f32 %v5295, %v5455
        %v5457 = vpop.f32.mrf.mxu0
        %v5458 = vpop.f32.mrf.mxu0
        %v5459 = vadd.f32 %v5298, %v5458
        %v5460 = vpop.f32.mrf.mxu0
        %5461 = vmatprep.mubr.bf16.mxu0 0
        %5462 = vmatmul.mubr.bf16.gmra.mxu0 %v5151
        %v5463 = vpop.f32.mrf.mxu0
        %v5464 = vadd.f32 %v5303, %v5463
        %v5465 = vpop.f32.mrf.mxu0
        %v5466 = vpop.f32.mrf.mxu0
        %v5467 = vadd.f32 %v5306, %v5466
        %v5468 = vpop.f32.mrf.mxu0
        %5469 = vmatprep.mubr.bf16.mxu0 0
        %5470 = vmatmul.mubr.bf16.gmra.mxu0 %v5154
        %v5471 = vpop.f32.mrf.mxu0
        %v5472 = vadd.f32 %v5311, %v5471
        %v5473 = vpop.f32.mrf.mxu0
        %v5474 = vpop.f32.mrf.mxu0
        %v5475 = vadd.f32 %v5314, %v5474
        %v5476 = vpop.f32.mrf.mxu0
        %5477 = vdwg.mxu0
        %v5478 = vld [vmem:[%s5] sm:$0x1]
        %v5480 = vlaneseq
        %v5481 = vshrl.u32 %v5480, 7
        %v5482 = vsub.s32 0, %v5481
        %v5483 = vrot.slane %v5478, %v5482
        %v5485 = vmul.f32 %v5352, %v5483
        %v5486 = vmul.f32 %v5355, %v5483
        %v5487 = vmul.f32 %v5360, %v5483
        %v5488 = vmul.f32 %v5363, %v5483
        %v5489 = vmul.f32 %v5368, %v5483
        %v5490 = vmul.f32 %v5371, %v5483
        %v5491 = vmul.f32 %v5376, %v5483
        %v5492 = vmul.f32 %v5379, %v5483
        %v5493 = vmul.f32 %v5384, %v5483
        %v5494 = vmul.f32 %v5387, %v5483
        %v5495 = vmul.f32 %v5392, %v5483
        %v5496 = vmul.f32 %v5395, %v5483
        %v5497 = vmul.f32 %v5400, %v5483
        %v5498 = vmul.f32 %v5403, %v5483
        %v5499 = vmul.f32 %v5408, %v5483
        %v5500 = vmul.f32 %v5411, %v5483
        %v5501 = vmul.f32 %v5416, %v5483
        %v5502 = vmul.f32 %v5419, %v5483
        %v5503 = vmul.f32 %v5424, %v5483
        %v5504 = vmul.f32 %v5427, %v5483
        %v5505 = vmul.f32 %v5432, %v5483
        %v5506 = vmul.f32 %v5435, %v5483
        %v5507 = vmul.f32 %v5440, %v5483
        %v5508 = vmul.f32 %v5443, %v5483
        %v5509 = vmul.f32 %v5448, %v5483
        %v5510 = vmul.f32 %v5451, %v5483
        %v5511 = vmul.f32 %v5456, %v5483
        %v5512 = vmul.f32 %v5459, %v5483
        %v5513 = vmul.f32 %v5464, %v5483
        %v5514 = vmul.f32 %v5467, %v5483
        %v5515 = vmul.f32 %v5472, %v5483
        %v5516 = vmul.f32 %v5475, %v5483
        %v5517 = vld [vmem:[%s6] sm:$0x1]
        %v5519 = vlaneseq
        %v5520 = vshrl.u32 %v5519, 7
        %v5521 = vsub.s32 0, %v5520
        %v5522 = vrot.slane %v5517, %v5521
        %v5524 = vadd.f32 %v5485, %v5522
        %v5525 = vadd.f32 %v5486, %v5522
        %v5526 = vadd.f32 %v5487, %v5522
        %v5527 = vadd.f32 %v5488, %v5522
        %v5528 = vadd.f32 %v5489, %v5522
        %v5529 = vadd.f32 %v5490, %v5522
        %v5530 = vadd.f32 %v5491, %v5522
        %v5531 = vadd.f32 %v5492, %v5522
        %v5532 = vadd.f32 %v5493, %v5522
        %v5533 = vadd.f32 %v5494, %v5522
        %v5534 = vadd.f32 %v5495, %v5522
        %v5535 = vadd.f32 %v5496, %v5522
        %v5536 = vadd.f32 %v5497, %v5522
        %v5537 = vadd.f32 %v5498, %v5522
        %v5538 = vadd.f32 %v5499, %v5522
        %v5539 = vadd.f32 %v5500, %v5522
        %v5540 = vadd.f32 %v5501, %v5522
        %v5541 = vadd.f32 %v5502, %v5522
        %v5542 = vadd.f32 %v5503, %v5522
        %v5543 = vadd.f32 %v5504, %v5522
        %v5544 = vadd.f32 %v5505, %v5522
        %v5545 = vadd.f32 %v5506, %v5522
        %v5546 = vadd.f32 %v5507, %v5522
        %v5547 = vadd.f32 %v5508, %v5522
        %v5548 = vadd.f32 %v5509, %v5522
        %v5549 = vadd.f32 %v5510, %v5522
        %v5550 = vadd.f32 %v5511, %v5522
        %v5551 = vadd.f32 %v5512, %v5522
        %v5552 = vadd.f32 %v5513, %v5522
        %v5553 = vadd.f32 %v5514, %v5522
        %v5554 = vadd.f32 %v5515, %v5522
        %v5555 = vadd.f32 %v5516, %v5522
        %v5556 = vmax.f32 %v5524, 0.0
        %v5557 = vmax.f32 %v5525, 0.0
        %v5558 = vmax.f32 %v5526, 0.0
        %v5559 = vmax.f32 %v5527, 0.0
        %v5560 = vmax.f32 %v5528, 0.0
        %v5561 = vmax.f32 %v5529, 0.0
        %v5562 = vmax.f32 %v5530, 0.0
        %v5563 = vmax.f32 %v5531, 0.0
        %v5564 = vmax.f32 %v5532, 0.0
        %v5565 = vmax.f32 %v5533, 0.0
        %v5566 = vmax.f32 %v5534, 0.0
        %v5567 = vmax.f32 %v5535, 0.0
        %v5568 = vmax.f32 %v5536, 0.0
        %v5569 = vmax.f32 %v5537, 0.0
        %v5570 = vmax.f32 %v5538, 0.0
        %v5571 = vmax.f32 %v5539, 0.0
        %v5572 = vmax.f32 %v5540, 0.0
        %v5573 = vmax.f32 %v5541, 0.0
        %v5574 = vmax.f32 %v5542, 0.0
        %v5575 = vmax.f32 %v5543, 0.0
        %v5576 = vmax.f32 %v5544, 0.0
        %v5577 = vmax.f32 %v5545, 0.0
        %v5578 = vmax.f32 %v5546, 0.0
        %v5579 = vmax.f32 %v5547, 0.0
        %v5580 = vmax.f32 %v5548, 0.0
        %v5581 = vmax.f32 %v5549, 0.0
        %v5582 = vmax.f32 %v5550, 0.0
        %v5583 = vmax.f32 %v5551, 0.0
        %v5584 = vmax.f32 %v5552, 0.0
        %v5585 = vmax.f32 %v5553, 0.0
        %v5586 = vmax.f32 %v5554, 0.0
        %v5587 = vmax.f32 %v5555, 0.0
        %v5588 = vpack.c.bf16 %v5557, %v5556
        %v5589 = vpack.c.bf16 %v5559, %v5558
        %v5590 = vpack.c.bf16 %v5561, %v5560
        %v5591 = vpack.c.bf16 %v5563, %v5562
        %v5592 = vpack.c.bf16 %v5565, %v5564
        %v5593 = vpack.c.bf16 %v5567, %v5566
        %v5594 = vpack.c.bf16 %v5569, %v5568
        %v5595 = vpack.c.bf16 %v5571, %v5570
        %v5596 = vpack.c.bf16 %v5573, %v5572
        %v5597 = vpack.c.bf16 %v5575, %v5574
        %v5598 = vpack.c.bf16 %v5577, %v5576
        %v5599 = vpack.c.bf16 %v5579, %v5578
        %v5600 = vpack.c.bf16 %v5581, %v5580
        %v5601 = vpack.c.bf16 %v5583, %v5582
        %v5602 = vpack.c.bf16 %v5585, %v5584
        %v5603 = vpack.c.bf16 %v5587, %v5586
        %v5604 = vld [vmem:[%s7] sm:$0xf]
        %v5605 = vld [vmem:[%s7 + $0x4] sm:$0xf]
        %v5606 = vld [vmem:[%s7 + $0x8] sm:$0xf]
        %v5607 = vld [vmem:[%s7 + $0xc] sm:$0xf]
        %v5612 = vunpack.c.l.b16 %v5604
        %v5613 = vunpack.c.l.b16 %v5605
        %v5614 = vunpack.c.l.b16 %v5606
        %v5615 = vunpack.c.l.b16 %v5607
        %v5616 = vpack.c.b16 %v5613, %v5612
        %v5617 = vpack.c.b16 %v5615, %v5614
        %v5621 = vsel %vm5107, %v5588, 0
        %v5624 = vsel %vm5107, %v5589, 0
        %v5627 = vsel %vm5107, %v5590, 0
        %v5630 = vsel %vm5107, %v5591, 0
        %v5633 = vsel %vm5107, %v5592, 0
        %v5636 = vsel %vm5107, %v5593, 0
        %v5639 = vsel %vm5107, %v5594, 0
        %v5642 = vsel %vm5107, %v5595, 0
        %v5645 = vsel %vm5107, %v5596, 0
        %v5648 = vsel %vm5107, %v5597, 0
        %v5651 = vsel %vm5107, %v5598, 0
        %v5654 = vsel %vm5107, %v5599, 0
        %v5657 = vsel %vm5107, %v5600, 0
        %v5660 = vsel %vm5107, %v5601, 0
        %v5663 = vsel %vm5107, %v5602, 0
        %v5666 = vsel %vm5107, %v5603, 0
        %5668 = vmatprep.subr.bf16.mxu0 0
        %5669 = vmatpush1.bf16.msra.mxu0 0
        %5670 = vmatprep.subr.bf16.mxu0 0
        %5671 = vmatpush1.bf16.msra.mxu0 0
        %5672 = vmatprep.subr.bf16.mxu0 0
        %5673 = vmatpush1.bf16.msra.mxu0 0
        %5674 = vmatprep.subr.bf16.mxu0 0
        %5675 = vmatpush1.bf16.msra.mxu0 0
        %5676 = vmatprep.subr.bf16.mxu0 0
        %5677 = vmatpush1.bf16.msra.mxu0 0
        %5678 = vmatprep.subr.bf16.mxu0 0
        %5679 = vmatpush1.bf16.msra.mxu0 0
        %5680 = vmatprep.subr.bf16.mxu0 0
        %5681 = vmatpush1.bf16.msra.mxu0 %v5617
        %5682 = vmatprep.subr.bf16.mxu0 0
        %5683 = vmatpush1.bf16.msra.mxu0 %v5616
        %5684 = vmatprep.subr.bf16.mxu0 0
        %5685 = vmatpush2.bf16.msra.mxu0 0
        %5686 = vmatprep.subr.bf16.mxu0 0
        %5687 = vmatpush2.bf16.msra.mxu0 0
        %5688 = vmatprep.subr.bf16.mxu0 0
        %5689 = vmatpush2.bf16.msra.mxu0 0
        %5690 = vmatprep.subr.bf16.mxu0 0
        %5691 = vmatpush2.bf16.msra.mxu0 0
        %5692 = vmatprep.subr.bf16.mxu0 0
        %5693 = vmatpush2.bf16.msra.mxu0 0
        %5694 = vmatprep.subr.bf16.mxu0 0
        %5695 = vmatpush2.bf16.msra.mxu0 0
        %5696 = vmatprep.subr.bf16.mxu0 0
        %5697 = vmatpush2.bf16.msra.mxu0 0
        %5698 = vmatprep.subr.bf16.mxu0 0
        %5699 = vmatpush2.bf16.msra.mxu0 0
        %5700 = vmatprep.mubr.bf16.mxu0 0
        %5701 = vmatmul.mubr.bf16.gmra.mxu0 %v5621
        %v5702 = vpop.f32.mrf.mxu0
        %v5703 = vadd.f32 0.0, %v5702
        %v5704 = vpop.f32.mrf.mxu0
        %v5705 = vpop.f32.mrf.mxu0
        %v5706 = vadd.f32 0.0, %v5705
        %v5707 = vpop.f32.mrf.mxu0
        %5708 = vmatprep.mubr.bf16.mxu0 0
        %5709 = vmatmul.mubr.bf16.gmra.mxu0 %v5624
        %v5710 = vpop.f32.mrf.mxu0
        %v5711 = vadd.f32 0.0, %v5710
        %v5712 = vpop.f32.mrf.mxu0
        %v5713 = vpop.f32.mrf.mxu0
        %v5714 = vadd.f32 0.0, %v5713
        %v5715 = vpop.f32.mrf.mxu0
        %5716 = vmatprep.mubr.bf16.mxu0 0
        %5717 = vmatmul.mubr.bf16.gmra.mxu0 %v5627
        %v5718 = vpop.f32.mrf.mxu0
        %v5719 = vadd.f32 0.0, %v5718
        %v5720 = vpop.f32.mrf.mxu0
        %v5721 = vpop.f32.mrf.mxu0
        %v5722 = vadd.f32 0.0, %v5721
        %v5723 = vpop.f32.mrf.mxu0
        %5724 = vmatprep.mubr.bf16.mxu0 0
        %5725 = vmatmul.mubr.bf16.gmra.mxu0 %v5630
        %v5726 = vpop.f32.mrf.mxu0
        %v5727 = vadd.f32 0.0, %v5726
        %v5728 = vpop.f32.mrf.mxu0
        %v5729 = vpop.f32.mrf.mxu0
        %v5730 = vadd.f32 0.0, %v5729
        %v5731 = vpop.f32.mrf.mxu0
        %5732 = vmatprep.mubr.bf16.mxu0 0
        %5733 = vmatmul.mubr.bf16.gmra.mxu0 %v5633
        %v5734 = vpop.f32.mrf.mxu0
        %v5735 = vadd.f32 0.0, %v5734
        %v5736 = vpop.f32.mrf.mxu0
        %v5737 = vpop.f32.mrf.mxu0
        %v5738 = vadd.f32 0.0, %v5737
        %v5739 = vpop.f32.mrf.mxu0
        %5740 = vmatprep.mubr.bf16.mxu0 0
        %5741 = vmatmul.mubr.bf16.gmra.mxu0 %v5636
        %v5742 = vpop.f32.mrf.mxu0
        %v5743 = vadd.f32 0.0, %v5742
        %v5744 = vpop.f32.mrf.mxu0
        %v5745 = vpop.f32.mrf.mxu0
        %v5746 = vadd.f32 0.0, %v5745
        %v5747 = vpop.f32.mrf.mxu0
        %5748 = vmatprep.mubr.bf16.mxu0 0
        %5749 = vmatmul.mubr.bf16.gmra.mxu0 %v5639
        %v5750 = vpop.f32.mrf.mxu0
        %v5751 = vadd.f32 0.0, %v5750
        %v5752 = vpop.f32.mrf.mxu0
        %v5753 = vpop.f32.mrf.mxu0
        %v5754 = vadd.f32 0.0, %v5753
        %v5755 = vpop.f32.mrf.mxu0
        %5756 = vmatprep.mubr.bf16.mxu0 0
        %5757 = vmatmul.mubr.bf16.gmra.mxu0 %v5642
        %v5758 = vpop.f32.mrf.mxu0
        %v5759 = vadd.f32 0.0, %v5758
        %v5760 = vpop.f32.mrf.mxu0
        %v5761 = vpop.f32.mrf.mxu0
        %v5762 = vadd.f32 0.0, %v5761
        %v5763 = vpop.f32.mrf.mxu0
        %5764 = vmatprep.mubr.bf16.mxu0 0
        %5765 = vmatmul.mubr.bf16.gmra.mxu0 %v5645
        %v5766 = vpop.f32.mrf.mxu0
        %v5767 = vadd.f32 0.0, %v5766
        %v5768 = vpop.f32.mrf.mxu0
        %v5769 = vpop.f32.mrf.mxu0
        %v5770 = vadd.f32 0.0, %v5769
        %v5771 = vpop.f32.mrf.mxu0
        %5772 = vmatprep.mubr.bf16.mxu0 0
        %5773 = vmatmul.mubr.bf16.gmra.mxu0 %v5648
        %v5774 = vpop.f32.mrf.mxu0
        %v5775 = vadd.f32 0.0, %v5774
        %v5776 = vpop.f32.mrf.mxu0
        %v5777 = vpop.f32.mrf.mxu0
        %v5778 = vadd.f32 0.0, %v5777
        %v5779 = vpop.f32.mrf.mxu0
        %5780 = vmatprep.mubr.bf16.mxu0 0
        %5781 = vmatmul.mubr.bf16.gmra.mxu0 %v5651
        %v5782 = vpop.f32.mrf.mxu0
        %v5783 = vadd.f32 0.0, %v5782
        %v5784 = vpop.f32.mrf.mxu0
        %v5785 = vpop.f32.mrf.mxu0
        %v5786 = vadd.f32 0.0, %v5785
        %v5787 = vpop.f32.mrf.mxu0
        %5788 = vmatprep.mubr.bf16.mxu0 0
        %5789 = vmatmul.mubr.bf16.gmra.mxu0 %v5654
        %v5790 = vpop.f32.mrf.mxu0
        %v5791 = vadd.f32 0.0, %v5790
        %v5792 = vpop.f32.mrf.mxu0
        %v5793 = vpop.f32.mrf.mxu0
        %v5794 = vadd.f32 0.0, %v5793
        %v5795 = vpop.f32.mrf.mxu0
        %5796 = vmatprep.mubr.bf16.mxu0 0
        %5797 = vmatmul.mubr.bf16.gmra.mxu0 %v5657
        %v5798 = vpop.f32.mrf.mxu0
        %v5799 = vadd.f32 0.0, %v5798
        %v5800 = vpop.f32.mrf.mxu0
        %v5801 = vpop.f32.mrf.mxu0
        %v5802 = vadd.f32 0.0, %v5801
        %v5803 = vpop.f32.mrf.mxu0
        %5804 = vmatprep.mubr.bf16.mxu0 0
        %5805 = vmatmul.mubr.bf16.gmra.mxu0 %v5660
        %v5806 = vpop.f32.mrf.mxu0
        %v5807 = vadd.f32 0.0, %v5806
        %v5808 = vpop.f32.mrf.mxu0
        %v5809 = vpop.f32.mrf.mxu0
        %v5810 = vadd.f32 0.0, %v5809
        %v5811 = vpop.f32.mrf.mxu0
        %5812 = vmatprep.mubr.bf16.mxu0 0
        %5813 = vmatmul.mubr.bf16.gmra.mxu0 %v5663
        %v5814 = vpop.f32.mrf.mxu0
        %v5815 = vadd.f32 0.0, %v5814
        %v5816 = vpop.f32.mrf.mxu0
        %v5817 = vpop.f32.mrf.mxu0
        %v5818 = vadd.f32 0.0, %v5817
        %v5819 = vpop.f32.mrf.mxu0
        %5820 = vmatprep.mubr.bf16.mxu0 0
        %5821 = vmatmul.mubr.bf16.gmra.mxu0 %v5666
        %v5822 = vpop.f32.mrf.mxu0
        %v5823 = vadd.f32 0.0, %v5822
        %v5824 = vpop.f32.mrf.mxu0
        %v5825 = vpop.f32.mrf.mxu0
        %v5826 = vadd.f32 0.0, %v5825
        %v5827 = vpop.f32.mrf.mxu0
        %5828 = vdwg.mxu0
        %v5829 = vld [vmem:[%s8] sm:$0x1]
        %v5831 = vlaneseq
        %v5832 = vshrl.u32 %v5831, 7
        %v5833 = vsub.s32 0, %v5832
        %v5834 = vrot.slane %v5829, %v5833
        %v5836 = vmul.f32 %v5703, %v5834
        %v5837 = vmul.f32 %v5706, %v5834
        %v5838 = vmul.f32 %v5711, %v5834
        %v5839 = vmul.f32 %v5714, %v5834
        %v5840 = vmul.f32 %v5719, %v5834
        %v5841 = vmul.f32 %v5722, %v5834
        %v5842 = vmul.f32 %v5727, %v5834
        %v5843 = vmul.f32 %v5730, %v5834
        %v5844 = vmul.f32 %v5735, %v5834
        %v5845 = vmul.f32 %v5738, %v5834
        %v5846 = vmul.f32 %v5743, %v5834
        %v5847 = vmul.f32 %v5746, %v5834
        %v5848 = vmul.f32 %v5751, %v5834
        %v5849 = vmul.f32 %v5754, %v5834
        %v5850 = vmul.f32 %v5759, %v5834
        %v5851 = vmul.f32 %v5762, %v5834
        %v5852 = vmul.f32 %v5767, %v5834
        %v5853 = vmul.f32 %v5770, %v5834
        %v5854 = vmul.f32 %v5775, %v5834
        %v5855 = vmul.f32 %v5778, %v5834
        %v5856 = vmul.f32 %v5783, %v5834
        %v5857 = vmul.f32 %v5786, %v5834
        %v5858 = vmul.f32 %v5791, %v5834
        %v5859 = vmul.f32 %v5794, %v5834
        %v5860 = vmul.f32 %v5799, %v5834
        %v5861 = vmul.f32 %v5802, %v5834
        %v5862 = vmul.f32 %v5807, %v5834
        %v5863 = vmul.f32 %v5810, %v5834
        %v5864 = vmul.f32 %v5815, %v5834
        %v5865 = vmul.f32 %v5818, %v5834
        %v5866 = vmul.f32 %v5823, %v5834
        %v5867 = vmul.f32 %v5826, %v5834
        %v5868 = vld [vmem:[%s9] sm:$0x1]
        %v5870 = vlaneseq
        %v5871 = vshrl.u32 %v5870, 7
        %v5872 = vsub.s32 0, %v5871
        %v5873 = vrot.slane %v5868, %v5872
        %v5875 = vadd.f32 %v5836, %v5873
        %v5876 = vadd.f32 %v5837, %v5873
        %v5877 = vadd.f32 %v5838, %v5873
        %v5878 = vadd.f32 %v5839, %v5873
        %v5879 = vadd.f32 %v5840, %v5873
        %v5880 = vadd.f32 %v5841, %v5873
        %v5881 = vadd.f32 %v5842, %v5873
        %v5882 = vadd.f32 %v5843, %v5873
        %v5883 = vadd.f32 %v5844, %v5873
        %v5884 = vadd.f32 %v5845, %v5873
        %v5885 = vadd.f32 %v5846, %v5873
        %v5886 = vadd.f32 %v5847, %v5873
        %v5887 = vadd.f32 %v5848, %v5873
        %v5888 = vadd.f32 %v5849, %v5873
        %v5889 = vadd.f32 %v5850, %v5873
        %v5890 = vadd.f32 %v5851, %v5873
        %v5891 = vadd.f32 %v5852, %v5873
        %v5892 = vadd.f32 %v5853, %v5873
        %v5893 = vadd.f32 %v5854, %v5873
        %v5894 = vadd.f32 %v5855, %v5873
        %v5895 = vadd.f32 %v5856, %v5873
        %v5896 = vadd.f32 %v5857, %v5873
        %v5897 = vadd.f32 %v5858, %v5873
        %v5898 = vadd.f32 %v5859, %v5873
        %v5899 = vadd.f32 %v5860, %v5873
        %v5900 = vadd.f32 %v5861, %v5873
        %v5901 = vadd.f32 %v5862, %v5873
        %v5902 = vadd.f32 %v5863, %v5873
        %v5903 = vadd.f32 %v5864, %v5873
        %v5904 = vadd.f32 %v5865, %v5873
        %v5905 = vadd.f32 %v5866, %v5873
        %v5906 = vadd.f32 %v5867, %v5873
        %v5907 = vadd.f32 %v5875, %v394
        %v5908 = vadd.f32 %v5876, %v395
        %v5909 = vadd.f32 %v5877, %v396
        %v5910 = vadd.f32 %v5878, %v397
        %v5911 = vadd.f32 %v5879, %v398
        %v5912 = vadd.f32 %v5880, %v399
        %v5913 = vadd.f32 %v5881, %v400
        %v5914 = vadd.f32 %v5882, %v401
        %v5915 = vadd.f32 %v5883, %v402
        %v5916 = vadd.f32 %v5884, %v403
        %v5917 = vadd.f32 %v5885, %v404
        %v5918 = vadd.f32 %v5886, %v405
        %v5919 = vadd.f32 %v5887, %v406
        %v5920 = vadd.f32 %v5888, %v407
        %v5921 = vadd.f32 %v5889, %v408
        %v5922 = vadd.f32 %v5890, %v409
        %v5923 = vadd.f32 %v5891, %v410
        %v5924 = vadd.f32 %v5892, %v411
        %v5925 = vadd.f32 %v5893, %v412
        %v5926 = vadd.f32 %v5894, %v413
        %v5927 = vadd.f32 %v5895, %v414
        %v5928 = vadd.f32 %v5896, %v415
        %v5929 = vadd.f32 %v5897, %v416
        %v5930 = vadd.f32 %v5898, %v417
        %v5931 = vadd.f32 %v5899, %v418
        %v5932 = vadd.f32 %v5900, %v419
        %v5933 = vadd.f32 %v5901, %v420
        %v5934 = vadd.f32 %v5902, %v421
        %v5935 = vadd.f32 %v5903, %v422
        %v5936 = vadd.f32 %v5904, %v423
        %v5937 = vadd.f32 %v5905, %v424
        %v5938 = vadd.f32 %v5906, %v425
        %v5939 = vmax.f32 %v5907, 0.0
        %v5940 = vmax.f32 %v5908, 0.0
        %v5941 = vmax.f32 %v5909, 0.0
        %v5942 = vmax.f32 %v5910, 0.0
        %v5943 = vmax.f32 %v5911, 0.0
        %v5944 = vmax.f32 %v5912, 0.0
        %v5945 = vmax.f32 %v5913, 0.0
        %v5946 = vmax.f32 %v5914, 0.0
        %v5947 = vmax.f32 %v5915, 0.0
        %v5948 = vmax.f32 %v5916, 0.0
        %v5949 = vmax.f32 %v5917, 0.0
        %v5950 = vmax.f32 %v5918, 0.0
        %v5951 = vmax.f32 %v5919, 0.0
        %v5952 = vmax.f32 %v5920, 0.0
        %v5953 = vmax.f32 %v5921, 0.0
        %v5954 = vmax.f32 %v5922, 0.0
        %v5955 = vmax.f32 %v5923, 0.0
        %v5956 = vmax.f32 %v5924, 0.0
        %v5957 = vmax.f32 %v5925, 0.0
        %v5958 = vmax.f32 %v5926, 0.0
        %v5959 = vmax.f32 %v5927, 0.0
        %v5960 = vmax.f32 %v5928, 0.0
        %v5961 = vmax.f32 %v5929, 0.0
        %v5962 = vmax.f32 %v5930, 0.0
        %v5963 = vmax.f32 %v5931, 0.0
        %v5964 = vmax.f32 %v5932, 0.0
        %v5965 = vmax.f32 %v5933, 0.0
        %v5966 = vmax.f32 %v5934, 0.0
        %v5967 = vmax.f32 %v5935, 0.0
        %v5968 = vmax.f32 %v5936, 0.0
        %v5969 = vmax.f32 %v5937, 0.0
        %v5970 = vmax.f32 %v5938, 0.0
        %5971 = vst [vmem:[%s392] sm:$0xff] %v5939
        %5972 = vst [vmem:[%s392 + $0x8] sm:$0xff] %v5940
        %5973 = vst [vmem:[%s392 + $0x10] sm:$0xff] %v5941
        %5974 = vst [vmem:[%s392 + $0x18] sm:$0xff] %v5942
        %5975 = vst [vmem:[%s392 + $0x20] sm:$0xff] %v5943
        %5976 = vst [vmem:[%s392 + $0x28] sm:$0xff] %v5944
        %5977 = vst [vmem:[%s392 + $0x30] sm:$0xff] %v5945
        %5978 = vst [vmem:[%s392 + $0x38] sm:$0xff] %v5946
        %5979 = vst [vmem:[%s392 + $0x40] sm:$0xff] %v5947
        %5980 = vst [vmem:[%s392 + $0x48] sm:$0xff] %v5948
        %5981 = vst [vmem:[%s392 + $0x50] sm:$0xff] %v5949
        %5982 = vst [vmem:[%s392 + $0x58] sm:$0xff] %v5950
        %5983 = vst [vmem:[%s392 + $0x60] sm:$0xff] %v5951
        %5984 = vst [vmem:[%s392 + $0x68] sm:$0xff] %v5952
        %5985 = vst [vmem:[%s392 + $0x70] sm:$0xff] %v5953
        %5986 = vst [vmem:[%s392 + $0x78] sm:$0xff] %v5954
        %5987 = vst [vmem:[%s392 + $0x80] sm:$0xff] %v5955
        %5988 = vst [vmem:[%s392 + $0x88] sm:$0xff] %v5956
        %5989 = vst [vmem:[%s392 + $0x90] sm:$0xff] %v5957
        %5990 = vst [vmem:[%s392 + $0x98] sm:$0xff] %v5958
        %5991 = vst [vmem:[%s392 + $0xa0] sm:$0xff] %v5959
        %5992 = vst [vmem:[%s392 + $0xa8] sm:$0xff] %v5960
        %5993 = vst [vmem:[%s392 + $0xb0] sm:$0xff] %v5961
        %5994 = vst [vmem:[%s392 + $0xb8] sm:$0xff] %v5962
        %5995 = vst [vmem:[%s392 + $0xc0] sm:$0xff] %v5963
        %5996 = vst [vmem:[%s392 + $0xc8] sm:$0xff] %v5964
        %5997 = vst [vmem:[%s392 + $0xd0] sm:$0xff] %v5965
        %5998 = vst [vmem:[%s392 + $0xd8] sm:$0xff] %v5966
        %5999 = vst [vmem:[%s392 + $0xe0] sm:$0xff] %v5967
        %6000 = vst [vmem:[%s392 + $0xe8] sm:$0xff] %v5968
        %6001 = vst [vmem:[%s392 + $0xf0] sm:$0xff] %v5969
        %6002 = vst [vmem:[%s392 + $0xf8] sm:$0xff] %v5970
        %s6003 = sand.u32 %s251, 1
        %s6004 = scalar_lea.sflag [#allocation6], %s6003
        %s6005 = sand.u32 %s251, 1
        %s6006 = smul.addr %s6005, 256
        %s6007 = scalar_lea.vmem [#allocation9], %s6006
        // Predicated region
        $region69: #{bottleneck_forward.1} parent=59 // pred_check
          %p6008 = pneg %p261
        $region70: #{bottleneck_forward.1} parent=59 // pred_check_branch
          %6010 = sbr.rel (%p6008) target = $region72
        $region71: #{bottleneck_forward.1} parent=59 // pred_region
          %s6012 = ssub.s32 4096, 4096
          %6013 = vsyncadd %s6004, %s6012
          %s6014 = smul.addr %s28, 32
          %s6015 = smul.addr %s6014, 128
          %s6016 = scalar_lea.hbm %s10, %s6015
          %s6017 = sshll.u32 %s6007, 4
          %s6018 = int_to_ptr.vmem [resolvable:$true] %s6017
          %6023 = dma.vmem_to_hbm [thread:$0]  %s6018, 4096, %s6016, %s6004, 128, 128, 8
        $region72: #{bottleneck_forward.1} parent=59 // pred_fallthru
          _
      $region60: #{bottleneck_forward.1} parent=5 // pred_fallthru
        _
      %p6024 = scmp.le.s32.totalorder 2, %s23
      // Predicated region
      $region73: #{bottleneck_forward.1} parent=5 // pred_check
        %p6025 = pneg %p6024
      $region74: #{bottleneck_forward.1} parent=5 // pred_check_branch
        %6027 = sbr.rel (%p6025) target = $region76
      $region75: #{bottleneck_forward.1} parent=5 // pred_region
        %s6028 = ssub.s32 %s23, 2
        // Predicated region
        $region77: #{bottleneck_forward.1} parent=75 // pred_check
          %p6029 = pneg %p267
        $region78: #{bottleneck_forward.1} parent=75 // pred_check_branch
          %6031 = sbr.rel (%p6029) target = $region80
        $region79: #{bottleneck_forward.1} parent=75 // pred_region
          %s6032 = sand.u32 %s252, 1
          %s6033 = scalar_lea.sflag [#allocation6], %s6032
          %s6034 = sand.u32 %s252, 1
          %s6035 = smul.addr %s6034, 256
          %s6036 = scalar_lea.vmem [#allocation9], %s6035
          %6037 = dma.done %s6033, 4096
        $region80: #{bottleneck_forward.1} parent=75 // pred_fallthru
          _
      $region76: #{bottleneck_forward.1} parent=5 // pred_fallthru
        _
    $region6: #{bottleneck_forward.1} parent=1 // loop_footer
      %s27 = sadd.s32 1, %s23
    $region7: #{bottleneck_forward.1} parent=1 // loop_footer_branch
      %22 = sbr.rel target = $region3
    $region8: #{bottleneck_forward.1} parent=1 // loop_exit
      _
    %6038 = vsyncpa [#allocation5], 1
    %s6039 = scalar_lea.sflag [#allocation5], 1
    %6040 = vsyncpa %s6039, 1
    %6041 = vsyncpa [#allocation8], 1
    %6042 = vsyncpa [#allocation6], 1
    %s6043 = scalar_lea.sflag [#allocation6], 1
    %6044 = vsyncpa %s6043, 1

</llo_original>
